<compile_context>
chip_gen: v7x
topology: tpu7x:2x2x1
jax: 0.10.0
libtpu: 0.0.40
codegen_flags: <defaults>
</compile_context>

<pallas_src>
import jax
import jax.numpy as jnp
from jax.experimental import pallas as pl
from jax.experimental.pallas import tpu as pltpu

BN_EPS = 1e-5
LANE = 128
_PATCH_BUDGET_BYTES = 4 << 20  # per-chunk bf16 im2col patch budget


def _round_up(n, m):
    return ((n + m - 1) // m) * m


def _row_chunks(h2, w2, k_width):
    """Static plan of (row_start, n_rows) chunks keeping the bf16 patch temp
    (n_rows*w2, k_width) under _PATCH_BUDGET_BYTES."""
    rows = max(1, min(h2, _PATCH_BUDGET_BYTES // max(1, w2 * k_width * 2)))
    return [(s, min(rows, h2 - s)) for s in range(0, h2, rows)]


def _conv3x3_rows(p_ref, r0, nrows, w2, cin, w_mat, b_row):
    """3x3 conv of rows [r0, r0+nrows) of a zero-padded (h2+2, w2+2, cin) slab.

    Builds a lane-aligned (nrows*w2, 9*cin) bf16 im2col patch matrix (cin is a
    multiple of 128) and issues a single MXU matmul against the bf16 weight slab
    (BN scale already folded in), then f32 bias + ReLU.
    """
    cols = []
    for dy in range(3):
        for dx in range(3):
            sl = p_ref[r0 + dy:r0 + dy + nrows, dx:dx + w2, :]
            cols.append(sl.reshape(nrows * w2, cin).astype(jnp.bfloat16))
    patches = jnp.concatenate(cols, axis=-1)                       # (nrows*w2, 9*cin)
    y = jnp.dot(patches, w_mat, preferred_element_type=jnp.float32)  # one MXU pass
    return jnp.maximum(y + b_row, 0.0)                             # f32 bias + ReLU


def _down_fused_kernel(x_ref, w1_ref, b1_ref, w2_ref, b2_ref, o_ref,
                       p1_ref, p2_ref):
    # x_ref : (1, H, W, Cinp)      f32 channel-padded input (lane-dense block)
    # w1_ref: (9*Cinp,  Cmidp)     bf16 conv1 weights (BN1 scale folded in)
    # b1_ref: (1, Cmidp)           f32 folded BN1 bias
    # w2_ref: (9*Cmidp, Coutp)     bf16 conv2 weights (BN2 scale folded in)
    # b2_ref: (1, Coutp)           f32 folded BN2 bias
    # o_ref : (1, H2, W2, Coutp)   lane-dense output (Coutp multiple of 128)
    # p1_ref: VMEM (H2+2, W2+2, Cinp)   f32 zero-haloed pooled activation
    # p2_ref: VMEM (H2+2, W2+2, Cmidp)  f32 zero-haloed conv1 activation
    _, h, w, cinp = x_ref.shape
    _, h2, w2, coutp = o_ref.shape
    cmidp = w1_ref.shape[1]
    f32 = jnp.float32

    # ---- 2x2 max pool (stride 2), f32, fully in vregs ------------------------
    x = x_ref[0]                                   # (h, w, cinp)
    xr = x.reshape(h2, 2, w, cinp)                 # minor dims stay (w, cinp)
    rowmax = jnp.maximum(xr[:, 0], xr[:, 1])       # (h2, w, cinp)
    cpair = rowmax.reshape(h2, w2, 2, cinp)        # small in-VMEM relayout only
    pooled = jnp.maximum(cpair[:, :, 0, :], cpair[:, :, 1, :])   # (h2, w2, cinp)

    # ---- zero ONLY the 1-pixel halo border (interior fully overwritten) ------
    # Done every step (not pl.when(b==0)) so it is correct even when the batch
    # grid axis is sharded across TensorCores (each core has its own scratch).
    p1_ref[0:1, :, :] = jnp.zeros((1, w2 + 2, cinp), f32)
    p1_ref[h2 + 1:h2 + 2, :, :] = jnp.zeros((1, w2 + 2, cinp), f32)
    p1_ref[:, 0:1, :] = jnp.zeros((h2 + 2, 1, cinp), f32)
    p1_ref[:, w2 + 1:w2 + 2, :] = jnp.zeros((h2 + 2, 1, cinp), f32)
    p1_ref[1:h2 + 1, 1:w2 + 1, :] = pooled

    p2_ref[0:1, :, :] = jnp.zeros((1, w2 + 2, cmidp), f32)
    p2_ref[h2 + 1:h2 + 2, :, :] = jnp.zeros((1, w2 + 2, cmidp), f32)
    p2_ref[:, 0:1, :] = jnp.zeros((h2 + 2, 1, cmidp), f32)
    p2_ref[:, w2 + 1:w2 + 2, :] = jnp.zeros((h2 + 2, 1, cmidp), f32)

    # ---- conv1 + BN + ReLU, chunked over output rows -------------------------
    w1m = w1_ref[...]
    b1r = b1_ref[...]
    for r0, nr in _row_chunks(h2, w2, 9 * cinp):
        y1 = _conv3x3_rows(p1_ref, r0, nr, w2, cinp, w1m, b1r)
        p2_ref[1 + r0:1 + r0 + nr, 1:w2 + 1, :] = y1.reshape(nr, w2, cmidp)

    # ---- conv2 + BN + ReLU, chunked; lane-dense store to the output ----------
    w2m = w2_ref[...]
    b2r = b2_ref[...]
    for r0, nr in _row_chunks(h2, w2, 9 * cmidp):
        y2 = _conv3x3_rows(p2_ref, r0, nr, w2, cmidp, w2m, b2r)
        o_ref[0:1, r0:r0 + nr, :, :] = (
            y2.reshape(1, nr, w2, coutp).astype(o_ref.dtype))


def down_fused(x_nhwc, w1_eff, b1_eff, w2_eff, b2_eff):
    """x_nhwc: (B, H, W, Cinp) f32, channels already padded to a multiple of 128."""
    B, H, W, Cinp = x_nhwc.shape
    H2, W2 = H // 2, W // 2
    Cmidp = w1_eff.shape[-1]
    Coutp = w2_eff.shape[-1]

    # Explicit scoped-VMEM budget: 2x in/out blocks (double-buffered), bf16
    # weight slabs (double-buffered), both halo scratches, and the per-chunk
    # im2col / matmul temps.
    vmem_needed = (
        2 * H * W * Cinp * 4
        + 2 * H2 * W2 * Coutp * 4
        + 2 * (w1_eff.size + w2_eff.size) * 2
        + (H2 + 2) * (W2 + 2) * (Cinp + Cmidp) * 4
        + 3 * _PATCH_BUDGET_BYTES
    )
    vmem_limit = int(min(vmem_needed + (4 << 20), 100 << 20))

    return pl.pallas_call(
        _down_fused_kernel,
        out_shape=jax.ShapeDtypeStruct((B, H2, W2, Coutp), x_nhwc.dtype),
        grid=(B,),
        in_specs=[
            pl.BlockSpec((1, H, W, Cinp), lambda b: (b, 0, 0, 0)),
            pl.BlockSpec((9 * Cinp, Cmidp), lambda b: (0, 0)),
            pl.BlockSpec((1, Cmidp), lambda b: (0, 0)),
            pl.BlockSpec((9 * Cmidp, Coutp), lambda b: (0, 0)),
            pl.BlockSpec((1, Coutp), lambda b: (0, 0)),
        ],
        out_specs=pl.BlockSpec((1, H2, W2, Coutp), lambda b: (b, 0, 0, 0)),
        scratch_shapes=[
            pltpu.VMEM((H2 + 2, W2 + 2, Cinp), jnp.float32),
            pltpu.VMEM((H2 + 2, W2 + 2, Cmidp), jnp.float32),
        ],
        compiler_params=pltpu.CompilerParams(
            dimension_semantics=("parallel",),
            vmem_limit_bytes=vmem_limit),
    )(x_nhwc, w1_eff, b1_eff, w2_eff, b2_eff)


# ---------------------------------------------------------------------------
# Parameter setup / forward
# ---------------------------------------------------------------------------
def fold_conv_bn_pad(w_hwio, conv_b, gamma, beta, mean, var, cin_p, cout_p):
    """Fold eval-mode BN into the conv, zero-pad channels to lane multiples,
    reshape to the im2col layout (9*cin_p, cout_p) and cast weights to bf16."""
    cin, cout = w_hwio.shape[2], w_hwio.shape[3]
    scale = gamma / jnp.sqrt(var + BN_EPS)                       # (cout,)
    w_eff = w_hwio * scale                                       # (3,3,cin,cout)
    w_eff = jnp.pad(w_eff, ((0, 0), (0, 0), (0, cin_p - cin), (0, cout_p - cout)))
    w_eff = w_eff.reshape(9 * cin_p, cout_p).astype(jnp.bfloat16)
    b_eff = beta + (conv_b - mean) * scale                       # (cout,)
    b_eff = jnp.pad(b_eff, (0, cout_p - cout)).reshape(1, cout_p).astype(jnp.float32)
    return w_eff, b_eff


def init_params(key, cin, cout):
    ks = jax.random.split(key, 12)
    f32 = jnp.float32
    return dict(
        # conv1: cin -> cout
        w1=jax.random.normal(ks[0], (3, 3, cin, cout), f32) * 0.1,
        b1=jax.random.normal(ks[1], (cout,), f32) * 0.1,
        g1=jax.random.uniform(ks[2], (cout,), f32, 0.5, 1.5),
        beta1=jax.random.normal(ks[3], (cout,), f32) * 0.1,
        m1=jax.random.normal(ks[4], (cout,), f32) * 0.1,
        v1=jax.random.uniform(ks[5], (cout,), f32, 0.5, 1.5),
        # conv2: cout -> cout
        w2=jax.random.normal(ks[6], (3, 3, cout, cout), f32) * 0.1,
        b2=jax.random.normal(ks[7], (cout,), f32) * 0.1,
        g2=jax.random.uniform(ks[8], (cout,), f32, 0.5, 1.5),
        beta2=jax.random.normal(ks[9], (cout,), f32) * 0.1,
        m2=jax.random.normal(ks[10], (cout,), f32) * 0.1,
        v2=jax.random.uniform(ks[11], (cout,), f32, 0.5, 1.5),
    )


def down_forward(x_nchw, p):
    x = jnp.transpose(x_nchw, (0, 2, 3, 1))                  # NCHW -> NHWC
    B, H, W, Cin = x.shape
    Cmid = p["w1"].shape[3]
    Cout = p["w2"].shape[3]
    Cinp = _round_up(Cin, LANE)
    Cmidp = _round_up(Cmid, LANE)
    Coutp = _round_up(Cout, LANE)

    # Zero-pad channels to lane (128) multiples so every kernel block / matmul /
    # store is lane-dense.  (A no-op once real UNet channel counts are >= 128.)
    x = jnp.pad(x, ((0, 0), (0, 0), (0, 0), (0, Cinp - Cin)))
    w1, b1 = fold_conv_bn_pad(p["w1"], p["b1"], p["g1"], p["beta1"],
                              p["m1"], p["v1"], Cinp, Cmidp)
    w2, b2 = fold_conv_bn_pad(p["w2"], p["b2"], p["g2"], p["beta2"],
                              p["m2"], p["v2"], Cmidp, Coutp)

    y = down_fused(x, w1, b1, w2, b2)                         # one fused pallas_call
    y = y[..., :Cout]                                         # drop pad channels
    return jnp.transpose(y, (0, 3, 1, 2))                     # NHWC -> NCHW


# Pure-JAX reference (mirrors PyTorch eval-mode forward) for verification.
def down_reference(x_nchw, p):
    x = jnp.transpose(x_nchw, (0, 2, 3, 1))
    B, H, W, C = x.shape
    x = jnp.max(x.reshape(B, H // 2, 2, W // 2, 2, C), axis=(2, 4))

    def conv_bn_relu(x, w, conv_b, gamma, beta, mean, var):
        y = jax.lax.conv_general_dilated(
            x, w, window_strides=(1, 1), padding="SAME",
            dimension_numbers=("NHWC", "HWIO", "NHWC"))
        scale = gamma / jnp.sqrt(var + BN_EPS)
        return jnp.maximum((y + conv_b - mean) * scale + beta, 0.0)

    x = conv_bn_relu(x, p["w1"], p["b1"], p["g1"], p["beta1"], p["m1"], p["v1"])
    x = conv_bn_relu(x, p["w2"], p["b2"], p["g2"], p["beta2"], p["m2"], p["v2"])
    return jnp.transpose(x, (0, 3, 1, 2))


if __name__ == "__main__":
    B, CIN, COUT, H, W = 2, 4, 8, 16, 16
    key = jax.random.PRNGKey(0)
    k_x, k_p = jax.random.split(key)
    x = jax.random.normal(k_x, (B, CIN, H, W), jnp.float32)   # NCHW like PyTorch
    params = init_params(k_p, CIN, COUT)

    out = jax.block_until_ready(jax.jit(down_forward)(x, params))
    assert out.shape == (B, COUT, H // 2, W // 2), out.shape

    ref = jax.block_until_ready(jax.jit(down_reference)(x, params))
    # bf16 MXU operands (f32 accumulation) -> widened tolerance vs f32 reference.
    max_err = float(jnp.max(jnp.abs(out - ref)))
    assert jnp.allclose(out, ref, atol=7.5e-2, rtol=5e-2), max_err

    print("KERNEL_OK")
</pallas_src>

<mosaic_0001>
module attributes {stable_mosaic.version = 11 : i64} {
  func.func @_down_fused_kernel(%arg0: i32, %arg1: memref<1x16x16x128xf32, #tpu.memory_space<vmem>>, %arg2: memref<1152x128xbf16, #tpu.memory_space<vmem>>, %arg3: memref<1x128xf32, #tpu.memory_space<vmem>>, %arg4: memref<1152x128xbf16, #tpu.memory_space<vmem>>, %arg5: memref<1x128xf32, #tpu.memory_space<vmem>>, %arg6: memref<1x8x8x128xf32, #tpu.memory_space<vmem>>, %arg7: memref<10x10x128xf32, #tpu.memory_space<vmem>>, %arg8: memref<10x10x128xf32, #tpu.memory_space<vmem>>) attributes {dimension_semantics = [#tpu.dimension_semantics<parallel>], iteration_bounds = array<i64: 2>, scalar_prefetch = 0 : i64, scratch_operands = 2 : i64, tpu.core_type = #tpu.core_type<tc>, window_params = [{transform_indices = @transform_0, window_bounds = array<i64: 1, 16, 16, 128>}, {pipeline_mode = #tpu.pipeline_mode<synchronous>, transform_indices = @transform_1, window_bounds = array<i64: 1152, 128>}, {pipeline_mode = #tpu.pipeline_mode<synchronous>, transform_indices = @transform_2, window_bounds = array<i64: 1, 128>}, {pipeline_mode = #tpu.pipeline_mode<synchronous>, transform_indices = @transform_3, window_bounds = array<i64: 1152, 128>}, {pipeline_mode = #tpu.pipeline_mode<synchronous>, transform_indices = @transform_4, window_bounds = array<i64: 1, 128>}, {transform_indices = @transform_5, window_bounds = array<i64: 1, 8, 8, 128>}]} {
    %c0 = arith.constant 0 : index
    %c0_0 = arith.constant 0 : index
    %c0_1 = arith.constant 0 : index
    %c0_2 = arith.constant 0 : index
    %0 = vector.load %arg1[%c0, %c0_0, %c0_1, %c0_2] : memref<1x16x16x128xf32, #tpu.memory_space<vmem>>, vector<1x16x16x128xf32>
    %1 = vector.shape_cast %0 : vector<1x16x16x128xf32> to vector<16x16x128xf32>
    %2 = vector.shape_cast %1 : vector<16x16x128xf32> to vector<8x2x16x128xf32>
    %3 = vector.extract_strided_slice %2 {offsets = [0, 0, 0, 0], sizes = [8, 1, 16, 128], strides = [1, 1, 1, 1]} : vector<8x2x16x128xf32> to vector<8x1x16x128xf32>
    %4 = vector.shape_cast %3 : vector<8x1x16x128xf32> to vector<8x16x128xf32>
    %5 = vector.extract_strided_slice %2 {offsets = [0, 1, 0, 0], sizes = [8, 1, 16, 128], strides = [1, 1, 1, 1]} : vector<8x2x16x128xf32> to vector<8x1x16x128xf32>
    %6 = vector.shape_cast %5 : vector<8x1x16x128xf32> to vector<8x16x128xf32>
    %7 = arith.maximumf %4, %6 : vector<8x16x128xf32>
    %8 = vector.shape_cast %7 : vector<8x16x128xf32> to vector<8x8x2x128xf32>
    %9 = vector.extract_strided_slice %8 {offsets = [0, 0, 0, 0], sizes = [8, 8, 1, 128], strides = [1, 1, 1, 1]} : vector<8x8x2x128xf32> to vector<8x8x1x128xf32>
    %10 = vector.shape_cast %9 : vector<8x8x1x128xf32> to vector<8x8x128xf32>
    %11 = vector.extract_strided_slice %8 {offsets = [0, 0, 1, 0], sizes = [8, 8, 1, 128], strides = [1, 1, 1, 1]} : vector<8x8x2x128xf32> to vector<8x8x1x128xf32>
    %12 = vector.shape_cast %11 : vector<8x8x1x128xf32> to vector<8x8x128xf32>
    %13 = arith.maximumf %10, %12 : vector<8x8x128xf32>
    %cst = arith.constant 0.000000e+00 : f32
    %14 = vector.broadcast %cst : f32 to vector<1x10x128xf32>
    %c0_3 = arith.constant 0 : index
    %c0_4 = arith.constant 0 : index
    %c0_5 = arith.constant 0 : index
    %15 = vector.load %arg7[%c0_3, %c0_4, %c0_5] : memref<10x10x128xf32, #tpu.memory_space<vmem>>, vector<1x10x128xf32>
    tpu.vector_store %arg7[%c0_3, %c0_4, %c0_5], %14 {strides = array<i32>} : memref<10x10x128xf32, #tpu.memory_space<vmem>>, vector<1x10x128xf32>,
    %cst_6 = arith.constant 0.000000e+00 : f32
    %16 = vector.broadcast %cst_6 : f32 to vector<1x10x128xf32>
    %c9 = arith.constant 9 : index
    %c0_7 = arith.constant 0 : index
    %c0_8 = arith.constant 0 : index
    %17 = vector.load %arg7[%c9, %c0_7, %c0_8] : memref<10x10x128xf32, #tpu.memory_space<vmem>>, vector<1x10x128xf32>
    tpu.vector_store %arg7[%c9, %c0_7, %c0_8], %16 {strides = array<i32>} : memref<10x10x128xf32, #tpu.memory_space<vmem>>, vector<1x10x128xf32>,
    %cst_9 = arith.constant 0.000000e+00 : f32
    %18 = vector.broadcast %cst_9 : f32 to vector<10x1x128xf32>
    %c0_10 = arith.constant 0 : index
    %c0_11 = arith.constant 0 : index
    %c0_12 = arith.constant 0 : index
    %19 = vector.load %arg7[%c0_10, %c0_11, %c0_12] : memref<10x10x128xf32, #tpu.memory_space<vmem>>, vector<10x1x128xf32>
    tpu.vector_store %arg7[%c0_10, %c0_11, %c0_12], %18 {strides = array<i32>} : memref<10x10x128xf32, #tpu.memory_space<vmem>>, vector<10x1x128xf32>,
    %cst_13 = arith.constant 0.000000e+00 : f32
    %20 = vector.broadcast %cst_13 : f32 to vector<10x1x128xf32>
    %c0_14 = arith.constant 0 : index
    %c9_15 = arith.constant 9 : index
    %c0_16 = arith.constant 0 : index
    %21 = vector.load %arg7[%c0_14, %c9_15, %c0_16] : memref<10x10x128xf32, #tpu.memory_space<vmem>>, vector<10x1x128xf32>
    tpu.vector_store %arg7[%c0_14, %c9_15, %c0_16], %20 {strides = array<i32>} : memref<10x10x128xf32, #tpu.memory_space<vmem>>, vector<10x1x128xf32>,
    %c1 = arith.constant 1 : index
    %c1_17 = arith.constant 1 : index
    %c0_18 = arith.constant 0 : index
    %22 = vector.load %arg7[%c1, %c1_17, %c0_18] : memref<10x10x128xf32, #tpu.memory_space<vmem>>, vector<8x8x128xf32>
    tpu.vector_store %arg7[%c1, %c1_17, %c0_18], %13 {strides = array<i32>} : memref<10x10x128xf32, #tpu.memory_space<vmem>>, vector<8x8x128xf32>,
    %cst_19 = arith.constant 0.000000e+00 : f32
    %23 = vector.broadcast %cst_19 : f32 to vector<1x10x128xf32>
    %c0_20 = arith.constant 0 : index
    %c0_21 = arith.constant 0 : index
    %c0_22 = arith.constant 0 : index
    %24 = vector.load %arg8[%c0_20, %c0_21, %c0_22] : memref<10x10x128xf32, #tpu.memory_space<vmem>>, vector<1x10x128xf32>
    tpu.vector_store %arg8[%c0_20, %c0_21, %c0_22], %23 {strides = array<i32>} : memref<10x10x128xf32, #tpu.memory_space<vmem>>, vector<1x10x128xf32>,
    %cst_23 = arith.constant 0.000000e+00 : f32
    %25 = vector.broadcast %cst_23 : f32 to vector<1x10x128xf32>
    %c9_24 = arith.constant 9 : index
    %c0_25 = arith.constant 0 : index
    %c0_26 = arith.constant 0 : index
    %26 = vector.load %arg8[%c9_24, %c0_25, %c0_26] : memref<10x10x128xf32, #tpu.memory_space<vmem>>, vector<1x10x128xf32>
    tpu.vector_store %arg8[%c9_24, %c0_25, %c0_26], %25 {strides = array<i32>} : memref<10x10x128xf32, #tpu.memory_space<vmem>>, vector<1x10x128xf32>,
    %cst_27 = arith.constant 0.000000e+00 : f32
    %27 = vector.broadcast %cst_27 : f32 to vector<10x1x128xf32>
    %c0_28 = arith.constant 0 : index
    %c0_29 = arith.constant 0 : index
    %c0_30 = arith.constant 0 : index
    %28 = vector.load %arg8[%c0_28, %c0_29, %c0_30] : memref<10x10x128xf32, #tpu.memory_space<vmem>>, vector<10x1x128xf32>
    tpu.vector_store %arg8[%c0_28, %c0_29, %c0_30], %27 {strides = array<i32>} : memref<10x10x128xf32, #tpu.memory_space<vmem>>, vector<10x1x128xf32>,
    %cst_31 = arith.constant 0.000000e+00 : f32
    %29 = vector.broadcast %cst_31 : f32 to vector<10x1x128xf32>
    %c0_32 = arith.constant 0 : index
    %c9_33 = arith.constant 9 : index
    %c0_34 = arith.constant 0 : index
    %30 = vector.load %arg8[%c0_32, %c9_33, %c0_34] : memref<10x10x128xf32, #tpu.memory_space<vmem>>, vector<10x1x128xf32>
    tpu.vector_store %arg8[%c0_32, %c9_33, %c0_34], %29 {strides = array<i32>} : memref<10x10x128xf32, #tpu.memory_space<vmem>>, vector<10x1x128xf32>,
    %c0_35 = arith.constant 0 : index
    %c0_36 = arith.constant 0 : index
    %31 = vector.load %arg2[%c0_35, %c0_36] : memref<1152x128xbf16, #tpu.memory_space<vmem>>, vector<1152x128xbf16>
    %c0_37 = arith.constant 0 : index
    %c0_38 = arith.constant 0 : index
    %32 = vector.load %arg3[%c0_37, %c0_38] : memref<1x128xf32, #tpu.memory_space<vmem>>, vector<1x128xf32>
    %c0_39 = arith.constant 0 : index
    %c0_40 = arith.constant 0 : index
    %c0_41 = arith.constant 0 : index
    %33 = vector.load %arg7[%c0_39, %c0_40, %c0_41] : memref<10x10x128xf32, #tpu.memory_space<vmem>>, vector<8x8x128xf32>
    %34 = vector.shape_cast %33 : vector<8x8x128xf32> to vector<64x128xf32>
    %35 = arith.truncf %34 : vector<64x128xf32> to vector<64x128xbf16>
    %c0_42 = arith.constant 0 : index
    %c1_43 = arith.constant 1 : index
    %c0_44 = arith.constant 0 : index
    %36 = vector.load %arg7[%c0_42, %c1_43, %c0_44] : memref<10x10x128xf32, #tpu.memory_space<vmem>>, vector<8x8x128xf32>
    %37 = vector.shape_cast %36 : vector<8x8x128xf32> to vector<64x128xf32>
    %38 = arith.truncf %37 : vector<64x128xf32> to vector<64x128xbf16>
    %c0_45 = arith.constant 0 : index
    %c2 = arith.constant 2 : index
    %c0_46 = arith.constant 0 : index
    %39 = vector.load %arg7[%c0_45, %c2, %c0_46] : memref<10x10x128xf32, #tpu.memory_space<vmem>>, vector<8x8x128xf32>
    %40 = vector.shape_cast %39 : vector<8x8x128xf32> to vector<64x128xf32>
    %41 = arith.truncf %40 : vector<64x128xf32> to vector<64x128xbf16>
    %c1_47 = arith.constant 1 : index
    %c0_48 = arith.constant 0 : index
    %c0_49 = arith.constant 0 : index
    %42 = vector.load %arg7[%c1_47, %c0_48, %c0_49] : memref<10x10x128xf32, #tpu.memory_space<vmem>>, vector<8x8x128xf32>
    %43 = vector.shape_cast %42 : vector<8x8x128xf32> to vector<64x128xf32>
    %44 = arith.truncf %43 : vector<64x128xf32> to vector<64x128xbf16>
    %c1_50 = arith.constant 1 : index
    %c1_51 = arith.constant 1 : index
    %c0_52 = arith.constant 0 : index
    %45 = vector.load %arg7[%c1_50, %c1_51, %c0_52] : memref<10x10x128xf32, #tpu.memory_space<vmem>>, vector<8x8x128xf32>
    %46 = vector.shape_cast %45 : vector<8x8x128xf32> to vector<64x128xf32>
    %47 = arith.truncf %46 : vector<64x128xf32> to vector<64x128xbf16>
    %c1_53 = arith.constant 1 : index
    %c2_54 = arith.constant 2 : index
    %c0_55 = arith.constant 0 : index
    %48 = vector.load %arg7[%c1_53, %c2_54, %c0_55] : memref<10x10x128xf32, #tpu.memory_space<vmem>>, vector<8x8x128xf32>
    %49 = vector.shape_cast %48 : vector<8x8x128xf32> to vector<64x128xf32>
    %50 = arith.truncf %49 : vector<64x128xf32> to vector<64x128xbf16>
    %c2_56 = arith.constant 2 : index
    %c0_57 = arith.constant 0 : index
    %c0_58 = arith.constant 0 : index
    %51 = vector.load %arg7[%c2_56, %c0_57, %c0_58] : memref<10x10x128xf32, #tpu.memory_space<vmem>>, vector<8x8x128xf32>
    %52 = vector.shape_cast %51 : vector<8x8x128xf32> to vector<64x128xf32>
    %53 = arith.truncf %52 : vector<64x128xf32> to vector<64x128xbf16>
    %c2_59 = arith.constant 2 : index
    %c1_60 = arith.constant 1 : index
    %c0_61 = arith.constant 0 : index
    %54 = vector.load %arg7[%c2_59, %c1_60, %c0_61] : memref<10x10x128xf32, #tpu.memory_space<vmem>>, vector<8x8x128xf32>
    %55 = vector.shape_cast %54 : vector<8x8x128xf32> to vector<64x128xf32>
    %56 = arith.truncf %55 : vector<64x128xf32> to vector<64x128xbf16>
    %c2_62 = arith.constant 2 : index
    %c2_63 = arith.constant 2 : index
    %c0_64 = arith.constant 0 : index
    %57 = vector.load %arg7[%c2_62, %c2_63, %c0_64] : memref<10x10x128xf32, #tpu.memory_space<vmem>>, vector<8x8x128xf32>
    %58 = vector.shape_cast %57 : vector<8x8x128xf32> to vector<64x128xf32>
    %59 = arith.truncf %58 : vector<64x128xf32> to vector<64x128xbf16>
    %60 = tpu.concatenate %35, %38, %41, %44, %47, %50, %53, %56, %59 in 1 : vector<64x128xbf16>, vector<64x128xbf16>, vector<64x128xbf16>, vector<64x128xbf16>, vector<64x128xbf16>, vector<64x128xbf16>, vector<64x128xbf16>, vector<64x128xbf16>, vector<64x128xbf16> -> vector<64x1152xbf16>
    %cst_65 = arith.constant dense<0.000000e+00> : vector<64x128xf32>
    %61 = tpu.matmul %60, %31, %cst_65 {dimension_numbers = #tpu.dot_dimension_numbers<[1], [0], [0], [1], [0, 0, 1, 1], [], []>} : vector<64x1152xbf16>, vector<1152x128xbf16>, vector<64x128xf32> -> vector<64x128xf32>
    %62 = vector.broadcast %32 : vector<1x128xf32> to vector<64x128xf32>
    %63 = arith.addf %61, %62 : vector<64x128xf32>
    %cst_66 = arith.constant 0.000000e+00 : f32
    %64 = vector.broadcast %cst_66 : f32 to vector<64x128xf32>
    %65 = arith.maximumf %63, %64 : vector<64x128xf32>
    %66 = vector.shape_cast %65 : vector<64x128xf32> to vector<8x8x128xf32>
    %c1_67 = arith.constant 1 : index
    %c1_68 = arith.constant 1 : index
    %c0_69 = arith.constant 0 : index
    %67 = vector.load %arg8[%c1_67, %c1_68, %c0_69] : memref<10x10x128xf32, #tpu.memory_space<vmem>>, vector<8x8x128xf32>
    tpu.vector_store %arg8[%c1_67, %c1_68, %c0_69], %66 {strides = array<i32>} : memref<10x10x128xf32, #tpu.memory_space<vmem>>, vector<8x8x128xf32>,
    %c0_70 = arith.constant 0 : index
    %c0_71 = arith.constant 0 : index
    %68 = vector.load %arg4[%c0_70, %c0_71] : memref<1152x128xbf16, #tpu.memory_space<vmem>>, vector<1152x128xbf16>
    %c0_72 = arith.constant 0 : index
    %c0_73 = arith.constant 0 : index
    %69 = vector.load %arg5[%c0_72, %c0_73] : memref<1x128xf32, #tpu.memory_space<vmem>>, vector<1x128xf32>
    %c0_74 = arith.constant 0 : index
    %c0_75 = arith.constant 0 : index
    %c0_76 = arith.constant 0 : index
    %70 = vector.load %arg8[%c0_74, %c0_75, %c0_76] : memref<10x10x128xf32, #tpu.memory_space<vmem>>, vector<8x8x128xf32>
    %71 = vector.shape_cast %70 : vector<8x8x128xf32> to vector<64x128xf32>
    %72 = arith.truncf %71 : vector<64x128xf32> to vector<64x128xbf16>
    %c0_77 = arith.constant 0 : index
    %c1_78 = arith.constant 1 : index
    %c0_79 = arith.constant 0 : index
    %73 = vector.load %arg8[%c0_77, %c1_78, %c0_79] : memref<10x10x128xf32, #tpu.memory_space<vmem>>, vector<8x8x128xf32>
    %74 = vector.shape_cast %73 : vector<8x8x128xf32> to vector<64x128xf32>
    %75 = arith.truncf %74 : vector<64x128xf32> to vector<64x128xbf16>
    %c0_80 = arith.constant 0 : index
    %c2_81 = arith.constant 2 : index
    %c0_82 = arith.constant 0 : index
    %76 = vector.load %arg8[%c0_80, %c2_81, %c0_82] : memref<10x10x128xf32, #tpu.memory_space<vmem>>, vector<8x8x128xf32>
    %77 = vector.shape_cast %76 : vector<8x8x128xf32> to vector<64x128xf32>
    %78 = arith.truncf %77 : vector<64x128xf32> to vector<64x128xbf16>
    %c1_83 = arith.constant 1 : index
    %c0_84 = arith.constant 0 : index
    %c0_85 = arith.constant 0 : index
    %79 = vector.load %arg8[%c1_83, %c0_84, %c0_85] : memref<10x10x128xf32, #tpu.memory_space<vmem>>, vector<8x8x128xf32>
    %80 = vector.shape_cast %79 : vector<8x8x128xf32> to vector<64x128xf32>
    %81 = arith.truncf %80 : vector<64x128xf32> to vector<64x128xbf16>
    %c1_86 = arith.constant 1 : index
    %c1_87 = arith.constant 1 : index
    %c0_88 = arith.constant 0 : index
    %82 = vector.load %arg8[%c1_86, %c1_87, %c0_88] : memref<10x10x128xf32, #tpu.memory_space<vmem>>, vector<8x8x128xf32>
    %83 = vector.shape_cast %82 : vector<8x8x128xf32> to vector<64x128xf32>
    %84 = arith.truncf %83 : vector<64x128xf32> to vector<64x128xbf16>
    %c1_89 = arith.constant 1 : index
    %c2_90 = arith.constant 2 : index
    %c0_91 = arith.constant 0 : index
    %85 = vector.load %arg8[%c1_89, %c2_90, %c0_91] : memref<10x10x128xf32, #tpu.memory_space<vmem>>, vector<8x8x128xf32>
    %86 = vector.shape_cast %85 : vector<8x8x128xf32> to vector<64x128xf32>
    %87 = arith.truncf %86 : vector<64x128xf32> to vector<64x128xbf16>
    %c2_92 = arith.constant 2 : index
    %c0_93 = arith.constant 0 : index
    %c0_94 = arith.constant 0 : index
    %88 = vector.load %arg8[%c2_92, %c0_93, %c0_94] : memref<10x10x128xf32, #tpu.memory_space<vmem>>, vector<8x8x128xf32>
    %89 = vector.shape_cast %88 : vector<8x8x128xf32> to vector<64x128xf32>
    %90 = arith.truncf %89 : vector<64x128xf32> to vector<64x128xbf16>
    %c2_95 = arith.constant 2 : index
    %c1_96 = arith.constant 1 : index
    %c0_97 = arith.constant 0 : index
    %91 = vector.load %arg8[%c2_95, %c1_96, %c0_97] : memref<10x10x128xf32, #tpu.memory_space<vmem>>, vector<8x8x128xf32>
    %92 = vector.shape_cast %91 : vector<8x8x128xf32> to vector<64x128xf32>
    %93 = arith.truncf %92 : vector<64x128xf32> to vector<64x128xbf16>
    %c2_98 = arith.constant 2 : index
    %c2_99 = arith.constant 2 : index
    %c0_100 = arith.constant 0 : index
    %94 = vector.load %arg8[%c2_98, %c2_99, %c0_100] : memref<10x10x128xf32, #tpu.memory_space<vmem>>, vector<8x8x128xf32>
    %95 = vector.shape_cast %94 : vector<8x8x128xf32> to vector<64x128xf32>
    %96 = arith.truncf %95 : vector<64x128xf32> to vector<64x128xbf16>
    %97 = tpu.concatenate %72, %75, %78, %81, %84, %87, %90, %93, %96 in 1 : vector<64x128xbf16>, vector<64x128xbf16>, vector<64x128xbf16>, vector<64x128xbf16>, vector<64x128xbf16>, vector<64x128xbf16>, vector<64x128xbf16>, vector<64x128xbf16>, vector<64x128xbf16> -> vector<64x1152xbf16>
    %cst_101 = arith.constant dense<0.000000e+00> : vector<64x128xf32>
    %98 = tpu.matmul %97, %68, %cst_101 {dimension_numbers = #tpu.dot_dimension_numbers<[1], [0], [0], [1], [0, 0, 1, 1], [], []>} : vector<64x1152xbf16>, vector<1152x128xbf16>, vector<64x128xf32> -> vector<64x128xf32>
    %99 = vector.broadcast %69 : vector<1x128xf32> to vector<64x128xf32>
    %100 = arith.addf %98, %99 : vector<64x128xf32>
    %cst_102 = arith.constant 0.000000e+00 : f32
    %101 = vector.broadcast %cst_102 : f32 to vector<64x128xf32>
    %102 = arith.maximumf %100, %101 : vector<64x128xf32>
    %103 = vector.shape_cast %102 : vector<64x128xf32> to vector<1x8x8x128xf32>
    %c0_103 = arith.constant 0 : index
    %c0_104 = arith.constant 0 : index
    %c0_105 = arith.constant 0 : index
    %c0_106 = arith.constant 0 : index
    %104 = vector.load %arg6[%c0_103, %c0_104, %c0_105, %c0_106] : memref<1x8x8x128xf32, #tpu.memory_space<vmem>>, vector<1x8x8x128xf32>
    tpu.vector_store %arg6[%c0_103, %c0_104, %c0_105, %c0_106], %103 {strides = array<i32>} : memref<1x8x8x128xf32, #tpu.memory_space<vmem>>, vector<1x8x8x128xf32>,
    return
  }
  func.func @transform_0(%arg0: i32) -> (i32, i32, i32, i32) {
    %c0_i32 = arith.constant 0 : i32
    %c0_i32_0 = arith.constant 0 : i32
    %c0_i32_1 = arith.constant 0 : i32
    %c0_i32_2 = arith.constant 0 : i32
    return %arg0, %c0_i32, %c0_i32_0, %c0_i32_1 : i32, i32, i32, i32
  }
  func.func @transform_1(%arg0: i32) -> (i32, i32) {
    %c0_i32 = arith.constant 0 : i32
    %c0_i32_0 = arith.constant 0 : i32
    %c0_i32_1 = arith.constant 0 : i32
    return %c0_i32, %c0_i32_0 : i32, i32
  }
  func.func @transform_2(%arg0: i32) -> (i32, i32) {
    %c0_i32 = arith.constant 0 : i32
    %c0_i32_0 = arith.constant 0 : i32
    %c0_i32_1 = arith.constant 0 : i32
    return %c0_i32, %c0_i32_0 : i32, i32
  }
  func.func @transform_3(%arg0: i32) -> (i32, i32) {
    %c0_i32 = arith.constant 0 : i32
    %c0_i32_0 = arith.constant 0 : i32
    %c0_i32_1 = arith.constant 0 : i32
    return %c0_i32, %c0_i32_0 : i32, i32
  }
  func.func @transform_4(%arg0: i32) -> (i32, i32) {
    %c0_i32 = arith.constant 0 : i32
    %c0_i32_0 = arith.constant 0 : i32
    %c0_i32_1 = arith.constant 0 : i32
    return %c0_i32, %c0_i32_0 : i32, i32
  }
  func.func @transform_5(%arg0: i32) -> (i32, i32, i32, i32) {
    %c0_i32 = arith.constant 0 : i32
    %c0_i32_0 = arith.constant 0 : i32
    %c0_i32_1 = arith.constant 0 : i32
    %c0_i32_2 = arith.constant 0 : i32
    return %arg0, %c0_i32, %c0_i32_0, %c0_i32_1 : i32, i32, i32, i32
  }
}

</mosaic_0001>

<llo_original>
// kernel: down_forward.1
$region0: #{down_forward.1}
  #allocation0 [shape = 'u32[]', space=smem, size = 0x4, offset = 0x4, fixed_abs, tag = 'smem constant byte address 0x4 - core index']
  #allocation1 [shape = 'u32[144,128]{1,0:T(1,128)}', space=vmem, size = 0x12000, scoped, tag = 'internal scratch']
  #allocation2 [shape = 'f32[10,10,128]{2,1,0:T(8,128)}', space=vmem, size = 0x14000, scoped, tag = 'scratch operand']
  #allocation3 [shape = 'f32[10,10,128]{2,1,0:T(8,128)}', space=vmem, size = 0x14000, scoped, tag = 'scratch operand']
  %s0 = inlined_call_operand.vmem [shape: f32[2,16,16,128], index: 0, kind: input, shape index: {}]
  %s1 = inlined_call_operand.vmem [shape: bf16[1152,128], index: 1, kind: input, shape index: {}]
  %s2 = inlined_call_operand.vmem [shape: f32[1,128], index: 2, kind: input, shape index: {}]
  %s3 = inlined_call_operand.vmem [shape: bf16[1152,128], index: 3, kind: input, shape index: {}]
  %s4 = inlined_call_operand.vmem [shape: f32[1,128], index: 4, kind: input, shape index: {}]
  %s5 = inlined_call_operand.vmem [shape: f32[2,8,8,128], index: 5, kind: output, shape index: {}]
  %s6 = sld [smem:[#allocation0]]
  $region53: #{down_forward.1} parent=0
    _
  %s8 = ssub.s32 1, %s6
  %s9 = scalar_select 0, %s8, %s6
  loop: start=0, step=1, limit=4
  $region2: #{down_forward.1} parent=0 // loop_pre_header
    _
  $region3: #{down_forward.1} parent=0 // loop_header
    %s11 = sphi 0, %s15
    %p12 = scmp.ge.s32.totalorder %s11, 4
    %s21 = sphi 0, %s23
    %s24 = sphi 0, %s21
    %s25 = sphi 0, %s24
    %s41 = sphi 0, %s25
    %s45 = sphi 0, %s45
    %s47 = sphi 0, %s45
    %s48 = sphi 0, %s47
    %s62 = sphi 0, %s48
    %s66 = sphi 0, %s66
    %s68 = sphi 0, %s66
    %s69 = sphi 0, %s68
    %s83 = sphi 0, %s69
    %s87 = sphi 0, %s87
    %s89 = sphi 0, %s87
    %s90 = sphi 0, %s89
    %s104 = sphi 0, %s90
    %s108 = sphi 0, %s108
    %s110 = sphi 0, %s108
    %s111 = sphi 0, %s110
    %s125 = sphi 0, %s111
    %s131 = sphi 0, %s133
    %s134 = sphi 0, %s131
    %s135 = sphi 0, %s134
    %s151 = sphi 0, %s135
  $region4: #{down_forward.1} parent=0 // loop_header_branch
    %14 = sbr.rel (%p12) target = $region8
  $region5: #{down_forward.1} parent=0 // loop_body
    %s16 = ssub.s32 %s11, 1
    %s17 = ssub.s32 %s11, 2
    %s18 = sadd.s32 %s11, 1
    %s19 = ssub.s32 %s11, %s18
    %p20 = scmp.eq.s32.totalorder %s19, 0
    %s22 = sadd.s32 %s21, 1
    %s23 = scalar_select %p20, %s21, %s22
    %p26 = pneg %p20
    %p27 = scmp.eq.s32.totalorder %s11, 1
    %p28 = por %p26, %p27
    %p29 = scmp.ne.s32.totalorder %s21, %s24
    %p30 = scmp.eq.s32.totalorder %s11, 0
    %p31 = por %p29, %p30
    %p32 = scmp.ne.s32.totalorder %s21, %s24
    %p33 = scmp.eq.s32.totalorder %s16, 1
    %p34 = por %p32, %p33
    %p35 = scmp.ne.s32.totalorder %s24, %s25
    %p36 = scmp.eq.s32.totalorder %s16, 0
    %p37 = por %p35, %p36
    %p38 = scmp.ne.s32.totalorder %s24, %s25
    %p39 = scmp.eq.s32.totalorder %s17, 1
    %p40 = por %p38, %p39
    %p42 = scmp.ne.s32.totalorder %s25, %s41
    %p43 = scmp.eq.s32.totalorder %s17, 0
    %p44 = por %p42, %p43
    %s46 = sadd.s32 %s45, 1
    %p49 = scmp.eq.s32.totalorder %s11, 1
    %p50 = scmp.ne.s32.totalorder %s45, %s47
    %p51 = scmp.eq.s32.totalorder %s11, 0
    %p52 = por %p50, %p51
    %p53 = scmp.ne.s32.totalorder %s45, %s47
    %p54 = scmp.eq.s32.totalorder %s16, 1
    %p55 = por %p53, %p54
    %p56 = scmp.ne.s32.totalorder %s47, %s48
    %p57 = scmp.eq.s32.totalorder %s16, 0
    %p58 = por %p56, %p57
    %p59 = scmp.ne.s32.totalorder %s47, %s48
    %p60 = scmp.eq.s32.totalorder %s17, 1
    %p61 = por %p59, %p60
    %p63 = scmp.ne.s32.totalorder %s48, %s62
    %p64 = scmp.eq.s32.totalorder %s17, 0
    %p65 = por %p63, %p64
    %s67 = sadd.s32 %s66, 1
    %p70 = scmp.eq.s32.totalorder %s11, 1
    %p71 = scmp.ne.s32.totalorder %s66, %s68
    %p72 = scmp.eq.s32.totalorder %s11, 0
    %p73 = por %p71, %p72
    %p74 = scmp.ne.s32.totalorder %s66, %s68
    %p75 = scmp.eq.s32.totalorder %s16, 1
    %p76 = por %p74, %p75
    %p77 = scmp.ne.s32.totalorder %s68, %s69
    %p78 = scmp.eq.s32.totalorder %s16, 0
    %p79 = por %p77, %p78
    %p80 = scmp.ne.s32.totalorder %s68, %s69
    %p81 = scmp.eq.s32.totalorder %s17, 1
    %p82 = por %p80, %p81
    %p84 = scmp.ne.s32.totalorder %s69, %s83
    %p85 = scmp.eq.s32.totalorder %s17, 0
    %p86 = por %p84, %p85
    %s88 = sadd.s32 %s87, 1
    %p91 = scmp.eq.s32.totalorder %s11, 1
    %p92 = scmp.ne.s32.totalorder %s87, %s89
    %p93 = scmp.eq.s32.totalorder %s11, 0
    %p94 = por %p92, %p93
    %p95 = scmp.ne.s32.totalorder %s87, %s89
    %p96 = scmp.eq.s32.totalorder %s16, 1
    %p97 = por %p95, %p96
    %p98 = scmp.ne.s32.totalorder %s89, %s90
    %p99 = scmp.eq.s32.totalorder %s16, 0
    %p100 = por %p98, %p99
    %p101 = scmp.ne.s32.totalorder %s89, %s90
    %p102 = scmp.eq.s32.totalorder %s17, 1
    %p103 = por %p101, %p102
    %p105 = scmp.ne.s32.totalorder %s90, %s104
    %p106 = scmp.eq.s32.totalorder %s17, 0
    %p107 = por %p105, %p106
    %s109 = sadd.s32 %s108, 1
    %p112 = scmp.eq.s32.totalorder %s11, 1
    %p113 = scmp.ne.s32.totalorder %s108, %s110
    %p114 = scmp.eq.s32.totalorder %s11, 0
    %p115 = por %p113, %p114
    %p116 = scmp.ne.s32.totalorder %s108, %s110
    %p117 = scmp.eq.s32.totalorder %s16, 1
    %p118 = por %p116, %p117
    %p119 = scmp.ne.s32.totalorder %s110, %s111
    %p120 = scmp.eq.s32.totalorder %s16, 0
    %p121 = por %p119, %p120
    %p122 = scmp.ne.s32.totalorder %s110, %s111
    %p123 = scmp.eq.s32.totalorder %s17, 1
    %p124 = por %p122, %p123
    %p126 = scmp.ne.s32.totalorder %s111, %s125
    %p127 = scmp.eq.s32.totalorder %s17, 0
    %p128 = por %p126, %p127
    %s129 = ssub.s32 %s11, %s18
    %p130 = scmp.eq.s32.totalorder %s129, 0
    %s132 = sadd.s32 %s131, 1
    %s133 = scalar_select %p130, %s131, %s132
    %p136 = pneg %p130
    %p137 = scmp.eq.s32.totalorder %s11, 1
    %p138 = por %p136, %p137
    %p139 = scmp.ne.s32.totalorder %s131, %s134
    %p140 = scmp.eq.s32.totalorder %s11, 0
    %p141 = por %p139, %p140
    %p142 = scmp.ne.s32.totalorder %s131, %s134
    %p143 = scmp.eq.s32.totalorder %s16, 1
    %p144 = por %p142, %p143
    %p145 = scmp.ne.s32.totalorder %s134, %s135
    %p146 = scmp.eq.s32.totalorder %s16, 0
    %p147 = por %p145, %p146
    %p148 = scmp.ne.s32.totalorder %s134, %s135
    %p149 = scmp.eq.s32.totalorder %s17, 1
    %p150 = por %p148, %p149
    %p152 = scmp.ne.s32.totalorder %s135, %s151
    %p153 = scmp.eq.s32.totalorder %s17, 0
    %p154 = por %p152, %p153
    %p155 = scmp.le.s32.totalorder 1, %s11
    %p156 = scmp.lt.s32.totalorder %s11, 3
    %p157 = pnand %p155, %p156
    %p158 = pneg %p157
    // Predicated region
    $region9: #{down_forward.1} parent=5 // pred_check
      _
    $region10: #{down_forward.1} parent=5 // pred_check_branch
      %160 = sbr.rel (%p157) target = $region12
    $region11: #{down_forward.1} parent=5 // pred_region
      %s161 = ssub.s32 %s11, 1
      // Predicated region
      $region13: #{down_forward.1} parent=11 // pred_check
        %p162 = pneg %p58
      $region14: #{down_forward.1} parent=11 // pred_check_branch
        %164 = sbr.rel (%p162) target = $region16
      $region15: #{down_forward.1} parent=11 // pred_region
        _
      $region16: #{down_forward.1} parent=11 // pred_fallthru
        _
      // Predicated region
      $region17: #{down_forward.1} parent=11 // pred_check
        %p165 = pneg %p79
      $region18: #{down_forward.1} parent=11 // pred_check_branch
        %167 = sbr.rel (%p165) target = $region20
      $region19: #{down_forward.1} parent=11 // pred_region
        _
      $region20: #{down_forward.1} parent=11 // pred_fallthru
        _
      // Predicated region
      $region21: #{down_forward.1} parent=11 // pred_check
        %p168 = pneg %p100
      $region22: #{down_forward.1} parent=11 // pred_check_branch
        %170 = sbr.rel (%p168) target = $region24
      $region23: #{down_forward.1} parent=11 // pred_region
        _
      $region24: #{down_forward.1} parent=11 // pred_fallthru
        _
      // Predicated region
      $region25: #{down_forward.1} parent=11 // pred_check
        %p171 = pneg %p121
      $region26: #{down_forward.1} parent=11 // pred_check_branch
        %173 = sbr.rel (%p171) target = $region28
      $region27: #{down_forward.1} parent=11 // pred_region
        _
      $region28: #{down_forward.1} parent=11 // pred_fallthru
        _
    $region12: #{down_forward.1} parent=5 // pred_fallthru
      _
    %p174 = scmp.lt.s32.totalorder %s11, 2
    // Predicated region
    $region29: #{down_forward.1} parent=5 // pred_check
      %p175 = pneg %p174
    $region30: #{down_forward.1} parent=5 // pred_check_branch
      %177 = sbr.rel (%p175) target = $region32
    $region31: #{down_forward.1} parent=5 // pred_region
      // Predicated region
      $region33: #{down_forward.1} parent=31 // pred_check
        %p178 = pneg %p31
      $region34: #{down_forward.1} parent=31 // pred_check_branch
        %180 = sbr.rel (%p178) target = $region36
      $region35: #{down_forward.1} parent=31 // pred_region
        %p181 = scmp.lt.s32.totalorder %s11, 1
        %s182 = scalar_select %p181, %s11, 1
        %s183 = smul.addr %s182, 32
        %s184 = smul.addr %s183, 8
        %s185 = scalar_lea.vmem %s0, %s184
      $region36: #{down_forward.1} parent=31 // pred_fallthru
        _
    $region32: #{down_forward.1} parent=5 // pred_fallthru
      _
    %p186 = scmp.le.s32.totalorder 1, %s11
    %p187 = scmp.lt.s32.totalorder %s11, 3
    %p188 = pnand %p186, %p187
    %p189 = pneg %p188
    // Predicated region
    $region37: #{down_forward.1} parent=5 // pred_check
      _
    $region38: #{down_forward.1} parent=5 // pred_check_branch
      %191 = sbr.rel (%p188) target = $region40
    $region39: #{down_forward.1} parent=5 // pred_region
      %s192 = ssub.s32 %s11, 1
      %p193 = scmp.lt.s32.totalorder %s16, 1
      %s194 = scalar_select %p193, %s16, 1
      %s195 = smul.addr %s194, 32
      %s196 = smul.addr %s195, 8
      %s197 = scalar_lea.vmem %s0, %s196
      %p198 = pneg %p37
      %p199 = pneg %p34
      %p200 = pneg %p58
      %p201 = pneg %p55
      %p202 = pneg %p79
      %p203 = pneg %p76
      %p204 = pneg %p100
      %p205 = pneg %p97
      %p206 = pneg %p121
      %p207 = pneg %p118
      %p208 = pneg %p147
      %p209 = pneg %p144
      %p210 = scmp.lt.s32.totalorder %s16, 1
      %s211 = scalar_select %p210, %s16, 1
      %s212 = smul.addr %s211, 8
      %s213 = smul.addr %s212, 8
      %s214 = scalar_lea.vmem %s5, %s213
      %p215 = scmp.lt.s32.totalorder %s16, 1
      %s216 = scalar_select %p215, %s16, 1
      %s217 = smul.addr %s216, 32
      %s218 = smul.addr %s217, 8
      %s219 = scalar_lea.vmem %s0, %s218
      %p220 = scmp.lt.s32.totalorder %s16, 1
      %s221 = scalar_select %p220, %s16, 1
      %s222 = smul.addr %s221, 8
      %s223 = smul.addr %s222, 8
      %s224 = scalar_lea.vmem %s5, %s223
      %v226 = vld [vmem:[%s219] sm:$0xff]
      %v227 = vld [vmem:[%s219 + $0x8] sm:$0xff]
      %v228 = vld [vmem:[%s219 + $0x10] sm:$0xff]
      %v229 = vld [vmem:[%s219 + $0x18] sm:$0xff]
      %v230 = vld [vmem:[%s219 + $0x20] sm:$0xff]
      %v231 = vld [vmem:[%s219 + $0x28] sm:$0xff]
      %v232 = vld [vmem:[%s219 + $0x30] sm:$0xff]
      %v233 = vld [vmem:[%s219 + $0x38] sm:$0xff]
      %v234 = vld [vmem:[%s219 + $0x40] sm:$0xff]
      %v235 = vld [vmem:[%s219 + $0x48] sm:$0xff]
      %v236 = vld [vmem:[%s219 + $0x50] sm:$0xff]
      %v237 = vld [vmem:[%s219 + $0x58] sm:$0xff]
      %v238 = vld [vmem:[%s219 + $0x60] sm:$0xff]
      %v239 = vld [vmem:[%s219 + $0x68] sm:$0xff]
      %v240 = vld [vmem:[%s219 + $0x70] sm:$0xff]
      %v241 = vld [vmem:[%s219 + $0x78] sm:$0xff]
      %v242 = vld [vmem:[%s219 + $0x80] sm:$0xff]
      %v243 = vld [vmem:[%s219 + $0x88] sm:$0xff]
      %v244 = vld [vmem:[%s219 + $0x90] sm:$0xff]
      %v245 = vld [vmem:[%s219 + $0x98] sm:$0xff]
      %v246 = vld [vmem:[%s219 + $0xa0] sm:$0xff]
      %v247 = vld [vmem:[%s219 + $0xa8] sm:$0xff]
      %v248 = vld [vmem:[%s219 + $0xb0] sm:$0xff]
      %v249 = vld [vmem:[%s219 + $0xb8] sm:$0xff]
      %v250 = vld [vmem:[%s219 + $0xc0] sm:$0xff]
      %v251 = vld [vmem:[%s219 + $0xc8] sm:$0xff]
      %v252 = vld [vmem:[%s219 + $0xd0] sm:$0xff]
      %v253 = vld [vmem:[%s219 + $0xd8] sm:$0xff]
      %v254 = vld [vmem:[%s219 + $0xe0] sm:$0xff]
      %v255 = vld [vmem:[%s219 + $0xe8] sm:$0xff]
      %v256 = vld [vmem:[%s219 + $0xf0] sm:$0xff]
      %v257 = vld [vmem:[%s219 + $0xf8] sm:$0xff]
      %v258 = vmax.f32 %v226, %v228
      %v259 = vmax.f32 %v227, %v229
      %v260 = vmax.f32 %v230, %v232
      %v261 = vmax.f32 %v231, %v233
      %v262 = vmax.f32 %v234, %v236
      %v263 = vmax.f32 %v235, %v237
      %v264 = vmax.f32 %v238, %v240
      %v265 = vmax.f32 %v239, %v241
      %v266 = vmax.f32 %v242, %v244
      %v267 = vmax.f32 %v243, %v245
      %v268 = vmax.f32 %v246, %v248
      %v269 = vmax.f32 %v247, %v249
      %v270 = vmax.f32 %v250, %v252
      %v271 = vmax.f32 %v251, %v253
      %v272 = vmax.f32 %v254, %v256
      %v273 = vmax.f32 %v255, %v257
      %v290 = vcombine.high %v258, %v258
      %v292 = vunpack.c.l.s4 1983009808
      %v293 = vunpack.c.0.s8 %v292
      %v294 = vlaneseq
      %v295 = vshrl.u32 %v294, 7
      %v296 = vsub.s32 %v293, %v295
      %v297 = vrot.slane %v258, %v296
      %v299 = vunpack.c.l.s4 1983009808
      %v300 = vunpack.c.0.s8 %v299
      %v301 = vlaneseq
      %v302 = vshrl.u32 %v301, 7
      %v303 = vsub.s32 %v300, %v302
      %v304 = vrot.slane %v290, %v303
      %v305 = vcombine.high %v297, %v297
      %v306 = vcombine.high %v304, %v304
      %v307 = vcombine.high %v259, %v259
      %v309 = vunpack.c.l.s4 1983009808
      %v310 = vunpack.c.0.s8 %v309
      %v311 = vlaneseq
      %v312 = vshrl.u32 %v311, 7
      %v313 = vsub.s32 %v310, %v312
      %v314 = vrot.slane %v259, %v313
      %v316 = vunpack.c.l.s4 1983009808
      %v317 = vunpack.c.0.s8 %v316
      %v318 = vlaneseq
      %v319 = vshrl.u32 %v318, 7
      %v320 = vsub.s32 %v317, %v319
      %v321 = vrot.slane %v307, %v320
      %v322 = vcombine.high %v314, %v314
      %v323 = vcombine.high %v321, %v321
      %v324 = vcombine.high %v260, %v260
      %v326 = vunpack.c.l.s4 1983009808
      %v327 = vunpack.c.0.s8 %v326
      %v328 = vlaneseq
      %v329 = vshrl.u32 %v328, 7
      %v330 = vsub.s32 %v327, %v329
      %v331 = vrot.slane %v260, %v330
      %v333 = vunpack.c.l.s4 1983009808
      %v334 = vunpack.c.0.s8 %v333
      %v335 = vlaneseq
      %v336 = vshrl.u32 %v335, 7
      %v337 = vsub.s32 %v334, %v336
      %v338 = vrot.slane %v324, %v337
      %v339 = vcombine.high %v331, %v331
      %v340 = vcombine.high %v338, %v338
      %v341 = vcombine.high %v261, %v261
      %v343 = vunpack.c.l.s4 1983009808
      %v344 = vunpack.c.0.s8 %v343
      %v345 = vlaneseq
      %v346 = vshrl.u32 %v345, 7
      %v347 = vsub.s32 %v344, %v346
      %v348 = vrot.slane %v261, %v347
      %v350 = vunpack.c.l.s4 1983009808
      %v351 = vunpack.c.0.s8 %v350
      %v352 = vlaneseq
      %v353 = vshrl.u32 %v352, 7
      %v354 = vsub.s32 %v351, %v353
      %v355 = vrot.slane %v341, %v354
      %v356 = vcombine.high %v348, %v348
      %v357 = vcombine.high %v355, %v355
      %v358 = vcombine.high %v262, %v262
      %v360 = vunpack.c.l.s4 1983009808
      %v361 = vunpack.c.0.s8 %v360
      %v362 = vlaneseq
      %v363 = vshrl.u32 %v362, 7
      %v364 = vsub.s32 %v361, %v363
      %v365 = vrot.slane %v262, %v364
      %v367 = vunpack.c.l.s4 1983009808
      %v368 = vunpack.c.0.s8 %v367
      %v369 = vlaneseq
      %v370 = vshrl.u32 %v369, 7
      %v371 = vsub.s32 %v368, %v370
      %v372 = vrot.slane %v358, %v371
      %v373 = vcombine.high %v365, %v365
      %v374 = vcombine.high %v372, %v372
      %v375 = vcombine.high %v263, %v263
      %v377 = vunpack.c.l.s4 1983009808
      %v378 = vunpack.c.0.s8 %v377
      %v379 = vlaneseq
      %v380 = vshrl.u32 %v379, 7
      %v381 = vsub.s32 %v378, %v380
      %v382 = vrot.slane %v263, %v381
      %v384 = vunpack.c.l.s4 1983009808
      %v385 = vunpack.c.0.s8 %v384
      %v386 = vlaneseq
      %v387 = vshrl.u32 %v386, 7
      %v388 = vsub.s32 %v385, %v387
      %v389 = vrot.slane %v375, %v388
      %v390 = vcombine.high %v382, %v382
      %v391 = vcombine.high %v389, %v389
      %v392 = vcombine.high %v264, %v264
      %v394 = vunpack.c.l.s4 1983009808
      %v395 = vunpack.c.0.s8 %v394
      %v396 = vlaneseq
      %v397 = vshrl.u32 %v396, 7
      %v398 = vsub.s32 %v395, %v397
      %v399 = vrot.slane %v264, %v398
      %v401 = vunpack.c.l.s4 1983009808
      %v402 = vunpack.c.0.s8 %v401
      %v403 = vlaneseq
      %v404 = vshrl.u32 %v403, 7
      %v405 = vsub.s32 %v402, %v404
      %v406 = vrot.slane %v392, %v405
      %v407 = vcombine.high %v399, %v399
      %v408 = vcombine.high %v406, %v406
      %v409 = vcombine.high %v265, %v265
      %v411 = vunpack.c.l.s4 1983009808
      %v412 = vunpack.c.0.s8 %v411
      %v413 = vlaneseq
      %v414 = vshrl.u32 %v413, 7
      %v415 = vsub.s32 %v412, %v414
      %v416 = vrot.slane %v265, %v415
      %v418 = vunpack.c.l.s4 1983009808
      %v419 = vunpack.c.0.s8 %v418
      %v420 = vlaneseq
      %v421 = vshrl.u32 %v420, 7
      %v422 = vsub.s32 %v419, %v421
      %v423 = vrot.slane %v409, %v422
      %v424 = vcombine.high %v416, %v416
      %v425 = vcombine.high %v423, %v423
      %v426 = vcombine.high %v266, %v266
      %v428 = vunpack.c.l.s4 1983009808
      %v429 = vunpack.c.0.s8 %v428
      %v430 = vlaneseq
      %v431 = vshrl.u32 %v430, 7
      %v432 = vsub.s32 %v429, %v431
      %v433 = vrot.slane %v266, %v432
      %v435 = vunpack.c.l.s4 1983009808
      %v436 = vunpack.c.0.s8 %v435
      %v437 = vlaneseq
      %v438 = vshrl.u32 %v437, 7
      %v439 = vsub.s32 %v436, %v438
      %v440 = vrot.slane %v426, %v439
      %v441 = vcombine.high %v433, %v433
      %v442 = vcombine.high %v440, %v440
      %v443 = vcombine.high %v267, %v267
      %v445 = vunpack.c.l.s4 1983009808
      %v446 = vunpack.c.0.s8 %v445
      %v447 = vlaneseq
      %v448 = vshrl.u32 %v447, 7
      %v449 = vsub.s32 %v446, %v448
      %v450 = vrot.slane %v267, %v449
      %v452 = vunpack.c.l.s4 1983009808
      %v453 = vunpack.c.0.s8 %v452
      %v454 = vlaneseq
      %v455 = vshrl.u32 %v454, 7
      %v456 = vsub.s32 %v453, %v455
      %v457 = vrot.slane %v443, %v456
      %v458 = vcombine.high %v450, %v450
      %v459 = vcombine.high %v457, %v457
      %v460 = vcombine.high %v268, %v268
      %v462 = vunpack.c.l.s4 1983009808
      %v463 = vunpack.c.0.s8 %v462
      %v464 = vlaneseq
      %v465 = vshrl.u32 %v464, 7
      %v466 = vsub.s32 %v463, %v465
      %v467 = vrot.slane %v268, %v466
      %v469 = vunpack.c.l.s4 1983009808
      %v470 = vunpack.c.0.s8 %v469
      %v471 = vlaneseq
      %v472 = vshrl.u32 %v471, 7
      %v473 = vsub.s32 %v470, %v472
      %v474 = vrot.slane %v460, %v473
      %v475 = vcombine.high %v467, %v467
      %v476 = vcombine.high %v474, %v474
      %v477 = vcombine.high %v269, %v269
      %v479 = vunpack.c.l.s4 1983009808
      %v480 = vunpack.c.0.s8 %v479
      %v481 = vlaneseq
      %v482 = vshrl.u32 %v481, 7
      %v483 = vsub.s32 %v480, %v482
      %v484 = vrot.slane %v269, %v483
      %v486 = vunpack.c.l.s4 1983009808
      %v487 = vunpack.c.0.s8 %v486
      %v488 = vlaneseq
      %v489 = vshrl.u32 %v488, 7
      %v490 = vsub.s32 %v487, %v489
      %v491 = vrot.slane %v477, %v490
      %v492 = vcombine.high %v484, %v484
      %v493 = vcombine.high %v491, %v491
      %v494 = vcombine.high %v270, %v270
      %v496 = vunpack.c.l.s4 1983009808
      %v497 = vunpack.c.0.s8 %v496
      %v498 = vlaneseq
      %v499 = vshrl.u32 %v498, 7
      %v500 = vsub.s32 %v497, %v499
      %v501 = vrot.slane %v270, %v500
      %v503 = vunpack.c.l.s4 1983009808
      %v504 = vunpack.c.0.s8 %v503
      %v505 = vlaneseq
      %v506 = vshrl.u32 %v505, 7
      %v507 = vsub.s32 %v504, %v506
      %v508 = vrot.slane %v494, %v507
      %v509 = vcombine.high %v501, %v501
      %v510 = vcombine.high %v508, %v508
      %v511 = vcombine.high %v271, %v271
      %v513 = vunpack.c.l.s4 1983009808
      %v514 = vunpack.c.0.s8 %v513
      %v515 = vlaneseq
      %v516 = vshrl.u32 %v515, 7
      %v517 = vsub.s32 %v514, %v516
      %v518 = vrot.slane %v271, %v517
      %v520 = vunpack.c.l.s4 1983009808
      %v521 = vunpack.c.0.s8 %v520
      %v522 = vlaneseq
      %v523 = vshrl.u32 %v522, 7
      %v524 = vsub.s32 %v521, %v523
      %v525 = vrot.slane %v511, %v524
      %v526 = vcombine.high %v518, %v518
      %v527 = vcombine.high %v525, %v525
      %v528 = vcombine.high %v272, %v272
      %v530 = vunpack.c.l.s4 1983009808
      %v531 = vunpack.c.0.s8 %v530
      %v532 = vlaneseq
      %v533 = vshrl.u32 %v532, 7
      %v534 = vsub.s32 %v531, %v533
      %v535 = vrot.slane %v272, %v534
      %v537 = vunpack.c.l.s4 1983009808
      %v538 = vunpack.c.0.s8 %v537
      %v539 = vlaneseq
      %v540 = vshrl.u32 %v539, 7
      %v541 = vsub.s32 %v538, %v540
      %v542 = vrot.slane %v528, %v541
      %v543 = vcombine.high %v535, %v535
      %v544 = vcombine.high %v542, %v542
      %v545 = vcombine.high %v273, %v273
      %v547 = vunpack.c.l.s4 1983009808
      %v548 = vunpack.c.0.s8 %v547
      %v549 = vlaneseq
      %v550 = vshrl.u32 %v549, 7
      %v551 = vsub.s32 %v548, %v550
      %v552 = vrot.slane %v273, %v551
      %v554 = vunpack.c.l.s4 1983009808
      %v555 = vunpack.c.0.s8 %v554
      %v556 = vlaneseq
      %v557 = vshrl.u32 %v556, 7
      %v558 = vsub.s32 %v555, %v557
      %v559 = vrot.slane %v545, %v558
      %v560 = vcombine.high %v552, %v552
      %v561 = vcombine.high %v559, %v559
      %v626 = vrot.slane %v297, 7
      %v627 = vrot.slane %v626, 2
      %v628 = vrot.slane %v305, 7
      %v629 = vrot.slane %v628, 2
      %v630 = vrot.slane %v304, 7
      %v631 = vrot.slane %v630, 2
      %v632 = vrot.slane %v306, 7
      %v633 = vrot.slane %v632, 2
      %v634 = vrot.slane %v314, 7
      %v635 = vrot.slane %v634, 2
      %v636 = vrot.slane %v322, 7
      %v637 = vrot.slane %v636, 2
      %v638 = vrot.slane %v321, 7
      %v639 = vrot.slane %v638, 2
      %v640 = vrot.slane %v323, 7
      %v641 = vrot.slane %v640, 2
      %v642 = vrot.slane %v331, 7
      %v643 = vrot.slane %v642, 2
      %v644 = vrot.slane %v339, 7
      %v645 = vrot.slane %v644, 2
      %v646 = vrot.slane %v338, 7
      %v647 = vrot.slane %v646, 2
      %v648 = vrot.slane %v340, 7
      %v649 = vrot.slane %v648, 2
      %v650 = vrot.slane %v348, 7
      %v651 = vrot.slane %v650, 2
      %v652 = vrot.slane %v356, 7
      %v653 = vrot.slane %v652, 2
      %v654 = vrot.slane %v355, 7
      %v655 = vrot.slane %v654, 2
      %v656 = vrot.slane %v357, 7
      %v657 = vrot.slane %v656, 2
      %v658 = vrot.slane %v365, 7
      %v659 = vrot.slane %v658, 2
      %v660 = vrot.slane %v373, 7
      %v661 = vrot.slane %v660, 2
      %v662 = vrot.slane %v372, 7
      %v663 = vrot.slane %v662, 2
      %v664 = vrot.slane %v374, 7
      %v665 = vrot.slane %v664, 2
      %v666 = vrot.slane %v382, 7
      %v667 = vrot.slane %v666, 2
      %v668 = vrot.slane %v390, 7
      %v669 = vrot.slane %v668, 2
      %v670 = vrot.slane %v389, 7
      %v671 = vrot.slane %v670, 2
      %v672 = vrot.slane %v391, 7
      %v673 = vrot.slane %v672, 2
      %v674 = vrot.slane %v399, 7
      %v675 = vrot.slane %v674, 2
      %v676 = vrot.slane %v407, 7
      %v677 = vrot.slane %v676, 2
      %v678 = vrot.slane %v406, 7
      %v679 = vrot.slane %v678, 2
      %v680 = vrot.slane %v408, 7
      %v681 = vrot.slane %v680, 2
      %v682 = vrot.slane %v416, 7
      %v683 = vrot.slane %v682, 2
      %v684 = vrot.slane %v424, 7
      %v685 = vrot.slane %v684, 2
      %v686 = vrot.slane %v423, 7
      %v687 = vrot.slane %v686, 2
      %v688 = vrot.slane %v425, 7
      %v689 = vrot.slane %v688, 2
      %v690 = vrot.slane %v433, 7
      %v691 = vrot.slane %v690, 2
      %v692 = vrot.slane %v441, 7
      %v693 = vrot.slane %v692, 2
      %v694 = vrot.slane %v440, 7
      %v695 = vrot.slane %v694, 2
      %v696 = vrot.slane %v442, 7
      %v697 = vrot.slane %v696, 2
      %v698 = vrot.slane %v450, 7
      %v699 = vrot.slane %v698, 2
      %v700 = vrot.slane %v458, 7
      %v701 = vrot.slane %v700, 2
      %v702 = vrot.slane %v457, 7
      %v703 = vrot.slane %v702, 2
      %v704 = vrot.slane %v459, 7
      %v705 = vrot.slane %v704, 2
      %v706 = vrot.slane %v467, 7
      %v707 = vrot.slane %v706, 2
      %v708 = vrot.slane %v475, 7
      %v709 = vrot.slane %v708, 2
      %v710 = vrot.slane %v474, 7
      %v711 = vrot.slane %v710, 2
      %v712 = vrot.slane %v476, 7
      %v713 = vrot.slane %v712, 2
      %v714 = vrot.slane %v484, 7
      %v715 = vrot.slane %v714, 2
      %v716 = vrot.slane %v492, 7
      %v717 = vrot.slane %v716, 2
      %v718 = vrot.slane %v491, 7
      %v719 = vrot.slane %v718, 2
      %v720 = vrot.slane %v493, 7
      %v721 = vrot.slane %v720, 2
      %v722 = vrot.slane %v501, 7
      %v723 = vrot.slane %v722, 2
      %v724 = vrot.slane %v509, 7
      %v725 = vrot.slane %v724, 2
      %v726 = vrot.slane %v508, 7
      %v727 = vrot.slane %v726, 2
      %v728 = vrot.slane %v510, 7
      %v729 = vrot.slane %v728, 2
      %v730 = vrot.slane %v518, 7
      %v731 = vrot.slane %v730, 2
      %v732 = vrot.slane %v526, 7
      %v733 = vrot.slane %v732, 2
      %v734 = vrot.slane %v525, 7
      %v735 = vrot.slane %v734, 2
      %v736 = vrot.slane %v527, 7
      %v737 = vrot.slane %v736, 2
      %v738 = vrot.slane %v535, 7
      %v739 = vrot.slane %v738, 2
      %v740 = vrot.slane %v543, 7
      %v741 = vrot.slane %v740, 2
      %v742 = vrot.slane %v542, 7
      %v743 = vrot.slane %v742, 2
      %v744 = vrot.slane %v544, 7
      %v745 = vrot.slane %v744, 2
      %v746 = vrot.slane %v552, 7
      %v747 = vrot.slane %v746, 2
      %v748 = vrot.slane %v560, 7
      %v749 = vrot.slane %v748, 2
      %v750 = vrot.slane %v559, 7
      %v751 = vrot.slane %v750, 2
      %v752 = vrot.slane %v561, 7
      %v753 = vrot.slane %v752, 2
      %v818 = vmax.f32 %v297, %v627
      %v819 = vmax.f32 %v305, %v629
      %v820 = vmax.f32 %v304, %v631
      %v821 = vmax.f32 %v306, %v633
      %v822 = vmax.f32 %v314, %v635
      %v823 = vmax.f32 %v322, %v637
      %v824 = vmax.f32 %v321, %v639
      %v825 = vmax.f32 %v323, %v641
      %v826 = vmax.f32 %v331, %v643
      %v827 = vmax.f32 %v339, %v645
      %v828 = vmax.f32 %v338, %v647
      %v829 = vmax.f32 %v340, %v649
      %v830 = vmax.f32 %v348, %v651
      %v831 = vmax.f32 %v356, %v653
      %v832 = vmax.f32 %v355, %v655
      %v833 = vmax.f32 %v357, %v657
      %v834 = vmax.f32 %v365, %v659
      %v835 = vmax.f32 %v373, %v661
      %v836 = vmax.f32 %v372, %v663
      %v837 = vmax.f32 %v374, %v665
      %v838 = vmax.f32 %v382, %v667
      %v839 = vmax.f32 %v390, %v669
      %v840 = vmax.f32 %v389, %v671
      %v841 = vmax.f32 %v391, %v673
      %v842 = vmax.f32 %v399, %v675
      %v843 = vmax.f32 %v407, %v677
      %v844 = vmax.f32 %v406, %v679
      %v845 = vmax.f32 %v408, %v681
      %v846 = vmax.f32 %v416, %v683
      %v847 = vmax.f32 %v424, %v685
      %v848 = vmax.f32 %v423, %v687
      %v849 = vmax.f32 %v425, %v689
      %v850 = vmax.f32 %v433, %v691
      %v851 = vmax.f32 %v441, %v693
      %v852 = vmax.f32 %v440, %v695
      %v853 = vmax.f32 %v442, %v697
      %v854 = vmax.f32 %v450, %v699
      %v855 = vmax.f32 %v458, %v701
      %v856 = vmax.f32 %v457, %v703
      %v857 = vmax.f32 %v459, %v705
      %v858 = vmax.f32 %v467, %v707
      %v859 = vmax.f32 %v475, %v709
      %v860 = vmax.f32 %v474, %v711
      %v861 = vmax.f32 %v476, %v713
      %v862 = vmax.f32 %v484, %v715
      %v863 = vmax.f32 %v492, %v717
      %v864 = vmax.f32 %v491, %v719
      %v865 = vmax.f32 %v493, %v721
      %v866 = vmax.f32 %v501, %v723
      %v867 = vmax.f32 %v509, %v725
      %v868 = vmax.f32 %v508, %v727
      %v869 = vmax.f32 %v510, %v729
      %v870 = vmax.f32 %v518, %v731
      %v871 = vmax.f32 %v526, %v733
      %v872 = vmax.f32 %v525, %v735
      %v873 = vmax.f32 %v527, %v737
      %v874 = vmax.f32 %v535, %v739
      %v875 = vmax.f32 %v543, %v741
      %v876 = vmax.f32 %v542, %v743
      %v877 = vmax.f32 %v544, %v745
      %v878 = vmax.f32 %v552, %v747
      %v879 = vmax.f32 %v560, %v749
      %v880 = vmax.f32 %v559, %v751
      %v881 = vmax.f32 %v561, %v753
      %882 = vst [vmem:[#allocation2] sm:$0xff] 0.0
      %883 = vst [vmem:[#allocation2 + $0x8] sm:$0x3] 0.0
      %s884 = scalar_lea.vmem [#allocation2], 144
      %885 = vst [vmem:[%s884] sm:$0xff] 0.0
      %886 = vst [vmem:[%s884 + $0x8] sm:$0x3] 0.0
      %887 = vst [vmem:[#allocation2] sm:$0x1] 0.0
      %888 = vst [vmem:[#allocation2 + $0x10] sm:$0x1] 0.0
      %889 = vst [vmem:[#allocation2 + $0x20] sm:$0x1] 0.0
      %890 = vst [vmem:[#allocation2 + $0x30] sm:$0x1] 0.0
      %891 = vst [vmem:[#allocation2 + $0x40] sm:$0x1] 0.0
      %892 = vst [vmem:[#allocation2 + $0x50] sm:$0x1] 0.0
      %893 = vst [vmem:[#allocation2 + $0x60] sm:$0x1] 0.0
      %894 = vst [vmem:[#allocation2 + $0x70] sm:$0x1] 0.0
      %895 = vst [vmem:[#allocation2 + $0x80] sm:$0x1] 0.0
      %896 = vst [vmem:[#allocation2 + $0x90] sm:$0x1] 0.0
      %897 = vst [vmem:[#allocation2 + $0x9] sm:$0x1] 0.0
      %898 = vst [vmem:[#allocation2 + $0x19] sm:$0x1] 0.0
      %899 = vst [vmem:[#allocation2 + $0x29] sm:$0x1] 0.0
      %900 = vst [vmem:[#allocation2 + $0x39] sm:$0x1] 0.0
      %901 = vst [vmem:[#allocation2 + $0x49] sm:$0x1] 0.0
      %902 = vst [vmem:[#allocation2 + $0x59] sm:$0x1] 0.0
      %903 = vst [vmem:[#allocation2 + $0x69] sm:$0x1] 0.0
      %904 = vst [vmem:[#allocation2 + $0x79] sm:$0x1] 0.0
      %905 = vst [vmem:[#allocation2 + $0x89] sm:$0x1] 0.0
      %906 = vst [vmem:[#allocation2 + $0x99] sm:$0x1] 0.0
      %v971 = vlaneseq
      %v972 = vshrl.u32 %v971, 7
      %v973 = vsub.s32 0, %v972
      %v974 = vrot.slane %v818, %v973
      %v975 = vlaneseq
      %v976 = vshrl.u32 %v975, 7
      %v977 = vsub.s32 0, %v976
      %v978 = vrot.slane %v819, %v977
      %v979 = vlaneseq
      %v980 = vshrl.u32 %v979, 7
      %v981 = vsub.s32 0, %v980
      %v982 = vrot.slane %v820, %v981
      %v983 = vlaneseq
      %v984 = vshrl.u32 %v983, 7
      %v985 = vsub.s32 0, %v984
      %v986 = vrot.slane %v821, %v985
      %v987 = vlaneseq
      %v988 = vshrl.u32 %v987, 7
      %v989 = vsub.s32 0, %v988
      %v990 = vrot.slane %v822, %v989
      %v991 = vlaneseq
      %v992 = vshrl.u32 %v991, 7
      %v993 = vsub.s32 0, %v992
      %v994 = vrot.slane %v823, %v993
      %v995 = vlaneseq
      %v996 = vshrl.u32 %v995, 7
      %v997 = vsub.s32 0, %v996
      %v998 = vrot.slane %v824, %v997
      %v999 = vlaneseq
      %v1000 = vshrl.u32 %v999, 7
      %v1001 = vsub.s32 0, %v1000
      %v1002 = vrot.slane %v825, %v1001
      %v1003 = vlaneseq
      %v1004 = vshrl.u32 %v1003, 7
      %v1005 = vsub.s32 0, %v1004
      %v1006 = vrot.slane %v826, %v1005
      %v1007 = vlaneseq
      %v1008 = vshrl.u32 %v1007, 7
      %v1009 = vsub.s32 0, %v1008
      %v1010 = vrot.slane %v827, %v1009
      %v1011 = vlaneseq
      %v1012 = vshrl.u32 %v1011, 7
      %v1013 = vsub.s32 0, %v1012
      %v1014 = vrot.slane %v828, %v1013
      %v1015 = vlaneseq
      %v1016 = vshrl.u32 %v1015, 7
      %v1017 = vsub.s32 0, %v1016
      %v1018 = vrot.slane %v829, %v1017
      %v1019 = vlaneseq
      %v1020 = vshrl.u32 %v1019, 7
      %v1021 = vsub.s32 0, %v1020
      %v1022 = vrot.slane %v830, %v1021
      %v1023 = vlaneseq
      %v1024 = vshrl.u32 %v1023, 7
      %v1025 = vsub.s32 0, %v1024
      %v1026 = vrot.slane %v831, %v1025
      %v1027 = vlaneseq
      %v1028 = vshrl.u32 %v1027, 7
      %v1029 = vsub.s32 0, %v1028
      %v1030 = vrot.slane %v832, %v1029
      %v1031 = vlaneseq
      %v1032 = vshrl.u32 %v1031, 7
      %v1033 = vsub.s32 0, %v1032
      %v1034 = vrot.slane %v833, %v1033
      %v1035 = vlaneseq
      %v1036 = vshrl.u32 %v1035, 7
      %v1037 = vsub.s32 0, %v1036
      %v1038 = vrot.slane %v834, %v1037
      %v1039 = vlaneseq
      %v1040 = vshrl.u32 %v1039, 7
      %v1041 = vsub.s32 0, %v1040
      %v1042 = vrot.slane %v835, %v1041
      %v1043 = vlaneseq
      %v1044 = vshrl.u32 %v1043, 7
      %v1045 = vsub.s32 0, %v1044
      %v1046 = vrot.slane %v836, %v1045
      %v1047 = vlaneseq
      %v1048 = vshrl.u32 %v1047, 7
      %v1049 = vsub.s32 0, %v1048
      %v1050 = vrot.slane %v837, %v1049
      %v1051 = vlaneseq
      %v1052 = vshrl.u32 %v1051, 7
      %v1053 = vsub.s32 0, %v1052
      %v1054 = vrot.slane %v838, %v1053
      %v1055 = vlaneseq
      %v1056 = vshrl.u32 %v1055, 7
      %v1057 = vsub.s32 0, %v1056
      %v1058 = vrot.slane %v839, %v1057
      %v1059 = vlaneseq
      %v1060 = vshrl.u32 %v1059, 7
      %v1061 = vsub.s32 0, %v1060
      %v1062 = vrot.slane %v840, %v1061
      %v1063 = vlaneseq
      %v1064 = vshrl.u32 %v1063, 7
      %v1065 = vsub.s32 0, %v1064
      %v1066 = vrot.slane %v841, %v1065
      %v1067 = vlaneseq
      %v1068 = vshrl.u32 %v1067, 7
      %v1069 = vsub.s32 0, %v1068
      %v1070 = vrot.slane %v842, %v1069
      %v1071 = vlaneseq
      %v1072 = vshrl.u32 %v1071, 7
      %v1073 = vsub.s32 0, %v1072
      %v1074 = vrot.slane %v843, %v1073
      %v1075 = vlaneseq
      %v1076 = vshrl.u32 %v1075, 7
      %v1077 = vsub.s32 0, %v1076
      %v1078 = vrot.slane %v844, %v1077
      %v1079 = vlaneseq
      %v1080 = vshrl.u32 %v1079, 7
      %v1081 = vsub.s32 0, %v1080
      %v1082 = vrot.slane %v845, %v1081
      %v1083 = vlaneseq
      %v1084 = vshrl.u32 %v1083, 7
      %v1085 = vsub.s32 0, %v1084
      %v1086 = vrot.slane %v846, %v1085
      %v1087 = vlaneseq
      %v1088 = vshrl.u32 %v1087, 7
      %v1089 = vsub.s32 0, %v1088
      %v1090 = vrot.slane %v847, %v1089
      %v1091 = vlaneseq
      %v1092 = vshrl.u32 %v1091, 7
      %v1093 = vsub.s32 0, %v1092
      %v1094 = vrot.slane %v848, %v1093
      %v1095 = vlaneseq
      %v1096 = vshrl.u32 %v1095, 7
      %v1097 = vsub.s32 0, %v1096
      %v1098 = vrot.slane %v849, %v1097
      %v1099 = vlaneseq
      %v1100 = vshrl.u32 %v1099, 7
      %v1101 = vsub.s32 0, %v1100
      %v1102 = vrot.slane %v850, %v1101
      %v1103 = vlaneseq
      %v1104 = vshrl.u32 %v1103, 7
      %v1105 = vsub.s32 0, %v1104
      %v1106 = vrot.slane %v851, %v1105
      %v1107 = vlaneseq
      %v1108 = vshrl.u32 %v1107, 7
      %v1109 = vsub.s32 0, %v1108
      %v1110 = vrot.slane %v852, %v1109
      %v1111 = vlaneseq
      %v1112 = vshrl.u32 %v1111, 7
      %v1113 = vsub.s32 0, %v1112
      %v1114 = vrot.slane %v853, %v1113
      %v1115 = vlaneseq
      %v1116 = vshrl.u32 %v1115, 7
      %v1117 = vsub.s32 0, %v1116
      %v1118 = vrot.slane %v854, %v1117
      %v1119 = vlaneseq
      %v1120 = vshrl.u32 %v1119, 7
      %v1121 = vsub.s32 0, %v1120
      %v1122 = vrot.slane %v855, %v1121
      %v1123 = vlaneseq
      %v1124 = vshrl.u32 %v1123, 7
      %v1125 = vsub.s32 0, %v1124
      %v1126 = vrot.slane %v856, %v1125
      %v1127 = vlaneseq
      %v1128 = vshrl.u32 %v1127, 7
      %v1129 = vsub.s32 0, %v1128
      %v1130 = vrot.slane %v857, %v1129
      %v1131 = vlaneseq
      %v1132 = vshrl.u32 %v1131, 7
      %v1133 = vsub.s32 0, %v1132
      %v1134 = vrot.slane %v858, %v1133
      %v1135 = vlaneseq
      %v1136 = vshrl.u32 %v1135, 7
      %v1137 = vsub.s32 0, %v1136
      %v1138 = vrot.slane %v859, %v1137
      %v1139 = vlaneseq
      %v1140 = vshrl.u32 %v1139, 7
      %v1141 = vsub.s32 0, %v1140
      %v1142 = vrot.slane %v860, %v1141
      %v1143 = vlaneseq
      %v1144 = vshrl.u32 %v1143, 7
      %v1145 = vsub.s32 0, %v1144
      %v1146 = vrot.slane %v861, %v1145
      %v1147 = vlaneseq
      %v1148 = vshrl.u32 %v1147, 7
      %v1149 = vsub.s32 0, %v1148
      %v1150 = vrot.slane %v862, %v1149
      %v1151 = vlaneseq
      %v1152 = vshrl.u32 %v1151, 7
      %v1153 = vsub.s32 0, %v1152
      %v1154 = vrot.slane %v863, %v1153
      %v1155 = vlaneseq
      %v1156 = vshrl.u32 %v1155, 7
      %v1157 = vsub.s32 0, %v1156
      %v1158 = vrot.slane %v864, %v1157
      %v1159 = vlaneseq
      %v1160 = vshrl.u32 %v1159, 7
      %v1161 = vsub.s32 0, %v1160
      %v1162 = vrot.slane %v865, %v1161
      %v1163 = vlaneseq
      %v1164 = vshrl.u32 %v1163, 7
      %v1165 = vsub.s32 0, %v1164
      %v1166 = vrot.slane %v866, %v1165
      %v1167 = vlaneseq
      %v1168 = vshrl.u32 %v1167, 7
      %v1169 = vsub.s32 0, %v1168
      %v1170 = vrot.slane %v867, %v1169
      %v1171 = vlaneseq
      %v1172 = vshrl.u32 %v1171, 7
      %v1173 = vsub.s32 0, %v1172
      %v1174 = vrot.slane %v868, %v1173
      %v1175 = vlaneseq
      %v1176 = vshrl.u32 %v1175, 7
      %v1177 = vsub.s32 0, %v1176
      %v1178 = vrot.slane %v869, %v1177
      %v1179 = vlaneseq
      %v1180 = vshrl.u32 %v1179, 7
      %v1181 = vsub.s32 0, %v1180
      %v1182 = vrot.slane %v870, %v1181
      %v1183 = vlaneseq
      %v1184 = vshrl.u32 %v1183, 7
      %v1185 = vsub.s32 0, %v1184
      %v1186 = vrot.slane %v871, %v1185
      %v1187 = vlaneseq
      %v1188 = vshrl.u32 %v1187, 7
      %v1189 = vsub.s32 0, %v1188
      %v1190 = vrot.slane %v872, %v1189
      %v1191 = vlaneseq
      %v1192 = vshrl.u32 %v1191, 7
      %v1193 = vsub.s32 0, %v1192
      %v1194 = vrot.slane %v873, %v1193
      %v1195 = vlaneseq
      %v1196 = vshrl.u32 %v1195, 7
      %v1197 = vsub.s32 0, %v1196
      %v1198 = vrot.slane %v874, %v1197
      %v1199 = vlaneseq
      %v1200 = vshrl.u32 %v1199, 7
      %v1201 = vsub.s32 0, %v1200
      %v1202 = vrot.slane %v875, %v1201
      %v1203 = vlaneseq
      %v1204 = vshrl.u32 %v1203, 7
      %v1205 = vsub.s32 0, %v1204
      %v1206 = vrot.slane %v876, %v1205
      %v1207 = vlaneseq
      %v1208 = vshrl.u32 %v1207, 7
      %v1209 = vsub.s32 0, %v1208
      %v1210 = vrot.slane %v877, %v1209
      %v1211 = vlaneseq
      %v1212 = vshrl.u32 %v1211, 7
      %v1213 = vsub.s32 0, %v1212
      %v1214 = vrot.slane %v878, %v1213
      %v1215 = vlaneseq
      %v1216 = vshrl.u32 %v1215, 7
      %v1217 = vsub.s32 0, %v1216
      %v1218 = vrot.slane %v879, %v1217
      %v1219 = vlaneseq
      %v1220 = vshrl.u32 %v1219, 7
      %v1221 = vsub.s32 0, %v1220
      %v1222 = vrot.slane %v880, %v1221
      %v1223 = vlaneseq
      %v1224 = vshrl.u32 %v1223, 7
      %v1225 = vsub.s32 0, %v1224
      %v1226 = vrot.slane %v881, %v1225
      %vm1227 = vcmask 1041409
      %v1228 = vsel %vm1227, %v978, %v974
      %vm1229 = vcmask 1042434
      %v1230 = vsel %vm1229, %v982, %v1228
      %vm1231 = vcmask 1043459
      %v1232 = vsel %vm1231, %v986, %v1230
      %vm1233 = vcmask 1044484
      %v1234 = vsel %vm1233, %v990, %v1232
      %vm1235 = vcmask 1045509
      %v1236 = vsel %vm1235, %v994, %v1234
      %vm1237 = vcmask 1046534
      %v1238 = vsel %vm1237, %v998, %v1236
      %vm1239 = vcmask 1047559
      %v1240 = vsel %vm1239, %v1002, %v1238
      %v1241 = vsel %vm1227, %v1010, %v1006
      %v1242 = vsel %vm1229, %v1014, %v1241
      %v1243 = vsel %vm1231, %v1018, %v1242
      %v1244 = vsel %vm1233, %v1022, %v1243
      %v1245 = vsel %vm1235, %v1026, %v1244
      %v1246 = vsel %vm1237, %v1030, %v1245
      %v1247 = vsel %vm1239, %v1034, %v1246
      %v1248 = vsel %vm1227, %v1042, %v1038
      %v1249 = vsel %vm1229, %v1046, %v1248
      %v1250 = vsel %vm1231, %v1050, %v1249
      %v1251 = vsel %vm1233, %v1054, %v1250
      %v1252 = vsel %vm1235, %v1058, %v1251
      %v1253 = vsel %vm1237, %v1062, %v1252
      %v1254 = vsel %vm1239, %v1066, %v1253
      %v1255 = vsel %vm1227, %v1074, %v1070
      %v1256 = vsel %vm1229, %v1078, %v1255
      %v1257 = vsel %vm1231, %v1082, %v1256
      %v1258 = vsel %vm1233, %v1086, %v1257
      %v1259 = vsel %vm1235, %v1090, %v1258
      %v1260 = vsel %vm1237, %v1094, %v1259
      %v1261 = vsel %vm1239, %v1098, %v1260
      %v1262 = vsel %vm1227, %v1106, %v1102
      %v1263 = vsel %vm1229, %v1110, %v1262
      %v1264 = vsel %vm1231, %v1114, %v1263
      %v1265 = vsel %vm1233, %v1118, %v1264
      %v1266 = vsel %vm1235, %v1122, %v1265
      %v1267 = vsel %vm1237, %v1126, %v1266
      %v1268 = vsel %vm1239, %v1130, %v1267
      %v1269 = vsel %vm1227, %v1138, %v1134
      %v1270 = vsel %vm1229, %v1142, %v1269
      %v1271 = vsel %vm1231, %v1146, %v1270
      %v1272 = vsel %vm1233, %v1150, %v1271
      %v1273 = vsel %vm1235, %v1154, %v1272
      %v1274 = vsel %vm1237, %v1158, %v1273
      %v1275 = vsel %vm1239, %v1162, %v1274
      %v1276 = vsel %vm1227, %v1170, %v1166
      %v1277 = vsel %vm1229, %v1174, %v1276
      %v1278 = vsel %vm1231, %v1178, %v1277
      %v1279 = vsel %vm1233, %v1182, %v1278
      %v1280 = vsel %vm1235, %v1186, %v1279
      %v1281 = vsel %vm1237, %v1190, %v1280
      %v1282 = vsel %vm1239, %v1194, %v1281
      %v1283 = vsel %vm1227, %v1202, %v1198
      %v1284 = vsel %vm1229, %v1206, %v1283
      %v1285 = vsel %vm1231, %v1210, %v1284
      %v1286 = vsel %vm1233, %v1214, %v1285
      %v1287 = vsel %vm1235, %v1218, %v1286
      %v1288 = vsel %vm1237, %v1222, %v1287
      %v1289 = vsel %vm1239, %v1226, %v1288
      %s1298 = scalar_lea.vmem [#allocation2], 16
      %1299 = vst [vmem:[%s1298 + $0x1] sm:$0xff] %v1240
      %1300 = vst [vmem:[%s1298 + $0x11] sm:$0xff] %v1247
      %1301 = vst [vmem:[%s1298 + $0x21] sm:$0xff] %v1254
      %1302 = vst [vmem:[%s1298 + $0x31] sm:$0xff] %v1261
      %1303 = vst [vmem:[%s1298 + $0x41] sm:$0xff] %v1268
      %1304 = vst [vmem:[%s1298 + $0x51] sm:$0xff] %v1275
      %1305 = vst [vmem:[%s1298 + $0x61] sm:$0xff] %v1282
      %1306 = vst [vmem:[%s1298 + $0x71] sm:$0xff] %v1289
      %1307 = vst [vmem:[#allocation3] sm:$0xff] 0.0
      %1308 = vst [vmem:[#allocation3 + $0x8] sm:$0x3] 0.0
      %s1309 = scalar_lea.vmem [#allocation3], 144
      %1310 = vst [vmem:[%s1309] sm:$0xff] 0.0
      %1311 = vst [vmem:[%s1309 + $0x8] sm:$0x3] 0.0
      %1312 = vst [vmem:[#allocation3] sm:$0x1] 0.0
      %1313 = vst [vmem:[#allocation3 + $0x10] sm:$0x1] 0.0
      %1314 = vst [vmem:[#allocation3 + $0x20] sm:$0x1] 0.0
      %1315 = vst [vmem:[#allocation3 + $0x30] sm:$0x1] 0.0
      %1316 = vst [vmem:[#allocation3 + $0x40] sm:$0x1] 0.0
      %1317 = vst [vmem:[#allocation3 + $0x50] sm:$0x1] 0.0
      %1318 = vst [vmem:[#allocation3 + $0x60] sm:$0x1] 0.0
      %1319 = vst [vmem:[#allocation3 + $0x70] sm:$0x1] 0.0
      %1320 = vst [vmem:[#allocation3 + $0x80] sm:$0x1] 0.0
      %1321 = vst [vmem:[#allocation3 + $0x90] sm:$0x1] 0.0
      %1322 = vst [vmem:[#allocation3 + $0x9] sm:$0x1] 0.0
      %1323 = vst [vmem:[#allocation3 + $0x19] sm:$0x1] 0.0
      %1324 = vst [vmem:[#allocation3 + $0x29] sm:$0x1] 0.0
      %1325 = vst [vmem:[#allocation3 + $0x39] sm:$0x1] 0.0
      %1326 = vst [vmem:[#allocation3 + $0x49] sm:$0x1] 0.0
      %1327 = vst [vmem:[#allocation3 + $0x59] sm:$0x1] 0.0
      %1328 = vst [vmem:[#allocation3 + $0x69] sm:$0x1] 0.0
      %1329 = vst [vmem:[#allocation3 + $0x79] sm:$0x1] 0.0
      %1330 = vst [vmem:[#allocation3 + $0x89] sm:$0x1] 0.0
      %1331 = vst [vmem:[#allocation3 + $0x99] sm:$0x1] 0.0
      %v1332 = vld [vmem:[%s1] sm:$0xf]
      %v1333 = vld [vmem:[%s1 + $0x4] sm:$0xf]
      %v1334 = vld [vmem:[%s1 + $0x8] sm:$0xf]
      %v1335 = vld [vmem:[%s1 + $0xc] sm:$0xf]
      %v1336 = vld [vmem:[%s1 + $0x10] sm:$0xf]
      %v1337 = vld [vmem:[%s1 + $0x14] sm:$0xf]
      %v1338 = vld [vmem:[%s1 + $0x18] sm:$0xf]
      %v1339 = vld [vmem:[%s1 + $0x1c] sm:$0xf]
      %v1340 = vld [vmem:[%s1 + $0x20] sm:$0xf]
      %v1341 = vld [vmem:[%s1 + $0x24] sm:$0xf]
      %v1342 = vld [vmem:[%s1 + $0x28] sm:$0xf]
      %v1343 = vld [vmem:[%s1 + $0x2c] sm:$0xf]
      %v1344 = vld [vmem:[%s1 + $0x30] sm:$0xf]
      %v1345 = vld [vmem:[%s1 + $0x34] sm:$0xf]
      %v1346 = vld [vmem:[%s1 + $0x38] sm:$0xf]
      %v1347 = vld [vmem:[%s1 + $0x3c] sm:$0xf]
      %v1348 = vld [vmem:[%s1 + $0x40] sm:$0xf]
      %v1349 = vld [vmem:[%s1 + $0x44] sm:$0xf]
      %v1350 = vld [vmem:[%s1 + $0x48] sm:$0xf]
      %v1351 = vld [vmem:[%s1 + $0x4c] sm:$0xf]
      %v1352 = vld [vmem:[%s1 + $0x50] sm:$0xf]
      %v1353 = vld [vmem:[%s1 + $0x54] sm:$0xf]
      %v1354 = vld [vmem:[%s1 + $0x58] sm:$0xf]
      %v1355 = vld [vmem:[%s1 + $0x5c] sm:$0xf]
      %v1356 = vld [vmem:[%s1 + $0x60] sm:$0xf]
      %v1357 = vld [vmem:[%s1 + $0x64] sm:$0xf]
      %v1358 = vld [vmem:[%s1 + $0x68] sm:$0xf]
      %v1359 = vld [vmem:[%s1 + $0x6c] sm:$0xf]
      %v1360 = vld [vmem:[%s1 + $0x70] sm:$0xf]
      %v1361 = vld [vmem:[%s1 + $0x74] sm:$0xf]
      %v1362 = vld [vmem:[%s1 + $0x78] sm:$0xf]
      %v1363 = vld [vmem:[%s1 + $0x7c] sm:$0xf]
      %v1364 = vld [vmem:[%s1 + $0x80] sm:$0xf]
      %v1365 = vld [vmem:[%s1 + $0x84] sm:$0xf]
      %v1366 = vld [vmem:[%s1 + $0x88] sm:$0xf]
      %v1367 = vld [vmem:[%s1 + $0x8c] sm:$0xf]
      %v1368 = vld [vmem:[%s1 + $0x90] sm:$0xf]
      %v1369 = vld [vmem:[%s1 + $0x94] sm:$0xf]
      %v1370 = vld [vmem:[%s1 + $0x98] sm:$0xf]
      %v1371 = vld [vmem:[%s1 + $0x9c] sm:$0xf]
      %v1372 = vld [vmem:[%s1 + $0xa0] sm:$0xf]
      %v1373 = vld [vmem:[%s1 + $0xa4] sm:$0xf]
      %v1374 = vld [vmem:[%s1 + $0xa8] sm:$0xf]
      %v1375 = vld [vmem:[%s1 + $0xac] sm:$0xf]
      %v1376 = vld [vmem:[%s1 + $0xb0] sm:$0xf]
      %v1377 = vld [vmem:[%s1 + $0xb4] sm:$0xf]
      %v1378 = vld [vmem:[%s1 + $0xb8] sm:$0xf]
      %v1379 = vld [vmem:[%s1 + $0xbc] sm:$0xf]
      %v1380 = vld [vmem:[%s1 + $0xc0] sm:$0xf]
      %v1381 = vld [vmem:[%s1 + $0xc4] sm:$0xf]
      %v1382 = vld [vmem:[%s1 + $0xc8] sm:$0xf]
      %v1383 = vld [vmem:[%s1 + $0xcc] sm:$0xf]
      %v1384 = vld [vmem:[%s1 + $0xd0] sm:$0xf]
      %v1385 = vld [vmem:[%s1 + $0xd4] sm:$0xf]
      %v1386 = vld [vmem:[%s1 + $0xd8] sm:$0xf]
      %v1387 = vld [vmem:[%s1 + $0xdc] sm:$0xf]
      %v1388 = vld [vmem:[%s1 + $0xe0] sm:$0xf]
      %v1389 = vld [vmem:[%s1 + $0xe4] sm:$0xf]
      %v1390 = vld [vmem:[%s1 + $0xe8] sm:$0xf]
      %v1391 = vld [vmem:[%s1 + $0xec] sm:$0xf]
      %v1392 = vld [vmem:[%s1 + $0xf0] sm:$0xf]
      %v1393 = vld [vmem:[%s1 + $0xf4] sm:$0xf]
      %v1394 = vld [vmem:[%s1 + $0xf8] sm:$0xf]
      %v1395 = vld [vmem:[%s1 + $0xfc] sm:$0xf]
      %v1396 = vld [vmem:[%s1 + $0x100] sm:$0xf]
      %v1397 = vld [vmem:[%s1 + $0x104] sm:$0xf]
      %v1398 = vld [vmem:[%s1 + $0x108] sm:$0xf]
      %v1399 = vld [vmem:[%s1 + $0x10c] sm:$0xf]
      %v1400 = vld [vmem:[%s1 + $0x110] sm:$0xf]
      %v1401 = vld [vmem:[%s1 + $0x114] sm:$0xf]
      %v1402 = vld [vmem:[%s1 + $0x118] sm:$0xf]
      %v1403 = vld [vmem:[%s1 + $0x11c] sm:$0xf]
      %v1404 = vld [vmem:[%s1 + $0x120] sm:$0xf]
      %v1405 = vld [vmem:[%s1 + $0x124] sm:$0xf]
      %v1406 = vld [vmem:[%s1 + $0x128] sm:$0xf]
      %v1407 = vld [vmem:[%s1 + $0x12c] sm:$0xf]
      %v1408 = vld [vmem:[%s1 + $0x130] sm:$0xf]
      %v1409 = vld [vmem:[%s1 + $0x134] sm:$0xf]
      %v1410 = vld [vmem:[%s1 + $0x138] sm:$0xf]
      %v1411 = vld [vmem:[%s1 + $0x13c] sm:$0xf]
      %v1412 = vld [vmem:[%s1 + $0x140] sm:$0xf]
      %v1413 = vld [vmem:[%s1 + $0x144] sm:$0xf]
      %v1414 = vld [vmem:[%s1 + $0x148] sm:$0xf]
      %v1415 = vld [vmem:[%s1 + $0x14c] sm:$0xf]
      %v1416 = vld [vmem:[%s1 + $0x150] sm:$0xf]
      %v1417 = vld [vmem:[%s1 + $0x154] sm:$0xf]
      %v1418 = vld [vmem:[%s1 + $0x158] sm:$0xf]
      %v1419 = vld [vmem:[%s1 + $0x15c] sm:$0xf]
      %v1420 = vld [vmem:[%s1 + $0x160] sm:$0xf]
      %v1421 = vld [vmem:[%s1 + $0x164] sm:$0xf]
      %v1422 = vld [vmem:[%s1 + $0x168] sm:$0xf]
      %v1423 = vld [vmem:[%s1 + $0x16c] sm:$0xf]
      %v1424 = vld [vmem:[%s1 + $0x170] sm:$0xf]
      %v1425 = vld [vmem:[%s1 + $0x174] sm:$0xf]
      %v1426 = vld [vmem:[%s1 + $0x178] sm:$0xf]
      %v1427 = vld [vmem:[%s1 + $0x17c] sm:$0xf]
      %v1428 = vld [vmem:[%s1 + $0x180] sm:$0xf]
      %v1429 = vld [vmem:[%s1 + $0x184] sm:$0xf]
      %v1430 = vld [vmem:[%s1 + $0x188] sm:$0xf]
      %v1431 = vld [vmem:[%s1 + $0x18c] sm:$0xf]
      %v1432 = vld [vmem:[%s1 + $0x190] sm:$0xf]
      %v1433 = vld [vmem:[%s1 + $0x194] sm:$0xf]
      %v1434 = vld [vmem:[%s1 + $0x198] sm:$0xf]
      %v1435 = vld [vmem:[%s1 + $0x19c] sm:$0xf]
      %v1436 = vld [vmem:[%s1 + $0x1a0] sm:$0xf]
      %v1437 = vld [vmem:[%s1 + $0x1a4] sm:$0xf]
      %v1438 = vld [vmem:[%s1 + $0x1a8] sm:$0xf]
      %v1439 = vld [vmem:[%s1 + $0x1ac] sm:$0xf]
      %v1440 = vld [vmem:[%s1 + $0x1b0] sm:$0xf]
      %v1441 = vld [vmem:[%s1 + $0x1b4] sm:$0xf]
      %v1442 = vld [vmem:[%s1 + $0x1b8] sm:$0xf]
      %v1443 = vld [vmem:[%s1 + $0x1bc] sm:$0xf]
      %v1444 = vld [vmem:[%s1 + $0x1c0] sm:$0xf]
      %v1445 = vld [vmem:[%s1 + $0x1c4] sm:$0xf]
      %v1446 = vld [vmem:[%s1 + $0x1c8] sm:$0xf]
      %v1447 = vld [vmem:[%s1 + $0x1cc] sm:$0xf]
      %v1448 = vld [vmem:[%s1 + $0x1d0] sm:$0xf]
      %v1449 = vld [vmem:[%s1 + $0x1d4] sm:$0xf]
      %v1450 = vld [vmem:[%s1 + $0x1d8] sm:$0xf]
      %v1451 = vld [vmem:[%s1 + $0x1dc] sm:$0xf]
      %v1452 = vld [vmem:[%s1 + $0x1e0] sm:$0xf]
      %v1453 = vld [vmem:[%s1 + $0x1e4] sm:$0xf]
      %v1454 = vld [vmem:[%s1 + $0x1e8] sm:$0xf]
      %v1455 = vld [vmem:[%s1 + $0x1ec] sm:$0xf]
      %v1456 = vld [vmem:[%s1 + $0x1f0] sm:$0xf]
      %v1457 = vld [vmem:[%s1 + $0x1f4] sm:$0xf]
      %v1458 = vld [vmem:[%s1 + $0x1f8] sm:$0xf]
      %v1459 = vld [vmem:[%s1 + $0x1fc] sm:$0xf]
      %v1460 = vld [vmem:[%s1 + $0x200] sm:$0xf]
      %v1461 = vld [vmem:[%s1 + $0x204] sm:$0xf]
      %v1462 = vld [vmem:[%s1 + $0x208] sm:$0xf]
      %v1463 = vld [vmem:[%s1 + $0x20c] sm:$0xf]
      %v1464 = vld [vmem:[%s1 + $0x210] sm:$0xf]
      %v1465 = vld [vmem:[%s1 + $0x214] sm:$0xf]
      %v1466 = vld [vmem:[%s1 + $0x218] sm:$0xf]
      %v1467 = vld [vmem:[%s1 + $0x21c] sm:$0xf]
      %v1468 = vld [vmem:[%s1 + $0x220] sm:$0xf]
      %v1469 = vld [vmem:[%s1 + $0x224] sm:$0xf]
      %v1470 = vld [vmem:[%s1 + $0x228] sm:$0xf]
      %v1471 = vld [vmem:[%s1 + $0x22c] sm:$0xf]
      %v1472 = vld [vmem:[%s1 + $0x230] sm:$0xf]
      %v1473 = vld [vmem:[%s1 + $0x234] sm:$0xf]
      %v1474 = vld [vmem:[%s1 + $0x238] sm:$0xf]
      %v1475 = vld [vmem:[%s1 + $0x23c] sm:$0xf]
      %v1476 = vld [vmem:[%s2] sm:$0x1]
      %v1477 = vld [vmem:[#allocation2] sm:$0xff]
      %v1478 = vld [vmem:[#allocation2 + $0x10] sm:$0xff]
      %v1479 = vld [vmem:[#allocation2 + $0x20] sm:$0xff]
      %v1480 = vld [vmem:[#allocation2 + $0x30] sm:$0xff]
      %v1481 = vld [vmem:[#allocation2 + $0x40] sm:$0xff]
      %v1482 = vld [vmem:[#allocation2 + $0x50] sm:$0xff]
      %v1483 = vld [vmem:[#allocation2 + $0x60] sm:$0xff]
      %v1484 = vld [vmem:[#allocation2 + $0x70] sm:$0xff]
      %v1485 = vpack.c.bf16 %v1478, %v1477
      %v1486 = vpack.c.bf16 %v1480, %v1479
      %v1487 = vpack.c.bf16 %v1482, %v1481
      %v1488 = vpack.c.bf16 %v1484, %v1483
      %v1489 = vld [vmem:[#allocation2 + $0x1] sm:$0xff]
      %v1490 = vld [vmem:[#allocation2 + $0x11] sm:$0xff]
      %v1491 = vld [vmem:[#allocation2 + $0x21] sm:$0xff]
      %v1492 = vld [vmem:[#allocation2 + $0x31] sm:$0xff]
      %v1493 = vld [vmem:[#allocation2 + $0x41] sm:$0xff]
      %v1494 = vld [vmem:[#allocation2 + $0x51] sm:$0xff]
      %v1495 = vld [vmem:[#allocation2 + $0x61] sm:$0xff]
      %v1496 = vld [vmem:[#allocation2 + $0x71] sm:$0xff]
      %v1497 = vpack.c.bf16 %v1490, %v1489
      %v1498 = vpack.c.bf16 %v1492, %v1491
      %v1499 = vpack.c.bf16 %v1494, %v1493
      %v1500 = vpack.c.bf16 %v1496, %v1495
      %v1501 = vld [vmem:[#allocation2 + $0x2] sm:$0xff]
      %v1502 = vld [vmem:[#allocation2 + $0x12] sm:$0xff]
      %v1503 = vld [vmem:[#allocation2 + $0x22] sm:$0xff]
      %v1504 = vld [vmem:[#allocation2 + $0x32] sm:$0xff]
      %v1505 = vld [vmem:[#allocation2 + $0x42] sm:$0xff]
      %v1506 = vld [vmem:[#allocation2 + $0x52] sm:$0xff]
      %v1507 = vld [vmem:[#allocation2 + $0x62] sm:$0xff]
      %v1508 = vld [vmem:[#allocation2 + $0x72] sm:$0xff]
      %v1509 = vpack.c.bf16 %v1502, %v1501
      %v1510 = vpack.c.bf16 %v1504, %v1503
      %v1511 = vpack.c.bf16 %v1506, %v1505
      %v1512 = vpack.c.bf16 %v1508, %v1507
      %v1513 = vld [vmem:[%s1298] sm:$0xff]
      %v1514 = vld [vmem:[%s1298 + $0x10] sm:$0xff]
      %v1515 = vld [vmem:[%s1298 + $0x20] sm:$0xff]
      %v1516 = vld [vmem:[%s1298 + $0x30] sm:$0xff]
      %v1517 = vld [vmem:[%s1298 + $0x40] sm:$0xff]
      %v1518 = vld [vmem:[%s1298 + $0x50] sm:$0xff]
      %v1519 = vld [vmem:[%s1298 + $0x60] sm:$0xff]
      %v1520 = vld [vmem:[%s1298 + $0x70] sm:$0xff]
      %v1521 = vpack.c.bf16 %v1514, %v1513
      %v1522 = vpack.c.bf16 %v1516, %v1515
      %v1523 = vpack.c.bf16 %v1518, %v1517
      %v1524 = vpack.c.bf16 %v1520, %v1519
      %v1525 = vld [vmem:[%s1298 + $0x1] sm:$0xff]
      %v1526 = vld [vmem:[%s1298 + $0x11] sm:$0xff]
      %v1527 = vld [vmem:[%s1298 + $0x21] sm:$0xff]
      %v1528 = vld [vmem:[%s1298 + $0x31] sm:$0xff]
      %v1529 = vld [vmem:[%s1298 + $0x41] sm:$0xff]
      %v1530 = vld [vmem:[%s1298 + $0x51] sm:$0xff]
      %v1531 = vld [vmem:[%s1298 + $0x61] sm:$0xff]
      %v1532 = vld [vmem:[%s1298 + $0x71] sm:$0xff]
      %v1533 = vpack.c.bf16 %v1526, %v1525
      %v1534 = vpack.c.bf16 %v1528, %v1527
      %v1535 = vpack.c.bf16 %v1530, %v1529
      %v1536 = vpack.c.bf16 %v1532, %v1531
      %v1537 = vld [vmem:[%s1298 + $0x2] sm:$0xff]
      %v1538 = vld [vmem:[%s1298 + $0x12] sm:$0xff]
      %v1539 = vld [vmem:[%s1298 + $0x22] sm:$0xff]
      %v1540 = vld [vmem:[%s1298 + $0x32] sm:$0xff]
      %v1541 = vld [vmem:[%s1298 + $0x42] sm:$0xff]
      %v1542 = vld [vmem:[%s1298 + $0x52] sm:$0xff]
      %v1543 = vld [vmem:[%s1298 + $0x62] sm:$0xff]
      %v1544 = vld [vmem:[%s1298 + $0x72] sm:$0xff]
      %v1545 = vpack.c.bf16 %v1538, %v1537
      %v1546 = vpack.c.bf16 %v1540, %v1539
      %v1547 = vpack.c.bf16 %v1542, %v1541
      %v1548 = vpack.c.bf16 %v1544, %v1543
      %s1549 = scalar_lea.vmem [#allocation2], 32
      %v1550 = vld [vmem:[%s1549] sm:$0xff]
      %v1551 = vld [vmem:[%s1549 + $0x10] sm:$0xff]
      %v1552 = vld [vmem:[%s1549 + $0x20] sm:$0xff]
      %v1553 = vld [vmem:[%s1549 + $0x30] sm:$0xff]
      %v1554 = vld [vmem:[%s1549 + $0x40] sm:$0xff]
      %v1555 = vld [vmem:[%s1549 + $0x50] sm:$0xff]
      %v1556 = vld [vmem:[%s1549 + $0x60] sm:$0xff]
      %v1557 = vld [vmem:[%s1549 + $0x70] sm:$0xff]
      %v1558 = vpack.c.bf16 %v1551, %v1550
      %v1559 = vpack.c.bf16 %v1553, %v1552
      %v1560 = vpack.c.bf16 %v1555, %v1554
      %v1561 = vpack.c.bf16 %v1557, %v1556
      %v1562 = vld [vmem:[%s1549 + $0x1] sm:$0xff]
      %v1563 = vld [vmem:[%s1549 + $0x11] sm:$0xff]
      %v1564 = vld [vmem:[%s1549 + $0x21] sm:$0xff]
      %v1565 = vld [vmem:[%s1549 + $0x31] sm:$0xff]
      %v1566 = vld [vmem:[%s1549 + $0x41] sm:$0xff]
      %v1567 = vld [vmem:[%s1549 + $0x51] sm:$0xff]
      %v1568 = vld [vmem:[%s1549 + $0x61] sm:$0xff]
      %v1569 = vld [vmem:[%s1549 + $0x71] sm:$0xff]
      %v1570 = vpack.c.bf16 %v1563, %v1562
      %v1571 = vpack.c.bf16 %v1565, %v1564
      %v1572 = vpack.c.bf16 %v1567, %v1566
      %v1573 = vpack.c.bf16 %v1569, %v1568
      %v1574 = vld [vmem:[%s1549 + $0x2] sm:$0xff]
      %v1575 = vld [vmem:[%s1549 + $0x12] sm:$0xff]
      %v1576 = vld [vmem:[%s1549 + $0x22] sm:$0xff]
      %v1577 = vld [vmem:[%s1549 + $0x32] sm:$0xff]
      %v1578 = vld [vmem:[%s1549 + $0x42] sm:$0xff]
      %v1579 = vld [vmem:[%s1549 + $0x52] sm:$0xff]
      %v1580 = vld [vmem:[%s1549 + $0x62] sm:$0xff]
      %v1581 = vld [vmem:[%s1549 + $0x72] sm:$0xff]
      %v1582 = vpack.c.bf16 %v1575, %v1574
      %v1583 = vpack.c.bf16 %v1577, %v1576
      %v1584 = vpack.c.bf16 %v1579, %v1578
      %v1585 = vpack.c.bf16 %v1581, %v1580
      %v1587 = vlaneseq
      %v1588 = vshrl.u32 %v1587, 7
      %v1589 = vsub.s32 0, %v1588
      %v1590 = vrot.slane %v1476, %v1589
      %v1736 = vunpack.c.l.b16 %v1332
      %v1737 = vunpack.c.l.b16 %v1333
      %v1738 = vunpack.c.l.b16 %v1334
      %v1739 = vunpack.c.l.b16 %v1335
      %v1740 = vunpack.c.l.b16 %v1336
      %v1741 = vunpack.c.l.b16 %v1337
      %v1742 = vunpack.c.l.b16 %v1338
      %v1743 = vunpack.c.l.b16 %v1339
      %v1744 = vunpack.c.l.b16 %v1340
      %v1745 = vunpack.c.l.b16 %v1341
      %v1746 = vunpack.c.l.b16 %v1342
      %v1747 = vunpack.c.l.b16 %v1343
      %v1748 = vunpack.c.l.b16 %v1344
      %v1749 = vunpack.c.l.b16 %v1345
      %v1750 = vunpack.c.l.b16 %v1346
      %v1751 = vunpack.c.l.b16 %v1347
      %v1752 = vunpack.c.l.b16 %v1348
      %v1753 = vunpack.c.l.b16 %v1349
      %v1754 = vunpack.c.l.b16 %v1350
      %v1755 = vunpack.c.l.b16 %v1351
      %v1756 = vunpack.c.l.b16 %v1352
      %v1757 = vunpack.c.l.b16 %v1353
      %v1758 = vunpack.c.l.b16 %v1354
      %v1759 = vunpack.c.l.b16 %v1355
      %v1760 = vunpack.c.l.b16 %v1356
      %v1761 = vunpack.c.l.b16 %v1357
      %v1762 = vunpack.c.l.b16 %v1358
      %v1763 = vunpack.c.l.b16 %v1359
      %v1764 = vunpack.c.l.b16 %v1360
      %v1765 = vunpack.c.l.b16 %v1361
      %v1766 = vunpack.c.l.b16 %v1362
      %v1767 = vunpack.c.l.b16 %v1363
      %v1768 = vunpack.c.l.b16 %v1364
      %v1769 = vunpack.c.l.b16 %v1365
      %v1770 = vunpack.c.l.b16 %v1366
      %v1771 = vunpack.c.l.b16 %v1367
      %v1772 = vunpack.c.l.b16 %v1368
      %v1773 = vunpack.c.l.b16 %v1369
      %v1774 = vunpack.c.l.b16 %v1370
      %v1775 = vunpack.c.l.b16 %v1371
      %v1776 = vunpack.c.l.b16 %v1372
      %v1777 = vunpack.c.l.b16 %v1373
      %v1778 = vunpack.c.l.b16 %v1374
      %v1779 = vunpack.c.l.b16 %v1375
      %v1780 = vunpack.c.l.b16 %v1376
      %v1781 = vunpack.c.l.b16 %v1377
      %v1782 = vunpack.c.l.b16 %v1378
      %v1783 = vunpack.c.l.b16 %v1379
      %v1784 = vunpack.c.l.b16 %v1380
      %v1785 = vunpack.c.l.b16 %v1381
      %v1786 = vunpack.c.l.b16 %v1382
      %v1787 = vunpack.c.l.b16 %v1383
      %v1788 = vunpack.c.l.b16 %v1384
      %v1789 = vunpack.c.l.b16 %v1385
      %v1790 = vunpack.c.l.b16 %v1386
      %v1791 = vunpack.c.l.b16 %v1387
      %v1792 = vunpack.c.l.b16 %v1388
      %v1793 = vunpack.c.l.b16 %v1389
      %v1794 = vunpack.c.l.b16 %v1390
      %v1795 = vunpack.c.l.b16 %v1391
      %v1796 = vunpack.c.l.b16 %v1392
      %v1797 = vunpack.c.l.b16 %v1393
      %v1798 = vunpack.c.l.b16 %v1394
      %v1799 = vunpack.c.l.b16 %v1395
      %v1800 = vunpack.c.l.b16 %v1396
      %v1801 = vunpack.c.l.b16 %v1397
      %v1802 = vunpack.c.l.b16 %v1398
      %v1803 = vunpack.c.l.b16 %v1399
      %v1804 = vunpack.c.l.b16 %v1400
      %v1805 = vunpack.c.l.b16 %v1401
      %v1806 = vunpack.c.l.b16 %v1402
      %v1807 = vunpack.c.l.b16 %v1403
      %v1808 = vunpack.c.l.b16 %v1404
      %v1809 = vunpack.c.l.b16 %v1405
      %v1810 = vunpack.c.l.b16 %v1406
      %v1811 = vunpack.c.l.b16 %v1407
      %v1812 = vunpack.c.l.b16 %v1408
      %v1813 = vunpack.c.l.b16 %v1409
      %v1814 = vunpack.c.l.b16 %v1410
      %v1815 = vunpack.c.l.b16 %v1411
      %v1816 = vunpack.c.l.b16 %v1412
      %v1817 = vunpack.c.l.b16 %v1413
      %v1818 = vunpack.c.l.b16 %v1414
      %v1819 = vunpack.c.l.b16 %v1415
      %v1820 = vunpack.c.l.b16 %v1416
      %v1821 = vunpack.c.l.b16 %v1417
      %v1822 = vunpack.c.l.b16 %v1418
      %v1823 = vunpack.c.l.b16 %v1419
      %v1824 = vunpack.c.l.b16 %v1420
      %v1825 = vunpack.c.l.b16 %v1421
      %v1826 = vunpack.c.l.b16 %v1422
      %v1827 = vunpack.c.l.b16 %v1423
      %v1828 = vunpack.c.l.b16 %v1424
      %v1829 = vunpack.c.l.b16 %v1425
      %v1830 = vunpack.c.l.b16 %v1426
      %v1831 = vunpack.c.l.b16 %v1427
      %v1832 = vunpack.c.l.b16 %v1428
      %v1833 = vunpack.c.l.b16 %v1429
      %v1834 = vunpack.c.l.b16 %v1430
      %v1835 = vunpack.c.l.b16 %v1431
      %v1836 = vunpack.c.l.b16 %v1432
      %v1837 = vunpack.c.l.b16 %v1433
      %v1838 = vunpack.c.l.b16 %v1434
      %v1839 = vunpack.c.l.b16 %v1435
      %v1840 = vunpack.c.l.b16 %v1436
      %v1841 = vunpack.c.l.b16 %v1437
      %v1842 = vunpack.c.l.b16 %v1438
      %v1843 = vunpack.c.l.b16 %v1439
      %v1844 = vunpack.c.l.b16 %v1440
      %v1845 = vunpack.c.l.b16 %v1441
      %v1846 = vunpack.c.l.b16 %v1442
      %v1847 = vunpack.c.l.b16 %v1443
      %v1848 = vunpack.c.l.b16 %v1444
      %v1849 = vunpack.c.l.b16 %v1445
      %v1850 = vunpack.c.l.b16 %v1446
      %v1851 = vunpack.c.l.b16 %v1447
      %v1852 = vunpack.c.l.b16 %v1448
      %v1853 = vunpack.c.l.b16 %v1449
      %v1854 = vunpack.c.l.b16 %v1450
      %v1855 = vunpack.c.l.b16 %v1451
      %v1856 = vunpack.c.l.b16 %v1452
      %v1857 = vunpack.c.l.b16 %v1453
      %v1858 = vunpack.c.l.b16 %v1454
      %v1859 = vunpack.c.l.b16 %v1455
      %v1860 = vunpack.c.l.b16 %v1456
      %v1861 = vunpack.c.l.b16 %v1457
      %v1862 = vunpack.c.l.b16 %v1458
      %v1863 = vunpack.c.l.b16 %v1459
      %v1864 = vunpack.c.l.b16 %v1460
      %v1865 = vunpack.c.l.b16 %v1461
      %v1866 = vunpack.c.l.b16 %v1462
      %v1867 = vunpack.c.l.b16 %v1463
      %v1868 = vunpack.c.l.b16 %v1464
      %v1869 = vunpack.c.l.b16 %v1465
      %v1870 = vunpack.c.l.b16 %v1466
      %v1871 = vunpack.c.l.b16 %v1467
      %v1872 = vunpack.c.l.b16 %v1468
      %v1873 = vunpack.c.l.b16 %v1469
      %v1874 = vunpack.c.l.b16 %v1470
      %v1875 = vunpack.c.l.b16 %v1471
      %v1876 = vunpack.c.l.b16 %v1472
      %v1877 = vunpack.c.l.b16 %v1473
      %v1878 = vunpack.c.l.b16 %v1474
      %v1879 = vunpack.c.l.b16 %v1475
      %v1880 = vpack.c.b16 %v1737, %v1736
      %v1881 = vpack.c.b16 %v1739, %v1738
      %v1882 = vpack.c.b16 %v1741, %v1740
      %v1883 = vpack.c.b16 %v1743, %v1742
      %v1884 = vpack.c.b16 %v1745, %v1744
      %v1885 = vpack.c.b16 %v1747, %v1746
      %v1886 = vpack.c.b16 %v1749, %v1748
      %v1887 = vpack.c.b16 %v1751, %v1750
      %v1888 = vpack.c.b16 %v1753, %v1752
      %v1889 = vpack.c.b16 %v1755, %v1754
      %v1890 = vpack.c.b16 %v1757, %v1756
      %v1891 = vpack.c.b16 %v1759, %v1758
      %v1892 = vpack.c.b16 %v1761, %v1760
      %v1893 = vpack.c.b16 %v1763, %v1762
      %v1894 = vpack.c.b16 %v1765, %v1764
      %v1895 = vpack.c.b16 %v1767, %v1766
      %v1896 = vpack.c.b16 %v1769, %v1768
      %v1897 = vpack.c.b16 %v1771, %v1770
      %v1898 = vpack.c.b16 %v1773, %v1772
      %v1899 = vpack.c.b16 %v1775, %v1774
      %v1900 = vpack.c.b16 %v1777, %v1776
      %v1901 = vpack.c.b16 %v1779, %v1778
      %v1902 = vpack.c.b16 %v1781, %v1780
      %v1903 = vpack.c.b16 %v1783, %v1782
      %v1904 = vpack.c.b16 %v1785, %v1784
      %v1905 = vpack.c.b16 %v1787, %v1786
      %v1906 = vpack.c.b16 %v1789, %v1788
      %v1907 = vpack.c.b16 %v1791, %v1790
      %v1908 = vpack.c.b16 %v1793, %v1792
      %v1909 = vpack.c.b16 %v1795, %v1794
      %v1910 = vpack.c.b16 %v1797, %v1796
      %v1911 = vpack.c.b16 %v1799, %v1798
      %v1912 = vpack.c.b16 %v1801, %v1800
      %v1913 = vpack.c.b16 %v1803, %v1802
      %v1914 = vpack.c.b16 %v1805, %v1804
      %v1915 = vpack.c.b16 %v1807, %v1806
      %v1916 = vpack.c.b16 %v1809, %v1808
      %v1917 = vpack.c.b16 %v1811, %v1810
      %v1918 = vpack.c.b16 %v1813, %v1812
      %v1919 = vpack.c.b16 %v1815, %v1814
      %v1920 = vpack.c.b16 %v1817, %v1816
      %v1921 = vpack.c.b16 %v1819, %v1818
      %v1922 = vpack.c.b16 %v1821, %v1820
      %v1923 = vpack.c.b16 %v1823, %v1822
      %v1924 = vpack.c.b16 %v1825, %v1824
      %v1925 = vpack.c.b16 %v1827, %v1826
      %v1926 = vpack.c.b16 %v1829, %v1828
      %v1927 = vpack.c.b16 %v1831, %v1830
      %v1928 = vpack.c.b16 %v1833, %v1832
      %v1929 = vpack.c.b16 %v1835, %v1834
      %v1930 = vpack.c.b16 %v1837, %v1836
      %v1931 = vpack.c.b16 %v1839, %v1838
      %v1932 = vpack.c.b16 %v1841, %v1840
      %v1933 = vpack.c.b16 %v1843, %v1842
      %v1934 = vpack.c.b16 %v1845, %v1844
      %v1935 = vpack.c.b16 %v1847, %v1846
      %v1936 = vpack.c.b16 %v1849, %v1848
      %v1937 = vpack.c.b16 %v1851, %v1850
      %v1938 = vpack.c.b16 %v1853, %v1852
      %v1939 = vpack.c.b16 %v1855, %v1854
      %v1940 = vpack.c.b16 %v1857, %v1856
      %v1941 = vpack.c.b16 %v1859, %v1858
      %v1942 = vpack.c.b16 %v1861, %v1860
      %v1943 = vpack.c.b16 %v1863, %v1862
      %v1944 = vpack.c.b16 %v1865, %v1864
      %v1945 = vpack.c.b16 %v1867, %v1866
      %v1946 = vpack.c.b16 %v1869, %v1868
      %v1947 = vpack.c.b16 %v1871, %v1870
      %v1948 = vpack.c.b16 %v1873, %v1872
      %v1949 = vpack.c.b16 %v1875, %v1874
      %v1950 = vpack.c.b16 %v1877, %v1876
      %v1951 = vpack.c.b16 %v1879, %v1878
      %2024 = vmatprep.subr.bf16.mxu0 0
      %2025 = vmatpush1.bf16.msra.mxu0 %v1880
      %2026 = vmatprep.subr.bf16.mxu0 0
      %2027 = vmatpush1.bf16.msra.mxu0 %v1881
      %2028 = vmatprep.subr.bf16.mxu0 0
      %2029 = vmatpush1.bf16.msra.mxu0 %v1882
      %2030 = vmatprep.subr.bf16.mxu0 0
      %2031 = vmatpush1.bf16.msra.mxu0 %v1883
      %2032 = vmatprep.subr.bf16.mxu0 0
      %2033 = vmatpush1.bf16.msra.mxu0 %v1884
      %2034 = vmatprep.subr.bf16.mxu0 0
      %2035 = vmatpush1.bf16.msra.mxu0 %v1885
      %2036 = vmatprep.subr.bf16.mxu0 0
      %2037 = vmatpush1.bf16.msra.mxu0 %v1886
      %2038 = vmatprep.subr.bf16.mxu0 0
      %2039 = vmatpush1.bf16.msra.mxu0 %v1887
      %2040 = vmatprep.subr.bf16.mxu0 0
      %2041 = vmatpush1.bf16.msra.mxu0 %v1888
      %2042 = vmatprep.subr.bf16.mxu0 0
      %2043 = vmatpush1.bf16.msra.mxu0 %v1889
      %2044 = vmatprep.subr.bf16.mxu0 0
      %2045 = vmatpush1.bf16.msra.mxu0 %v1890
      %2046 = vmatprep.subr.bf16.mxu0 0
      %2047 = vmatpush1.bf16.msra.mxu0 %v1891
      %2048 = vmatprep.subr.bf16.mxu0 0
      %2049 = vmatpush1.bf16.msra.mxu0 %v1892
      %2050 = vmatprep.subr.bf16.mxu0 0
      %2051 = vmatpush1.bf16.msra.mxu0 %v1893
      %2052 = vmatprep.subr.bf16.mxu0 0
      %2053 = vmatpush1.bf16.msra.mxu0 %v1894
      %2054 = vmatprep.subr.bf16.mxu0 0
      %2055 = vmatpush1.bf16.msra.mxu0 %v1895
      %2056 = vmatprep.mubr.bf16.mxu0 %v1497
      %2057 = vmatmul.mubr.bf16.gmra.mrb[0].mxu0 %v1485
      %v2058 = vpop.f32.mrb[0].mxu0
      %v2059 = vadd.f32 %v1590, %v2058
      %v2060 = vpop.f32.mrb[0].mxu0
      %v2061 = vpop.f32.mrb[0].mxu0
      %v2062 = vadd.f32 %v1590, %v2061
      %v2063 = vpop.f32.mrb[0].mxu0
      %2064 = vmatprep.mubr.bf16.mxu0 %v1498
      %2065 = vmatmul.mubr.bf16.gmra.mrb[0].mxu0 %v1486
      %v2066 = vpop.f32.mrb[0].mxu0
      %v2067 = vadd.f32 %v1590, %v2066
      %v2068 = vpop.f32.mrb[0].mxu0
      %v2069 = vpop.f32.mrb[0].mxu0
      %v2070 = vadd.f32 %v1590, %v2069
      %v2071 = vpop.f32.mrb[0].mxu0
      %2072 = vmatprep.mubr.bf16.mxu0 %v1499
      %2073 = vmatmul.mubr.bf16.gmra.mrb[0].mxu0 %v1487
      %v2074 = vpop.f32.mrb[0].mxu0
      %v2075 = vadd.f32 %v1590, %v2074
      %v2076 = vpop.f32.mrb[0].mxu0
      %v2077 = vpop.f32.mrb[0].mxu0
      %v2078 = vadd.f32 %v1590, %v2077
      %v2079 = vpop.f32.mrb[0].mxu0
      %2080 = vmatprep.mubr.bf16.mxu0 %v1500
      %2081 = vmatmul.mubr.bf16.gmra.mrb[0].mxu0 %v1488
      %v2082 = vpop.f32.mrb[0].mxu0
      %v2083 = vadd.f32 %v1590, %v2082
      %v2084 = vpop.f32.mrb[0].mxu0
      %v2085 = vpop.f32.mrb[0].mxu0
      %v2086 = vadd.f32 %v1590, %v2085
      %v2087 = vpop.f32.mrb[0].mxu0
      %2088 = vdwg.mxu0
      %2089 = vmatprep.subr.bf16.mxu0 0
      %2090 = vmatpush1.bf16.msra.mxu0 %v1896
      %2091 = vmatprep.subr.bf16.mxu0 0
      %2092 = vmatpush1.bf16.msra.mxu0 %v1897
      %2093 = vmatprep.subr.bf16.mxu0 0
      %2094 = vmatpush1.bf16.msra.mxu0 %v1898
      %2095 = vmatprep.subr.bf16.mxu0 0
      %2096 = vmatpush1.bf16.msra.mxu0 %v1899
      %2097 = vmatprep.subr.bf16.mxu0 0
      %2098 = vmatpush1.bf16.msra.mxu0 %v1900
      %2099 = vmatprep.subr.bf16.mxu0 0
      %2100 = vmatpush1.bf16.msra.mxu0 %v1901
      %2101 = vmatprep.subr.bf16.mxu0 0
      %2102 = vmatpush1.bf16.msra.mxu0 %v1902
      %2103 = vmatprep.subr.bf16.mxu0 0
      %2104 = vmatpush1.bf16.msra.mxu0 %v1903
      %2105 = vmatprep.subr.bf16.mxu0 0
      %2106 = vmatpush1.bf16.msra.mxu0 %v1904
      %2107 = vmatprep.subr.bf16.mxu0 0
      %2108 = vmatpush1.bf16.msra.mxu0 %v1905
      %2109 = vmatprep.subr.bf16.mxu0 0
      %2110 = vmatpush1.bf16.msra.mxu0 %v1906
      %2111 = vmatprep.subr.bf16.mxu0 0
      %2112 = vmatpush1.bf16.msra.mxu0 %v1907
      %2113 = vmatprep.subr.bf16.mxu0 0
      %2114 = vmatpush1.bf16.msra.mxu0 %v1908
      %2115 = vmatprep.subr.bf16.mxu0 0
      %2116 = vmatpush1.bf16.msra.mxu0 %v1909
      %2117 = vmatprep.subr.bf16.mxu0 0
      %2118 = vmatpush1.bf16.msra.mxu0 %v1910
      %2119 = vmatprep.subr.bf16.mxu0 0
      %2120 = vmatpush1.bf16.msra.mxu0 %v1911
      %2121 = vmatprep.mubr.bf16.mxu0 %v1521
      %2122 = vmatmul.mubr.bf16.gmra.mrb[0].mxu0 %v1509
      %v2123 = vpop.f32.mrb[0].mxu0
      %v2124 = vadd.f32 %v2059, %v2123
      %v2125 = vpop.f32.mrb[0].mxu0
      %v2126 = vpop.f32.mrb[0].mxu0
      %v2127 = vadd.f32 %v2062, %v2126
      %v2128 = vpop.f32.mrb[0].mxu0
      %2129 = vmatprep.mubr.bf16.mxu0 %v1522
      %2130 = vmatmul.mubr.bf16.gmra.mrb[0].mxu0 %v1510
      %v2131 = vpop.f32.mrb[0].mxu0
      %v2132 = vadd.f32 %v2067, %v2131
      %v2133 = vpop.f32.mrb[0].mxu0
      %v2134 = vpop.f32.mrb[0].mxu0
      %v2135 = vadd.f32 %v2070, %v2134
      %v2136 = vpop.f32.mrb[0].mxu0
      %2137 = vmatprep.mubr.bf16.mxu0 %v1523
      %2138 = vmatmul.mubr.bf16.gmra.mrb[0].mxu0 %v1511
      %v2139 = vpop.f32.mrb[0].mxu0
      %v2140 = vadd.f32 %v2075, %v2139
      %v2141 = vpop.f32.mrb[0].mxu0
      %v2142 = vpop.f32.mrb[0].mxu0
      %v2143 = vadd.f32 %v2078, %v2142
      %v2144 = vpop.f32.mrb[0].mxu0
      %2145 = vmatprep.mubr.bf16.mxu0 %v1524
      %2146 = vmatmul.mubr.bf16.gmra.mrb[0].mxu0 %v1512
      %v2147 = vpop.f32.mrb[0].mxu0
      %v2148 = vadd.f32 %v2083, %v2147
      %v2149 = vpop.f32.mrb[0].mxu0
      %v2150 = vpop.f32.mrb[0].mxu0
      %v2151 = vadd.f32 %v2086, %v2150
      %v2152 = vpop.f32.mrb[0].mxu0
      %2153 = vdwg.mxu0
      %2154 = vmatprep.subr.bf16.mxu0 0
      %2155 = vmatpush1.bf16.msra.mxu0 %v1912
      %2156 = vmatprep.subr.bf16.mxu0 0
      %2157 = vmatpush1.bf16.msra.mxu0 %v1913
      %2158 = vmatprep.subr.bf16.mxu0 0
      %2159 = vmatpush1.bf16.msra.mxu0 %v1914
      %2160 = vmatprep.subr.bf16.mxu0 0
      %2161 = vmatpush1.bf16.msra.mxu0 %v1915
      %2162 = vmatprep.subr.bf16.mxu0 0
      %2163 = vmatpush1.bf16.msra.mxu0 %v1916
      %2164 = vmatprep.subr.bf16.mxu0 0
      %2165 = vmatpush1.bf16.msra.mxu0 %v1917
      %2166 = vmatprep.subr.bf16.mxu0 0
      %2167 = vmatpush1.bf16.msra.mxu0 %v1918
      %2168 = vmatprep.subr.bf16.mxu0 0
      %2169 = vmatpush1.bf16.msra.mxu0 %v1919
      %2170 = vmatprep.subr.bf16.mxu0 0
      %2171 = vmatpush1.bf16.msra.mxu0 %v1920
      %2172 = vmatprep.subr.bf16.mxu0 0
      %2173 = vmatpush1.bf16.msra.mxu0 %v1921
      %2174 = vmatprep.subr.bf16.mxu0 0
      %2175 = vmatpush1.bf16.msra.mxu0 %v1922
      %2176 = vmatprep.subr.bf16.mxu0 0
      %2177 = vmatpush1.bf16.msra.mxu0 %v1923
      %2178 = vmatprep.subr.bf16.mxu0 0
      %2179 = vmatpush1.bf16.msra.mxu0 %v1924
      %2180 = vmatprep.subr.bf16.mxu0 0
      %2181 = vmatpush1.bf16.msra.mxu0 %v1925
      %2182 = vmatprep.subr.bf16.mxu0 0
      %2183 = vmatpush1.bf16.msra.mxu0 %v1926
      %2184 = vmatprep.subr.bf16.mxu0 0
      %2185 = vmatpush1.bf16.msra.mxu0 %v1927
      %2186 = vmatprep.mubr.bf16.mxu0 %v1545
      %2187 = vmatmul.mubr.bf16.gmra.mrb[0].mxu0 %v1533
      %v2188 = vpop.f32.mrb[0].mxu0
      %v2189 = vadd.f32 %v2124, %v2188
      %v2190 = vpop.f32.mrb[0].mxu0
      %v2191 = vpop.f32.mrb[0].mxu0
      %v2192 = vadd.f32 %v2127, %v2191
      %v2193 = vpop.f32.mrb[0].mxu0
      %2194 = vmatprep.mubr.bf16.mxu0 %v1546
      %2195 = vmatmul.mubr.bf16.gmra.mrb[0].mxu0 %v1534
      %v2196 = vpop.f32.mrb[0].mxu0
      %v2197 = vadd.f32 %v2132, %v2196
      %v2198 = vpop.f32.mrb[0].mxu0
      %v2199 = vpop.f32.mrb[0].mxu0
      %v2200 = vadd.f32 %v2135, %v2199
      %v2201 = vpop.f32.mrb[0].mxu0
      %2202 = vmatprep.mubr.bf16.mxu0 %v1547
      %2203 = vmatmul.mubr.bf16.gmra.mrb[0].mxu0 %v1535
      %v2204 = vpop.f32.mrb[0].mxu0
      %v2205 = vadd.f32 %v2140, %v2204
      %v2206 = vpop.f32.mrb[0].mxu0
      %v2207 = vpop.f32.mrb[0].mxu0
      %v2208 = vadd.f32 %v2143, %v2207
      %v2209 = vpop.f32.mrb[0].mxu0
      %2210 = vmatprep.mubr.bf16.mxu0 %v1548
      %2211 = vmatmul.mubr.bf16.gmra.mrb[0].mxu0 %v1536
      %v2212 = vpop.f32.mrb[0].mxu0
      %v2213 = vadd.f32 %v2148, %v2212
      %v2214 = vpop.f32.mrb[0].mxu0
      %v2215 = vpop.f32.mrb[0].mxu0
      %v2216 = vadd.f32 %v2151, %v2215
      %v2217 = vpop.f32.mrb[0].mxu0
      %2218 = vdwg.mxu0
      %2219 = vmatprep.subr.bf16.mxu0 0
      %2220 = vmatpush1.bf16.msra.mxu0 %v1928
      %2221 = vmatprep.subr.bf16.mxu0 0
      %2222 = vmatpush1.bf16.msra.mxu0 %v1929
      %2223 = vmatprep.subr.bf16.mxu0 0
      %2224 = vmatpush1.bf16.msra.mxu0 %v1930
      %2225 = vmatprep.subr.bf16.mxu0 0
      %2226 = vmatpush1.bf16.msra.mxu0 %v1931
      %2227 = vmatprep.subr.bf16.mxu0 0
      %2228 = vmatpush1.bf16.msra.mxu0 %v1932
      %2229 = vmatprep.subr.bf16.mxu0 0
      %2230 = vmatpush1.bf16.msra.mxu0 %v1933
      %2231 = vmatprep.subr.bf16.mxu0 0
      %2232 = vmatpush1.bf16.msra.mxu0 %v1934
      %2233 = vmatprep.subr.bf16.mxu0 0
      %2234 = vmatpush1.bf16.msra.mxu0 %v1935
      %2235 = vmatprep.subr.bf16.mxu0 0
      %2236 = vmatpush1.bf16.msra.mxu0 %v1936
      %2237 = vmatprep.subr.bf16.mxu0 0
      %2238 = vmatpush1.bf16.msra.mxu0 %v1937
      %2239 = vmatprep.subr.bf16.mxu0 0
      %2240 = vmatpush1.bf16.msra.mxu0 %v1938
      %2241 = vmatprep.subr.bf16.mxu0 0
      %2242 = vmatpush1.bf16.msra.mxu0 %v1939
      %2243 = vmatprep.subr.bf16.mxu0 0
      %2244 = vmatpush1.bf16.msra.mxu0 %v1940
      %2245 = vmatprep.subr.bf16.mxu0 0
      %2246 = vmatpush1.bf16.msra.mxu0 %v1941
      %2247 = vmatprep.subr.bf16.mxu0 0
      %2248 = vmatpush1.bf16.msra.mxu0 %v1942
      %2249 = vmatprep.subr.bf16.mxu0 0
      %2250 = vmatpush1.bf16.msra.mxu0 %v1943
      %2251 = vmatprep.mubr.bf16.mxu0 %v1570
      %2252 = vmatmul.mubr.bf16.gmra.mrb[0].mxu0 %v1558
      %v2253 = vpop.f32.mrb[0].mxu0
      %v2254 = vadd.f32 %v2189, %v2253
      %v2255 = vpop.f32.mrb[0].mxu0
      %v2256 = vpop.f32.mrb[0].mxu0
      %v2257 = vadd.f32 %v2192, %v2256
      %v2258 = vpop.f32.mrb[0].mxu0
      %2259 = vmatprep.mubr.bf16.mxu0 %v1571
      %2260 = vmatmul.mubr.bf16.gmra.mrb[0].mxu0 %v1559
      %v2261 = vpop.f32.mrb[0].mxu0
      %v2262 = vadd.f32 %v2197, %v2261
      %v2263 = vpop.f32.mrb[0].mxu0
      %v2264 = vpop.f32.mrb[0].mxu0
      %v2265 = vadd.f32 %v2200, %v2264
      %v2266 = vpop.f32.mrb[0].mxu0
      %2267 = vmatprep.mubr.bf16.mxu0 %v1572
      %2268 = vmatmul.mubr.bf16.gmra.mrb[0].mxu0 %v1560
      %v2269 = vpop.f32.mrb[0].mxu0
      %v2270 = vadd.f32 %v2205, %v2269
      %v2271 = vpop.f32.mrb[0].mxu0
      %v2272 = vpop.f32.mrb[0].mxu0
      %v2273 = vadd.f32 %v2208, %v2272
      %v2274 = vpop.f32.mrb[0].mxu0
      %2275 = vmatprep.mubr.bf16.mxu0 %v1573
      %2276 = vmatmul.mubr.bf16.gmra.mrb[0].mxu0 %v1561
      %v2277 = vpop.f32.mrb[0].mxu0
      %v2278 = vadd.f32 %v2213, %v2277
      %v2279 = vpop.f32.mrb[0].mxu0
      %v2280 = vpop.f32.mrb[0].mxu0
      %v2281 = vadd.f32 %v2216, %v2280
      %v2282 = vpop.f32.mrb[0].mxu0
      %2283 = vdwg.mxu0
      %2284 = vmatprep.subr.bf16.mxu0 0
      %2285 = vmatpush1.bf16.msra.mxu0 %v1944
      %2286 = vmatprep.subr.bf16.mxu0 0
      %2287 = vmatpush1.bf16.msra.mxu0 %v1945
      %2288 = vmatprep.subr.bf16.mxu0 0
      %2289 = vmatpush1.bf16.msra.mxu0 %v1946
      %2290 = vmatprep.subr.bf16.mxu0 0
      %2291 = vmatpush1.bf16.msra.mxu0 %v1947
      %2292 = vmatprep.subr.bf16.mxu0 0
      %2293 = vmatpush1.bf16.msra.mxu0 %v1948
      %2294 = vmatprep.subr.bf16.mxu0 0
      %2295 = vmatpush1.bf16.msra.mxu0 %v1949
      %2296 = vmatprep.subr.bf16.mxu0 0
      %2297 = vmatpush1.bf16.msra.mxu0 %v1950
      %2298 = vmatprep.subr.bf16.mxu0 0
      %2299 = vmatpush1.bf16.msra.mxu0 %v1951
      %2300 = vmatprep.subr.bf16.mxu0 0
      %2301 = vmatpush1.bf16.msra.mxu0 0
      %2302 = vmatprep.subr.bf16.mxu0 0
      %2303 = vmatpush1.bf16.msra.mxu0 0
      %2304 = vmatprep.subr.bf16.mxu0 0
      %2305 = vmatpush1.bf16.msra.mxu0 0
      %2306 = vmatprep.subr.bf16.mxu0 0
      %2307 = vmatpush1.bf16.msra.mxu0 0
      %2308 = vmatprep.subr.bf16.mxu0 0
      %2309 = vmatpush1.bf16.msra.mxu0 0
      %2310 = vmatprep.subr.bf16.mxu0 0
      %2311 = vmatpush1.bf16.msra.mxu0 0
      %2312 = vmatprep.subr.bf16.mxu0 0
      %2313 = vmatpush1.bf16.msra.mxu0 0
      %2314 = vmatprep.subr.bf16.mxu0 0
      %2315 = vmatpush1.bf16.msra.mxu0 0
      %2316 = vmatprep.mubr.bf16.mxu0 0
      %2317 = vmatmul.mubr.bf16.gmra.mrb[0].mxu0 %v1582
      %v2318 = vpop.f32.mrb[0].mxu0
      %v2319 = vadd.f32 %v2254, %v2318
      %v2320 = vpop.f32.mrb[0].mxu0
      %v2321 = vpop.f32.mrb[0].mxu0
      %v2322 = vadd.f32 %v2257, %v2321
      %v2323 = vpop.f32.mrb[0].mxu0
      %2324 = vmatprep.mubr.bf16.mxu0 0
      %2325 = vmatmul.mubr.bf16.gmra.mrb[0].mxu0 %v1583
      %v2326 = vpop.f32.mrb[0].mxu0
      %v2327 = vadd.f32 %v2262, %v2326
      %v2328 = vpop.f32.mrb[0].mxu0
      %v2329 = vpop.f32.mrb[0].mxu0
      %v2330 = vadd.f32 %v2265, %v2329
      %v2331 = vpop.f32.mrb[0].mxu0
      %2332 = vmatprep.mubr.bf16.mxu0 0
      %2333 = vmatmul.mubr.bf16.gmra.mrb[0].mxu0 %v1584
      %v2334 = vpop.f32.mrb[0].mxu0
      %v2335 = vadd.f32 %v2270, %v2334
      %v2336 = vpop.f32.mrb[0].mxu0
      %v2337 = vpop.f32.mrb[0].mxu0
      %v2338 = vadd.f32 %v2273, %v2337
      %v2339 = vpop.f32.mrb[0].mxu0
      %2340 = vmatprep.mubr.bf16.mxu0 0
      %2341 = vmatmul.mubr.bf16.gmra.mrb[0].mxu0 %v1585
      %v2342 = vpop.f32.mrb[0].mxu0
      %v2343 = vadd.f32 %v2278, %v2342
      %v2344 = vpop.f32.mrb[0].mxu0
      %v2345 = vpop.f32.mrb[0].mxu0
      %v2346 = vadd.f32 %v2281, %v2345
      %v2347 = vpop.f32.mrb[0].mxu0
      %2348 = vdwg.mxu0
      %v2349 = vmax.f32 %v2319, 0.0
      %v2350 = vmax.f32 %v2322, 0.0
      %v2351 = vmax.f32 %v2327, 0.0
      %v2352 = vmax.f32 %v2330, 0.0
      %v2353 = vmax.f32 %v2335, 0.0
      %v2354 = vmax.f32 %v2338, 0.0
      %v2355 = vmax.f32 %v2343, 0.0
      %v2356 = vmax.f32 %v2346, 0.0
      %s2357 = scalar_lea.vmem [#allocation3], 16
      %2358 = vst [vmem:[%s2357 + $0x1] sm:$0xff] %v2349
      %2359 = vst [vmem:[%s2357 + $0x11] sm:$0xff] %v2350
      %2360 = vst [vmem:[%s2357 + $0x21] sm:$0xff] %v2351
      %2361 = vst [vmem:[%s2357 + $0x31] sm:$0xff] %v2352
      %2362 = vst [vmem:[%s2357 + $0x41] sm:$0xff] %v2353
      %2363 = vst [vmem:[%s2357 + $0x51] sm:$0xff] %v2354
      %2364 = vst [vmem:[%s2357 + $0x61] sm:$0xff] %v2355
      %2365 = vst [vmem:[%s2357 + $0x71] sm:$0xff] %v2356
      %v2366 = vld [vmem:[%s3] sm:$0xf]
      %v2367 = vld [vmem:[%s3 + $0x4] sm:$0xf]
      %v2368 = vld [vmem:[%s3 + $0x8] sm:$0xf]
      %v2369 = vld [vmem:[%s3 + $0xc] sm:$0xf]
      %v2370 = vld [vmem:[%s3 + $0x10] sm:$0xf]
      %v2371 = vld [vmem:[%s3 + $0x14] sm:$0xf]
      %v2372 = vld [vmem:[%s3 + $0x18] sm:$0xf]
      %v2373 = vld [vmem:[%s3 + $0x1c] sm:$0xf]
      %v2374 = vld [vmem:[%s3 + $0x20] sm:$0xf]
      %v2375 = vld [vmem:[%s3 + $0x24] sm:$0xf]
      %v2376 = vld [vmem:[%s3 + $0x28] sm:$0xf]
      %v2377 = vld [vmem:[%s3 + $0x2c] sm:$0xf]
      %v2378 = vld [vmem:[%s3 + $0x30] sm:$0xf]
      %v2379 = vld [vmem:[%s3 + $0x34] sm:$0xf]
      %v2380 = vld [vmem:[%s3 + $0x38] sm:$0xf]
      %v2381 = vld [vmem:[%s3 + $0x3c] sm:$0xf]
      %v2382 = vld [vmem:[%s3 + $0x40] sm:$0xf]
      %v2383 = vld [vmem:[%s3 + $0x44] sm:$0xf]
      %v2384 = vld [vmem:[%s3 + $0x48] sm:$0xf]
      %v2385 = vld [vmem:[%s3 + $0x4c] sm:$0xf]
      %v2386 = vld [vmem:[%s3 + $0x50] sm:$0xf]
      %v2387 = vld [vmem:[%s3 + $0x54] sm:$0xf]
      %v2388 = vld [vmem:[%s3 + $0x58] sm:$0xf]
      %v2389 = vld [vmem:[%s3 + $0x5c] sm:$0xf]
      %v2390 = vld [vmem:[%s3 + $0x60] sm:$0xf]
      %v2391 = vld [vmem:[%s3 + $0x64] sm:$0xf]
      %v2392 = vld [vmem:[%s3 + $0x68] sm:$0xf]
      %v2393 = vld [vmem:[%s3 + $0x6c] sm:$0xf]
      %v2394 = vld [vmem:[%s3 + $0x70] sm:$0xf]
      %v2395 = vld [vmem:[%s3 + $0x74] sm:$0xf]
      %v2396 = vld [vmem:[%s3 + $0x78] sm:$0xf]
      %v2397 = vld [vmem:[%s3 + $0x7c] sm:$0xf]
      %v2398 = vld [vmem:[%s3 + $0x80] sm:$0xf]
      %v2399 = vld [vmem:[%s3 + $0x84] sm:$0xf]
      %v2400 = vld [vmem:[%s3 + $0x88] sm:$0xf]
      %v2401 = vld [vmem:[%s3 + $0x8c] sm:$0xf]
      %v2402 = vld [vmem:[%s3 + $0x90] sm:$0xf]
      %v2403 = vld [vmem:[%s3 + $0x94] sm:$0xf]
      %v2404 = vld [vmem:[%s3 + $0x98] sm:$0xf]
      %v2405 = vld [vmem:[%s3 + $0x9c] sm:$0xf]
      %v2406 = vld [vmem:[%s3 + $0xa0] sm:$0xf]
      %v2407 = vld [vmem:[%s3 + $0xa4] sm:$0xf]
      %v2408 = vld [vmem:[%s3 + $0xa8] sm:$0xf]
      %v2409 = vld [vmem:[%s3 + $0xac] sm:$0xf]
      %v2410 = vld [vmem:[%s3 + $0xb0] sm:$0xf]
      %v2411 = vld [vmem:[%s3 + $0xb4] sm:$0xf]
      %v2412 = vld [vmem:[%s3 + $0xb8] sm:$0xf]
      %v2413 = vld [vmem:[%s3 + $0xbc] sm:$0xf]
      %v2414 = vld [vmem:[%s3 + $0xc0] sm:$0xf]
      %v2415 = vld [vmem:[%s3 + $0xc4] sm:$0xf]
      %v2416 = vld [vmem:[%s3 + $0xc8] sm:$0xf]
      %v2417 = vld [vmem:[%s3 + $0xcc] sm:$0xf]
      %v2418 = vld [vmem:[%s3 + $0xd0] sm:$0xf]
      %v2419 = vld [vmem:[%s3 + $0xd4] sm:$0xf]
      %v2420 = vld [vmem:[%s3 + $0xd8] sm:$0xf]
      %v2421 = vld [vmem:[%s3 + $0xdc] sm:$0xf]
      %v2422 = vld [vmem:[%s3 + $0xe0] sm:$0xf]
      %v2423 = vld [vmem:[%s3 + $0xe4] sm:$0xf]
      %v2424 = vld [vmem:[%s3 + $0xe8] sm:$0xf]
      %v2425 = vld [vmem:[%s3 + $0xec] sm:$0xf]
      %v2426 = vld [vmem:[%s3 + $0xf0] sm:$0xf]
      %v2427 = vld [vmem:[%s3 + $0xf4] sm:$0xf]
      %v2428 = vld [vmem:[%s3 + $0xf8] sm:$0xf]
      %v2429 = vld [vmem:[%s3 + $0xfc] sm:$0xf]
      %v2430 = vld [vmem:[%s3 + $0x100] sm:$0xf]
      %v2431 = vld [vmem:[%s3 + $0x104] sm:$0xf]
      %v2432 = vld [vmem:[%s3 + $0x108] sm:$0xf]
      %v2433 = vld [vmem:[%s3 + $0x10c] sm:$0xf]
      %v2434 = vld [vmem:[%s3 + $0x110] sm:$0xf]
      %v2435 = vld [vmem:[%s3 + $0x114] sm:$0xf]
      %v2436 = vld [vmem:[%s3 + $0x118] sm:$0xf]
      %v2437 = vld [vmem:[%s3 + $0x11c] sm:$0xf]
      %v2438 = vld [vmem:[%s3 + $0x120] sm:$0xf]
      %v2439 = vld [vmem:[%s3 + $0x124] sm:$0xf]
      %v2440 = vld [vmem:[%s3 + $0x128] sm:$0xf]
      %v2441 = vld [vmem:[%s3 + $0x12c] sm:$0xf]
      %v2442 = vld [vmem:[%s3 + $0x130] sm:$0xf]
      %v2443 = vld [vmem:[%s3 + $0x134] sm:$0xf]
      %v2444 = vld [vmem:[%s3 + $0x138] sm:$0xf]
      %v2445 = vld [vmem:[%s3 + $0x13c] sm:$0xf]
      %v2446 = vld [vmem:[%s3 + $0x140] sm:$0xf]
      %v2447 = vld [vmem:[%s3 + $0x144] sm:$0xf]
      %v2448 = vld [vmem:[%s3 + $0x148] sm:$0xf]
      %v2449 = vld [vmem:[%s3 + $0x14c] sm:$0xf]
      %v2450 = vld [vmem:[%s3 + $0x150] sm:$0xf]
      %v2451 = vld [vmem:[%s3 + $0x154] sm:$0xf]
      %v2452 = vld [vmem:[%s3 + $0x158] sm:$0xf]
      %v2453 = vld [vmem:[%s3 + $0x15c] sm:$0xf]
      %v2454 = vld [vmem:[%s3 + $0x160] sm:$0xf]
      %v2455 = vld [vmem:[%s3 + $0x164] sm:$0xf]
      %v2456 = vld [vmem:[%s3 + $0x168] sm:$0xf]
      %v2457 = vld [vmem:[%s3 + $0x16c] sm:$0xf]
      %v2458 = vld [vmem:[%s3 + $0x170] sm:$0xf]
      %v2459 = vld [vmem:[%s3 + $0x174] sm:$0xf]
      %v2460 = vld [vmem:[%s3 + $0x178] sm:$0xf]
      %v2461 = vld [vmem:[%s3 + $0x17c] sm:$0xf]
      %v2462 = vld [vmem:[%s3 + $0x180] sm:$0xf]
      %v2463 = vld [vmem:[%s3 + $0x184] sm:$0xf]
      %v2464 = vld [vmem:[%s3 + $0x188] sm:$0xf]
      %v2465 = vld [vmem:[%s3 + $0x18c] sm:$0xf]
      %v2466 = vld [vmem:[%s3 + $0x190] sm:$0xf]
      %v2467 = vld [vmem:[%s3 + $0x194] sm:$0xf]
      %v2468 = vld [vmem:[%s3 + $0x198] sm:$0xf]
      %v2469 = vld [vmem:[%s3 + $0x19c] sm:$0xf]
      %v2470 = vld [vmem:[%s3 + $0x1a0] sm:$0xf]
      %v2471 = vld [vmem:[%s3 + $0x1a4] sm:$0xf]
      %v2472 = vld [vmem:[%s3 + $0x1a8] sm:$0xf]
      %v2473 = vld [vmem:[%s3 + $0x1ac] sm:$0xf]
      %v2474 = vld [vmem:[%s3 + $0x1b0] sm:$0xf]
      %v2475 = vld [vmem:[%s3 + $0x1b4] sm:$0xf]
      %v2476 = vld [vmem:[%s3 + $0x1b8] sm:$0xf]
      %v2477 = vld [vmem:[%s3 + $0x1bc] sm:$0xf]
      %v2478 = vld [vmem:[%s3 + $0x1c0] sm:$0xf]
      %v2479 = vld [vmem:[%s3 + $0x1c4] sm:$0xf]
      %v2480 = vld [vmem:[%s3 + $0x1c8] sm:$0xf]
      %v2481 = vld [vmem:[%s3 + $0x1cc] sm:$0xf]
      %v2482 = vld [vmem:[%s3 + $0x1d0] sm:$0xf]
      %v2483 = vld [vmem:[%s3 + $0x1d4] sm:$0xf]
      %v2484 = vld [vmem:[%s3 + $0x1d8] sm:$0xf]
      %v2485 = vld [vmem:[%s3 + $0x1dc] sm:$0xf]
      %v2486 = vld [vmem:[%s3 + $0x1e0] sm:$0xf]
      %v2487 = vld [vmem:[%s3 + $0x1e4] sm:$0xf]
      %v2488 = vld [vmem:[%s3 + $0x1e8] sm:$0xf]
      %v2489 = vld [vmem:[%s3 + $0x1ec] sm:$0xf]
      %v2490 = vld [vmem:[%s3 + $0x1f0] sm:$0xf]
      %v2491 = vld [vmem:[%s3 + $0x1f4] sm:$0xf]
      %v2492 = vld [vmem:[%s3 + $0x1f8] sm:$0xf]
      %v2493 = vld [vmem:[%s3 + $0x1fc] sm:$0xf]
      %v2494 = vld [vmem:[%s3 + $0x200] sm:$0xf]
      %v2495 = vld [vmem:[%s3 + $0x204] sm:$0xf]
      %v2496 = vld [vmem:[%s3 + $0x208] sm:$0xf]
      %v2497 = vld [vmem:[%s3 + $0x20c] sm:$0xf]
      %v2498 = vld [vmem:[%s3 + $0x210] sm:$0xf]
      %v2499 = vld [vmem:[%s3 + $0x214] sm:$0xf]
      %v2500 = vld [vmem:[%s3 + $0x218] sm:$0xf]
      %v2501 = vld [vmem:[%s3 + $0x21c] sm:$0xf]
      %v2502 = vld [vmem:[%s3 + $0x220] sm:$0xf]
      %v2503 = vld [vmem:[%s3 + $0x224] sm:$0xf]
      %v2504 = vld [vmem:[%s3 + $0x228] sm:$0xf]
      %v2505 = vld [vmem:[%s3 + $0x22c] sm:$0xf]
      %v2506 = vld [vmem:[%s3 + $0x230] sm:$0xf]
      %v2507 = vld [vmem:[%s3 + $0x234] sm:$0xf]
      %v2508 = vld [vmem:[%s3 + $0x238] sm:$0xf]
      %v2509 = vld [vmem:[%s3 + $0x23c] sm:$0xf]
      %v2510 = vld [vmem:[%s4] sm:$0x1]
      %v2511 = vld [vmem:[#allocation3] sm:$0xff]
      %v2512 = vld [vmem:[#allocation3 + $0x10] sm:$0xff]
      %v2513 = vld [vmem:[#allocation3 + $0x20] sm:$0xff]
      %v2514 = vld [vmem:[#allocation3 + $0x30] sm:$0xff]
      %v2515 = vld [vmem:[#allocation3 + $0x40] sm:$0xff]
      %v2516 = vld [vmem:[#allocation3 + $0x50] sm:$0xff]
      %v2517 = vld [vmem:[#allocation3 + $0x60] sm:$0xff]
      %v2518 = vld [vmem:[#allocation3 + $0x70] sm:$0xff]
      %v2519 = vpack.c.bf16 %v2512, %v2511
      %v2520 = vpack.c.bf16 %v2514, %v2513
      %v2521 = vpack.c.bf16 %v2516, %v2515
      %v2522 = vpack.c.bf16 %v2518, %v2517
      %v2523 = vld [vmem:[#allocation3 + $0x1] sm:$0xff]
      %v2524 = vld [vmem:[#allocation3 + $0x11] sm:$0xff]
      %v2525 = vld [vmem:[#allocation3 + $0x21] sm:$0xff]
      %v2526 = vld [vmem:[#allocation3 + $0x31] sm:$0xff]
      %v2527 = vld [vmem:[#allocation3 + $0x41] sm:$0xff]
      %v2528 = vld [vmem:[#allocation3 + $0x51] sm:$0xff]
      %v2529 = vld [vmem:[#allocation3 + $0x61] sm:$0xff]
      %v2530 = vld [vmem:[#allocation3 + $0x71] sm:$0xff]
      %v2531 = vpack.c.bf16 %v2524, %v2523
      %v2532 = vpack.c.bf16 %v2526, %v2525
      %v2533 = vpack.c.bf16 %v2528, %v2527
      %v2534 = vpack.c.bf16 %v2530, %v2529
      %v2535 = vld [vmem:[#allocation3 + $0x2] sm:$0xff]
      %v2536 = vld [vmem:[#allocation3 + $0x12] sm:$0xff]
      %v2537 = vld [vmem:[#allocation3 + $0x22] sm:$0xff]
      %v2538 = vld [vmem:[#allocation3 + $0x32] sm:$0xff]
      %v2539 = vld [vmem:[#allocation3 + $0x42] sm:$0xff]
      %v2540 = vld [vmem:[#allocation3 + $0x52] sm:$0xff]
      %v2541 = vld [vmem:[#allocation3 + $0x62] sm:$0xff]
      %v2542 = vld [vmem:[#allocation3 + $0x72] sm:$0xff]
      %v2543 = vpack.c.bf16 %v2536, %v2535
      %v2544 = vpack.c.bf16 %v2538, %v2537
      %v2545 = vpack.c.bf16 %v2540, %v2539
      %v2546 = vpack.c.bf16 %v2542, %v2541
      %v2547 = vld [vmem:[%s2357] sm:$0xff]
      %v2548 = vld [vmem:[%s2357 + $0x10] sm:$0xff]
      %v2549 = vld [vmem:[%s2357 + $0x20] sm:$0xff]
      %v2550 = vld [vmem:[%s2357 + $0x30] sm:$0xff]
      %v2551 = vld [vmem:[%s2357 + $0x40] sm:$0xff]
      %v2552 = vld [vmem:[%s2357 + $0x50] sm:$0xff]
      %v2553 = vld [vmem:[%s2357 + $0x60] sm:$0xff]
      %v2554 = vld [vmem:[%s2357 + $0x70] sm:$0xff]
      %v2555 = vpack.c.bf16 %v2548, %v2547
      %v2556 = vpack.c.bf16 %v2550, %v2549
      %v2557 = vpack.c.bf16 %v2552, %v2551
      %v2558 = vpack.c.bf16 %v2554, %v2553
      %v2559 = vld [vmem:[%s2357 + $0x1] sm:$0xff]
      %v2560 = vld [vmem:[%s2357 + $0x11] sm:$0xff]
      %v2561 = vld [vmem:[%s2357 + $0x21] sm:$0xff]
      %v2562 = vld [vmem:[%s2357 + $0x31] sm:$0xff]
      %v2563 = vld [vmem:[%s2357 + $0x41] sm:$0xff]
      %v2564 = vld [vmem:[%s2357 + $0x51] sm:$0xff]
      %v2565 = vld [vmem:[%s2357 + $0x61] sm:$0xff]
      %v2566 = vld [vmem:[%s2357 + $0x71] sm:$0xff]
      %v2567 = vpack.c.bf16 %v2560, %v2559
      %v2568 = vpack.c.bf16 %v2562, %v2561
      %v2569 = vpack.c.bf16 %v2564, %v2563
      %v2570 = vpack.c.bf16 %v2566, %v2565
      %v2571 = vld [vmem:[%s2357 + $0x2] sm:$0xff]
      %v2572 = vld [vmem:[%s2357 + $0x12] sm:$0xff]
      %v2573 = vld [vmem:[%s2357 + $0x22] sm:$0xff]
      %v2574 = vld [vmem:[%s2357 + $0x32] sm:$0xff]
      %v2575 = vld [vmem:[%s2357 + $0x42] sm:$0xff]
      %v2576 = vld [vmem:[%s2357 + $0x52] sm:$0xff]
      %v2577 = vld [vmem:[%s2357 + $0x62] sm:$0xff]
      %v2578 = vld [vmem:[%s2357 + $0x72] sm:$0xff]
      %v2579 = vpack.c.bf16 %v2572, %v2571
      %v2580 = vpack.c.bf16 %v2574, %v2573
      %v2581 = vpack.c.bf16 %v2576, %v2575
      %v2582 = vpack.c.bf16 %v2578, %v2577
      %s2583 = scalar_lea.vmem [#allocation3], 32
      %v2584 = vld [vmem:[%s2583] sm:$0xff]
      %v2585 = vld [vmem:[%s2583 + $0x10] sm:$0xff]
      %v2586 = vld [vmem:[%s2583 + $0x20] sm:$0xff]
      %v2587 = vld [vmem:[%s2583 + $0x30] sm:$0xff]
      %v2588 = vld [vmem:[%s2583 + $0x40] sm:$0xff]
      %v2589 = vld [vmem:[%s2583 + $0x50] sm:$0xff]
      %v2590 = vld [vmem:[%s2583 + $0x60] sm:$0xff]
      %v2591 = vld [vmem:[%s2583 + $0x70] sm:$0xff]
      %v2592 = vpack.c.bf16 %v2585, %v2584
      %v2593 = vpack.c.bf16 %v2587, %v2586
      %v2594 = vpack.c.bf16 %v2589, %v2588
      %v2595 = vpack.c.bf16 %v2591, %v2590
      %v2596 = vld [vmem:[%s2583 + $0x1] sm:$0xff]
      %v2597 = vld [vmem:[%s2583 + $0x11] sm:$0xff]
      %v2598 = vld [vmem:[%s2583 + $0x21] sm:$0xff]
      %v2599 = vld [vmem:[%s2583 + $0x31] sm:$0xff]
      %v2600 = vld [vmem:[%s2583 + $0x41] sm:$0xff]
      %v2601 = vld [vmem:[%s2583 + $0x51] sm:$0xff]
      %v2602 = vld [vmem:[%s2583 + $0x61] sm:$0xff]
      %v2603 = vld [vmem:[%s2583 + $0x71] sm:$0xff]
      %v2604 = vpack.c.bf16 %v2597, %v2596
      %v2605 = vpack.c.bf16 %v2599, %v2598
      %v2606 = vpack.c.bf16 %v2601, %v2600
      %v2607 = vpack.c.bf16 %v2603, %v2602
      %v2608 = vld [vmem:[%s2583 + $0x2] sm:$0xff]
      %v2609 = vld [vmem:[%s2583 + $0x12] sm:$0xff]
      %v2610 = vld [vmem:[%s2583 + $0x22] sm:$0xff]
      %v2611 = vld [vmem:[%s2583 + $0x32] sm:$0xff]
      %v2612 = vld [vmem:[%s2583 + $0x42] sm:$0xff]
      %v2613 = vld [vmem:[%s2583 + $0x52] sm:$0xff]
      %v2614 = vld [vmem:[%s2583 + $0x62] sm:$0xff]
      %v2615 = vld [vmem:[%s2583 + $0x72] sm:$0xff]
      %v2616 = vpack.c.bf16 %v2609, %v2608
      %v2617 = vpack.c.bf16 %v2611, %v2610
      %v2618 = vpack.c.bf16 %v2613, %v2612
      %v2619 = vpack.c.bf16 %v2615, %v2614
      %v2621 = vlaneseq
      %v2622 = vshrl.u32 %v2621, 7
      %v2623 = vsub.s32 0, %v2622
      %v2624 = vrot.slane %v2510, %v2623
      %v2770 = vunpack.c.l.b16 %v2366
      %v2771 = vunpack.c.l.b16 %v2367
      %v2772 = vunpack.c.l.b16 %v2368
      %v2773 = vunpack.c.l.b16 %v2369
      %v2774 = vunpack.c.l.b16 %v2370
      %v2775 = vunpack.c.l.b16 %v2371
      %v2776 = vunpack.c.l.b16 %v2372
      %v2777 = vunpack.c.l.b16 %v2373
      %v2778 = vunpack.c.l.b16 %v2374
      %v2779 = vunpack.c.l.b16 %v2375
      %v2780 = vunpack.c.l.b16 %v2376
      %v2781 = vunpack.c.l.b16 %v2377
      %v2782 = vunpack.c.l.b16 %v2378
      %v2783 = vunpack.c.l.b16 %v2379
      %v2784 = vunpack.c.l.b16 %v2380
      %v2785 = vunpack.c.l.b16 %v2381
      %v2786 = vunpack.c.l.b16 %v2382
      %v2787 = vunpack.c.l.b16 %v2383
      %v2788 = vunpack.c.l.b16 %v2384
      %v2789 = vunpack.c.l.b16 %v2385
      %v2790 = vunpack.c.l.b16 %v2386
      %v2791 = vunpack.c.l.b16 %v2387
      %v2792 = vunpack.c.l.b16 %v2388
      %v2793 = vunpack.c.l.b16 %v2389
      %v2794 = vunpack.c.l.b16 %v2390
      %v2795 = vunpack.c.l.b16 %v2391
      %v2796 = vunpack.c.l.b16 %v2392
      %v2797 = vunpack.c.l.b16 %v2393
      %v2798 = vunpack.c.l.b16 %v2394
      %v2799 = vunpack.c.l.b16 %v2395
      %v2800 = vunpack.c.l.b16 %v2396
      %v2801 = vunpack.c.l.b16 %v2397
      %v2802 = vunpack.c.l.b16 %v2398
      %v2803 = vunpack.c.l.b16 %v2399
      %v2804 = vunpack.c.l.b16 %v2400
      %v2805 = vunpack.c.l.b16 %v2401
      %v2806 = vunpack.c.l.b16 %v2402
      %v2807 = vunpack.c.l.b16 %v2403
      %v2808 = vunpack.c.l.b16 %v2404
      %v2809 = vunpack.c.l.b16 %v2405
      %v2810 = vunpack.c.l.b16 %v2406
      %v2811 = vunpack.c.l.b16 %v2407
      %v2812 = vunpack.c.l.b16 %v2408
      %v2813 = vunpack.c.l.b16 %v2409
      %v2814 = vunpack.c.l.b16 %v2410
      %v2815 = vunpack.c.l.b16 %v2411
      %v2816 = vunpack.c.l.b16 %v2412
      %v2817 = vunpack.c.l.b16 %v2413
      %v2818 = vunpack.c.l.b16 %v2414
      %v2819 = vunpack.c.l.b16 %v2415
      %v2820 = vunpack.c.l.b16 %v2416
      %v2821 = vunpack.c.l.b16 %v2417
      %v2822 = vunpack.c.l.b16 %v2418
      %v2823 = vunpack.c.l.b16 %v2419
      %v2824 = vunpack.c.l.b16 %v2420
      %v2825 = vunpack.c.l.b16 %v2421
      %v2826 = vunpack.c.l.b16 %v2422
      %v2827 = vunpack.c.l.b16 %v2423
      %v2828 = vunpack.c.l.b16 %v2424
      %v2829 = vunpack.c.l.b16 %v2425
      %v2830 = vunpack.c.l.b16 %v2426
      %v2831 = vunpack.c.l.b16 %v2427
      %v2832 = vunpack.c.l.b16 %v2428
      %v2833 = vunpack.c.l.b16 %v2429
      %v2834 = vunpack.c.l.b16 %v2430
      %v2835 = vunpack.c.l.b16 %v2431
      %v2836 = vunpack.c.l.b16 %v2432
      %v2837 = vunpack.c.l.b16 %v2433
      %v2838 = vunpack.c.l.b16 %v2434
      %v2839 = vunpack.c.l.b16 %v2435
      %v2840 = vunpack.c.l.b16 %v2436
      %v2841 = vunpack.c.l.b16 %v2437
      %v2842 = vunpack.c.l.b16 %v2438
      %v2843 = vunpack.c.l.b16 %v2439
      %v2844 = vunpack.c.l.b16 %v2440
      %v2845 = vunpack.c.l.b16 %v2441
      %v2846 = vunpack.c.l.b16 %v2442
      %v2847 = vunpack.c.l.b16 %v2443
      %v2848 = vunpack.c.l.b16 %v2444
      %v2849 = vunpack.c.l.b16 %v2445
      %v2850 = vunpack.c.l.b16 %v2446
      %v2851 = vunpack.c.l.b16 %v2447
      %v2852 = vunpack.c.l.b16 %v2448
      %v2853 = vunpack.c.l.b16 %v2449
      %v2854 = vunpack.c.l.b16 %v2450
      %v2855 = vunpack.c.l.b16 %v2451
      %v2856 = vunpack.c.l.b16 %v2452
      %v2857 = vunpack.c.l.b16 %v2453
      %v2858 = vunpack.c.l.b16 %v2454
      %v2859 = vunpack.c.l.b16 %v2455
      %v2860 = vunpack.c.l.b16 %v2456
      %v2861 = vunpack.c.l.b16 %v2457
      %v2862 = vunpack.c.l.b16 %v2458
      %v2863 = vunpack.c.l.b16 %v2459
      %v2864 = vunpack.c.l.b16 %v2460
      %v2865 = vunpack.c.l.b16 %v2461
      %v2866 = vunpack.c.l.b16 %v2462
      %v2867 = vunpack.c.l.b16 %v2463
      %v2868 = vunpack.c.l.b16 %v2464
      %v2869 = vunpack.c.l.b16 %v2465
      %v2870 = vunpack.c.l.b16 %v2466
      %v2871 = vunpack.c.l.b16 %v2467
      %v2872 = vunpack.c.l.b16 %v2468
      %v2873 = vunpack.c.l.b16 %v2469
      %v2874 = vunpack.c.l.b16 %v2470
      %v2875 = vunpack.c.l.b16 %v2471
      %v2876 = vunpack.c.l.b16 %v2472
      %v2877 = vunpack.c.l.b16 %v2473
      %v2878 = vunpack.c.l.b16 %v2474
      %v2879 = vunpack.c.l.b16 %v2475
      %v2880 = vunpack.c.l.b16 %v2476
      %v2881 = vunpack.c.l.b16 %v2477
      %v2882 = vunpack.c.l.b16 %v2478
      %v2883 = vunpack.c.l.b16 %v2479
      %v2884 = vunpack.c.l.b16 %v2480
      %v2885 = vunpack.c.l.b16 %v2481
      %v2886 = vunpack.c.l.b16 %v2482
      %v2887 = vunpack.c.l.b16 %v2483
      %v2888 = vunpack.c.l.b16 %v2484
      %v2889 = vunpack.c.l.b16 %v2485
      %v2890 = vunpack.c.l.b16 %v2486
      %v2891 = vunpack.c.l.b16 %v2487
      %v2892 = vunpack.c.l.b16 %v2488
      %v2893 = vunpack.c.l.b16 %v2489
      %v2894 = vunpack.c.l.b16 %v2490
      %v2895 = vunpack.c.l.b16 %v2491
      %v2896 = vunpack.c.l.b16 %v2492
      %v2897 = vunpack.c.l.b16 %v2493
      %v2898 = vunpack.c.l.b16 %v2494
      %v2899 = vunpack.c.l.b16 %v2495
      %v2900 = vunpack.c.l.b16 %v2496
      %v2901 = vunpack.c.l.b16 %v2497
      %v2902 = vunpack.c.l.b16 %v2498
      %v2903 = vunpack.c.l.b16 %v2499
      %v2904 = vunpack.c.l.b16 %v2500
      %v2905 = vunpack.c.l.b16 %v2501
      %v2906 = vunpack.c.l.b16 %v2502
      %v2907 = vunpack.c.l.b16 %v2503
      %v2908 = vunpack.c.l.b16 %v2504
      %v2909 = vunpack.c.l.b16 %v2505
      %v2910 = vunpack.c.l.b16 %v2506
      %v2911 = vunpack.c.l.b16 %v2507
      %v2912 = vunpack.c.l.b16 %v2508
      %v2913 = vunpack.c.l.b16 %v2509
      %v2914 = vpack.c.b16 %v2771, %v2770
      %v2915 = vpack.c.b16 %v2773, %v2772
      %v2916 = vpack.c.b16 %v2775, %v2774
      %v2917 = vpack.c.b16 %v2777, %v2776
      %v2918 = vpack.c.b16 %v2779, %v2778
      %v2919 = vpack.c.b16 %v2781, %v2780
      %v2920 = vpack.c.b16 %v2783, %v2782
      %v2921 = vpack.c.b16 %v2785, %v2784
      %v2922 = vpack.c.b16 %v2787, %v2786
      %v2923 = vpack.c.b16 %v2789, %v2788
      %v2924 = vpack.c.b16 %v2791, %v2790
      %v2925 = vpack.c.b16 %v2793, %v2792
      %v2926 = vpack.c.b16 %v2795, %v2794
      %v2927 = vpack.c.b16 %v2797, %v2796
      %v2928 = vpack.c.b16 %v2799, %v2798
      %v2929 = vpack.c.b16 %v2801, %v2800
      %v2930 = vpack.c.b16 %v2803, %v2802
      %v2931 = vpack.c.b16 %v2805, %v2804
      %v2932 = vpack.c.b16 %v2807, %v2806
      %v2933 = vpack.c.b16 %v2809, %v2808
      %v2934 = vpack.c.b16 %v2811, %v2810
      %v2935 = vpack.c.b16 %v2813, %v2812
      %v2936 = vpack.c.b16 %v2815, %v2814
      %v2937 = vpack.c.b16 %v2817, %v2816
      %v2938 = vpack.c.b16 %v2819, %v2818
      %v2939 = vpack.c.b16 %v2821, %v2820
      %v2940 = vpack.c.b16 %v2823, %v2822
      %v2941 = vpack.c.b16 %v2825, %v2824
      %v2942 = vpack.c.b16 %v2827, %v2826
      %v2943 = vpack.c.b16 %v2829, %v2828
      %v2944 = vpack.c.b16 %v2831, %v2830
      %v2945 = vpack.c.b16 %v2833, %v2832
      %v2946 = vpack.c.b16 %v2835, %v2834
      %v2947 = vpack.c.b16 %v2837, %v2836
      %v2948 = vpack.c.b16 %v2839, %v2838
      %v2949 = vpack.c.b16 %v2841, %v2840
      %v2950 = vpack.c.b16 %v2843, %v2842
      %v2951 = vpack.c.b16 %v2845, %v2844
      %v2952 = vpack.c.b16 %v2847, %v2846
      %v2953 = vpack.c.b16 %v2849, %v2848
      %v2954 = vpack.c.b16 %v2851, %v2850
      %v2955 = vpack.c.b16 %v2853, %v2852
      %v2956 = vpack.c.b16 %v2855, %v2854
      %v2957 = vpack.c.b16 %v2857, %v2856
      %v2958 = vpack.c.b16 %v2859, %v2858
      %v2959 = vpack.c.b16 %v2861, %v2860
      %v2960 = vpack.c.b16 %v2863, %v2862
      %v2961 = vpack.c.b16 %v2865, %v2864
      %v2962 = vpack.c.b16 %v2867, %v2866
      %v2963 = vpack.c.b16 %v2869, %v2868
      %v2964 = vpack.c.b16 %v2871, %v2870
      %v2965 = vpack.c.b16 %v2873, %v2872
      %v2966 = vpack.c.b16 %v2875, %v2874
      %v2967 = vpack.c.b16 %v2877, %v2876
      %v2968 = vpack.c.b16 %v2879, %v2878
      %v2969 = vpack.c.b16 %v2881, %v2880
      %v2970 = vpack.c.b16 %v2883, %v2882
      %v2971 = vpack.c.b16 %v2885, %v2884
      %v2972 = vpack.c.b16 %v2887, %v2886
      %v2973 = vpack.c.b16 %v2889, %v2888
      %v2974 = vpack.c.b16 %v2891, %v2890
      %v2975 = vpack.c.b16 %v2893, %v2892
      %v2976 = vpack.c.b16 %v2895, %v2894
      %v2977 = vpack.c.b16 %v2897, %v2896
      %v2978 = vpack.c.b16 %v2899, %v2898
      %v2979 = vpack.c.b16 %v2901, %v2900
      %v2980 = vpack.c.b16 %v2903, %v2902
      %v2981 = vpack.c.b16 %v2905, %v2904
      %v2982 = vpack.c.b16 %v2907, %v2906
      %v2983 = vpack.c.b16 %v2909, %v2908
      %v2984 = vpack.c.b16 %v2911, %v2910
      %v2985 = vpack.c.b16 %v2913, %v2912
      %3058 = vmatprep.subr.bf16.mxu0 0
      %3059 = vmatpush1.bf16.msra.mxu0 %v2914
      %3060 = vmatprep.subr.bf16.mxu0 0
      %3061 = vmatpush1.bf16.msra.mxu0 %v2915
      %3062 = vmatprep.subr.bf16.mxu0 0
      %3063 = vmatpush1.bf16.msra.mxu0 %v2916
      %3064 = vmatprep.subr.bf16.mxu0 0
      %3065 = vmatpush1.bf16.msra.mxu0 %v2917
      %3066 = vmatprep.subr.bf16.mxu0 0
      %3067 = vmatpush1.bf16.msra.mxu0 %v2918
      %3068 = vmatprep.subr.bf16.mxu0 0
      %3069 = vmatpush1.bf16.msra.mxu0 %v2919
      %3070 = vmatprep.subr.bf16.mxu0 0
      %3071 = vmatpush1.bf16.msra.mxu0 %v2920
      %3072 = vmatprep.subr.bf16.mxu0 0
      %3073 = vmatpush1.bf16.msra.mxu0 %v2921
      %3074 = vmatprep.subr.bf16.mxu0 0
      %3075 = vmatpush1.bf16.msra.mxu0 %v2922
      %3076 = vmatprep.subr.bf16.mxu0 0
      %3077 = vmatpush1.bf16.msra.mxu0 %v2923
      %3078 = vmatprep.subr.bf16.mxu0 0
      %3079 = vmatpush1.bf16.msra.mxu0 %v2924
      %3080 = vmatprep.subr.bf16.mxu0 0
      %3081 = vmatpush1.bf16.msra.mxu0 %v2925
      %3082 = vmatprep.subr.bf16.mxu0 0
      %3083 = vmatpush1.bf16.msra.mxu0 %v2926
      %3084 = vmatprep.subr.bf16.mxu0 0
      %3085 = vmatpush1.bf16.msra.mxu0 %v2927
      %3086 = vmatprep.subr.bf16.mxu0 0
      %3087 = vmatpush1.bf16.msra.mxu0 %v2928
      %3088 = vmatprep.subr.bf16.mxu0 0
      %3089 = vmatpush1.bf16.msra.mxu0 %v2929
      %3090 = vmatprep.mubr.bf16.mxu0 %v2531
      %3091 = vmatmul.mubr.bf16.gmra.mrb[0].mxu0 %v2519
      %v3092 = vpop.f32.mrb[0].mxu0
      %v3093 = vadd.f32 %v2624, %v3092
      %v3094 = vpop.f32.mrb[0].mxu0
      %v3095 = vpop.f32.mrb[0].mxu0
      %v3096 = vadd.f32 %v2624, %v3095
      %v3097 = vpop.f32.mrb[0].mxu0
      %3098 = vmatprep.mubr.bf16.mxu0 %v2532
      %3099 = vmatmul.mubr.bf16.gmra.mrb[0].mxu0 %v2520
      %v3100 = vpop.f32.mrb[0].mxu0
      %v3101 = vadd.f32 %v2624, %v3100
      %v3102 = vpop.f32.mrb[0].mxu0
      %v3103 = vpop.f32.mrb[0].mxu0
      %v3104 = vadd.f32 %v2624, %v3103
      %v3105 = vpop.f32.mrb[0].mxu0
      %3106 = vmatprep.mubr.bf16.mxu0 %v2533
      %3107 = vmatmul.mubr.bf16.gmra.mrb[0].mxu0 %v2521
      %v3108 = vpop.f32.mrb[0].mxu0
      %v3109 = vadd.f32 %v2624, %v3108
      %v3110 = vpop.f32.mrb[0].mxu0
      %v3111 = vpop.f32.mrb[0].mxu0
      %v3112 = vadd.f32 %v2624, %v3111
      %v3113 = vpop.f32.mrb[0].mxu0
      %3114 = vmatprep.mubr.bf16.mxu0 %v2534
      %3115 = vmatmul.mubr.bf16.gmra.mrb[0].mxu0 %v2522
      %v3116 = vpop.f32.mrb[0].mxu0
      %v3117 = vadd.f32 %v2624, %v3116
      %v3118 = vpop.f32.mrb[0].mxu0
      %v3119 = vpop.f32.mrb[0].mxu0
      %v3120 = vadd.f32 %v2624, %v3119
      %v3121 = vpop.f32.mrb[0].mxu0
      %3122 = vdwg.mxu0
      %3123 = vmatprep.subr.bf16.mxu0 0
      %3124 = vmatpush1.bf16.msra.mxu0 %v2930
      %3125 = vmatprep.subr.bf16.mxu0 0
      %3126 = vmatpush1.bf16.msra.mxu0 %v2931
      %3127 = vmatprep.subr.bf16.mxu0 0
      %3128 = vmatpush1.bf16.msra.mxu0 %v2932
      %3129 = vmatprep.subr.bf16.mxu0 0
      %3130 = vmatpush1.bf16.msra.mxu0 %v2933
      %3131 = vmatprep.subr.bf16.mxu0 0
      %3132 = vmatpush1.bf16.msra.mxu0 %v2934
      %3133 = vmatprep.subr.bf16.mxu0 0
      %3134 = vmatpush1.bf16.msra.mxu0 %v2935
      %3135 = vmatprep.subr.bf16.mxu0 0
      %3136 = vmatpush1.bf16.msra.mxu0 %v2936
      %3137 = vmatprep.subr.bf16.mxu0 0
      %3138 = vmatpush1.bf16.msra.mxu0 %v2937
      %3139 = vmatprep.subr.bf16.mxu0 0
      %3140 = vmatpush1.bf16.msra.mxu0 %v2938
      %3141 = vmatprep.subr.bf16.mxu0 0
      %3142 = vmatpush1.bf16.msra.mxu0 %v2939
      %3143 = vmatprep.subr.bf16.mxu0 0
      %3144 = vmatpush1.bf16.msra.mxu0 %v2940
      %3145 = vmatprep.subr.bf16.mxu0 0
      %3146 = vmatpush1.bf16.msra.mxu0 %v2941
      %3147 = vmatprep.subr.bf16.mxu0 0
      %3148 = vmatpush1.bf16.msra.mxu0 %v2942
      %3149 = vmatprep.subr.bf16.mxu0 0
      %3150 = vmatpush1.bf16.msra.mxu0 %v2943
      %3151 = vmatprep.subr.bf16.mxu0 0
      %3152 = vmatpush1.bf16.msra.mxu0 %v2944
      %3153 = vmatprep.subr.bf16.mxu0 0
      %3154 = vmatpush1.bf16.msra.mxu0 %v2945
      %3155 = vmatprep.mubr.bf16.mxu0 %v2555
      %3156 = vmatmul.mubr.bf16.gmra.mrb[0].mxu0 %v2543
      %v3157 = vpop.f32.mrb[0].mxu0
      %v3158 = vadd.f32 %v3093, %v3157
      %v3159 = vpop.f32.mrb[0].mxu0
      %v3160 = vpop.f32.mrb[0].mxu0
      %v3161 = vadd.f32 %v3096, %v3160
      %v3162 = vpop.f32.mrb[0].mxu0
      %3163 = vmatprep.mubr.bf16.mxu0 %v2556
      %3164 = vmatmul.mubr.bf16.gmra.mrb[0].mxu0 %v2544
      %v3165 = vpop.f32.mrb[0].mxu0
      %v3166 = vadd.f32 %v3101, %v3165
      %v3167 = vpop.f32.mrb[0].mxu0
      %v3168 = vpop.f32.mrb[0].mxu0
      %v3169 = vadd.f32 %v3104, %v3168
      %v3170 = vpop.f32.mrb[0].mxu0
      %3171 = vmatprep.mubr.bf16.mxu0 %v2557
      %3172 = vmatmul.mubr.bf16.gmra.mrb[0].mxu0 %v2545
      %v3173 = vpop.f32.mrb[0].mxu0
      %v3174 = vadd.f32 %v3109, %v3173
      %v3175 = vpop.f32.mrb[0].mxu0
      %v3176 = vpop.f32.mrb[0].mxu0
      %v3177 = vadd.f32 %v3112, %v3176
      %v3178 = vpop.f32.mrb[0].mxu0
      %3179 = vmatprep.mubr.bf16.mxu0 %v2558
      %3180 = vmatmul.mubr.bf16.gmra.mrb[0].mxu0 %v2546
      %v3181 = vpop.f32.mrb[0].mxu0
      %v3182 = vadd.f32 %v3117, %v3181
      %v3183 = vpop.f32.mrb[0].mxu0
      %v3184 = vpop.f32.mrb[0].mxu0
      %v3185 = vadd.f32 %v3120, %v3184
      %v3186 = vpop.f32.mrb[0].mxu0
      %3187 = vdwg.mxu0
      %3188 = vmatprep.subr.bf16.mxu0 0
      %3189 = vmatpush1.bf16.msra.mxu0 %v2946
      %3190 = vmatprep.subr.bf16.mxu0 0
      %3191 = vmatpush1.bf16.msra.mxu0 %v2947
      %3192 = vmatprep.subr.bf16.mxu0 0
      %3193 = vmatpush1.bf16.msra.mxu0 %v2948
      %3194 = vmatprep.subr.bf16.mxu0 0
      %3195 = vmatpush1.bf16.msra.mxu0 %v2949
      %3196 = vmatprep.subr.bf16.mxu0 0
      %3197 = vmatpush1.bf16.msra.mxu0 %v2950
      %3198 = vmatprep.subr.bf16.mxu0 0
      %3199 = vmatpush1.bf16.msra.mxu0 %v2951
      %3200 = vmatprep.subr.bf16.mxu0 0
      %3201 = vmatpush1.bf16.msra.mxu0 %v2952
      %3202 = vmatprep.subr.bf16.mxu0 0
      %3203 = vmatpush1.bf16.msra.mxu0 %v2953
      %3204 = vmatprep.subr.bf16.mxu0 0
      %3205 = vmatpush1.bf16.msra.mxu0 %v2954
      %3206 = vmatprep.subr.bf16.mxu0 0
      %3207 = vmatpush1.bf16.msra.mxu0 %v2955
      %3208 = vmatprep.subr.bf16.mxu0 0
      %3209 = vmatpush1.bf16.msra.mxu0 %v2956
      %3210 = vmatprep.subr.bf16.mxu0 0
      %3211 = vmatpush1.bf16.msra.mxu0 %v2957
      %3212 = vmatprep.subr.bf16.mxu0 0
      %3213 = vmatpush1.bf16.msra.mxu0 %v2958
      %3214 = vmatprep.subr.bf16.mxu0 0
      %3215 = vmatpush1.bf16.msra.mxu0 %v2959
      %3216 = vmatprep.subr.bf16.mxu0 0
      %3217 = vmatpush1.bf16.msra.mxu0 %v2960
      %3218 = vmatprep.subr.bf16.mxu0 0
      %3219 = vmatpush1.bf16.msra.mxu0 %v2961
      %3220 = vmatprep.mubr.bf16.mxu0 %v2579
      %3221 = vmatmul.mubr.bf16.gmra.mrb[0].mxu0 %v2567
      %v3222 = vpop.f32.mrb[0].mxu0
      %v3223 = vadd.f32 %v3158, %v3222
      %v3224 = vpop.f32.mrb[0].mxu0
      %v3225 = vpop.f32.mrb[0].mxu0
      %v3226 = vadd.f32 %v3161, %v3225
      %v3227 = vpop.f32.mrb[0].mxu0
      %3228 = vmatprep.mubr.bf16.mxu0 %v2580
      %3229 = vmatmul.mubr.bf16.gmra.mrb[0].mxu0 %v2568
      %v3230 = vpop.f32.mrb[0].mxu0
      %v3231 = vadd.f32 %v3166, %v3230
      %v3232 = vpop.f32.mrb[0].mxu0
      %v3233 = vpop.f32.mrb[0].mxu0
      %v3234 = vadd.f32 %v3169, %v3233
      %v3235 = vpop.f32.mrb[0].mxu0
      %3236 = vmatprep.mubr.bf16.mxu0 %v2581
      %3237 = vmatmul.mubr.bf16.gmra.mrb[0].mxu0 %v2569
      %v3238 = vpop.f32.mrb[0].mxu0
      %v3239 = vadd.f32 %v3174, %v3238
      %v3240 = vpop.f32.mrb[0].mxu0
      %v3241 = vpop.f32.mrb[0].mxu0
      %v3242 = vadd.f32 %v3177, %v3241
      %v3243 = vpop.f32.mrb[0].mxu0
      %3244 = vmatprep.mubr.bf16.mxu0 %v2582
      %3245 = vmatmul.mubr.bf16.gmra.mrb[0].mxu0 %v2570
      %v3246 = vpop.f32.mrb[0].mxu0
      %v3247 = vadd.f32 %v3182, %v3246
      %v3248 = vpop.f32.mrb[0].mxu0
      %v3249 = vpop.f32.mrb[0].mxu0
      %v3250 = vadd.f32 %v3185, %v3249
      %v3251 = vpop.f32.mrb[0].mxu0
      %3252 = vdwg.mxu0
      %3253 = vmatprep.subr.bf16.mxu0 0
      %3254 = vmatpush1.bf16.msra.mxu0 %v2962
      %3255 = vmatprep.subr.bf16.mxu0 0
      %3256 = vmatpush1.bf16.msra.mxu0 %v2963
      %3257 = vmatprep.subr.bf16.mxu0 0
      %3258 = vmatpush1.bf16.msra.mxu0 %v2964
      %3259 = vmatprep.subr.bf16.mxu0 0
      %3260 = vmatpush1.bf16.msra.mxu0 %v2965
      %3261 = vmatprep.subr.bf16.mxu0 0
      %3262 = vmatpush1.bf16.msra.mxu0 %v2966
      %3263 = vmatprep.subr.bf16.mxu0 0
      %3264 = vmatpush1.bf16.msra.mxu0 %v2967
      %3265 = vmatprep.subr.bf16.mxu0 0
      %3266 = vmatpush1.bf16.msra.mxu0 %v2968
      %3267 = vmatprep.subr.bf16.mxu0 0
      %3268 = vmatpush1.bf16.msra.mxu0 %v2969
      %3269 = vmatprep.subr.bf16.mxu0 0
      %3270 = vmatpush1.bf16.msra.mxu0 %v2970
      %3271 = vmatprep.subr.bf16.mxu0 0
      %3272 = vmatpush1.bf16.msra.mxu0 %v2971
      %3273 = vmatprep.subr.bf16.mxu0 0
      %3274 = vmatpush1.bf16.msra.mxu0 %v2972
      %3275 = vmatprep.subr.bf16.mxu0 0
      %3276 = vmatpush1.bf16.msra.mxu0 %v2973
      %3277 = vmatprep.subr.bf16.mxu0 0
      %3278 = vmatpush1.bf16.msra.mxu0 %v2974
      %3279 = vmatprep.subr.bf16.mxu0 0
      %3280 = vmatpush1.bf16.msra.mxu0 %v2975
      %3281 = vmatprep.subr.bf16.mxu0 0
      %3282 = vmatpush1.bf16.msra.mxu0 %v2976
      %3283 = vmatprep.subr.bf16.mxu0 0
      %3284 = vmatpush1.bf16.msra.mxu0 %v2977
      %3285 = vmatprep.mubr.bf16.mxu0 %v2604
      %3286 = vmatmul.mubr.bf16.gmra.mrb[0].mxu0 %v2592
      %v3287 = vpop.f32.mrb[0].mxu0
      %v3288 = vadd.f32 %v3223, %v3287
      %v3289 = vpop.f32.mrb[0].mxu0
      %v3290 = vpop.f32.mrb[0].mxu0
      %v3291 = vadd.f32 %v3226, %v3290
      %v3292 = vpop.f32.mrb[0].mxu0
      %3293 = vmatprep.mubr.bf16.mxu0 %v2605
      %3294 = vmatmul.mubr.bf16.gmra.mrb[0].mxu0 %v2593
      %v3295 = vpop.f32.mrb[0].mxu0
      %v3296 = vadd.f32 %v3231, %v3295
      %v3297 = vpop.f32.mrb[0].mxu0
      %v3298 = vpop.f32.mrb[0].mxu0
      %v3299 = vadd.f32 %v3234, %v3298
      %v3300 = vpop.f32.mrb[0].mxu0
      %3301 = vmatprep.mubr.bf16.mxu0 %v2606
      %3302 = vmatmul.mubr.bf16.gmra.mrb[0].mxu0 %v2594
      %v3303 = vpop.f32.mrb[0].mxu0
      %v3304 = vadd.f32 %v3239, %v3303
      %v3305 = vpop.f32.mrb[0].mxu0
      %v3306 = vpop.f32.mrb[0].mxu0
      %v3307 = vadd.f32 %v3242, %v3306
      %v3308 = vpop.f32.mrb[0].mxu0
      %3309 = vmatprep.mubr.bf16.mxu0 %v2607
      %3310 = vmatmul.mubr.bf16.gmra.mrb[0].mxu0 %v2595
      %v3311 = vpop.f32.mrb[0].mxu0
      %v3312 = vadd.f32 %v3247, %v3311
      %v3313 = vpop.f32.mrb[0].mxu0
      %v3314 = vpop.f32.mrb[0].mxu0
      %v3315 = vadd.f32 %v3250, %v3314
      %v3316 = vpop.f32.mrb[0].mxu0
      %3317 = vdwg.mxu0
      %3318 = vmatprep.subr.bf16.mxu0 0
      %3319 = vmatpush1.bf16.msra.mxu0 %v2978
      %3320 = vmatprep.subr.bf16.mxu0 0
      %3321 = vmatpush1.bf16.msra.mxu0 %v2979
      %3322 = vmatprep.subr.bf16.mxu0 0
      %3323 = vmatpush1.bf16.msra.mxu0 %v2980
      %3324 = vmatprep.subr.bf16.mxu0 0
      %3325 = vmatpush1.bf16.msra.mxu0 %v2981
      %3326 = vmatprep.subr.bf16.mxu0 0
      %3327 = vmatpush1.bf16.msra.mxu0 %v2982
      %3328 = vmatprep.subr.bf16.mxu0 0
      %3329 = vmatpush1.bf16.msra.mxu0 %v2983
      %3330 = vmatprep.subr.bf16.mxu0 0
      %3331 = vmatpush1.bf16.msra.mxu0 %v2984
      %3332 = vmatprep.subr.bf16.mxu0 0
      %3333 = vmatpush1.bf16.msra.mxu0 %v2985
      %3334 = vmatprep.subr.bf16.mxu0 0
      %3335 = vmatpush1.bf16.msra.mxu0 0
      %3336 = vmatprep.subr.bf16.mxu0 0
      %3337 = vmatpush1.bf16.msra.mxu0 0
      %3338 = vmatprep.subr.bf16.mxu0 0
      %3339 = vmatpush1.bf16.msra.mxu0 0
      %3340 = vmatprep.subr.bf16.mxu0 0
      %3341 = vmatpush1.bf16.msra.mxu0 0
      %3342 = vmatprep.subr.bf16.mxu0 0
      %3343 = vmatpush1.bf16.msra.mxu0 0
      %3344 = vmatprep.subr.bf16.mxu0 0
      %3345 = vmatpush1.bf16.msra.mxu0 0
      %3346 = vmatprep.subr.bf16.mxu0 0
      %3347 = vmatpush1.bf16.msra.mxu0 0
      %3348 = vmatprep.subr.bf16.mxu0 0
      %3349 = vmatpush1.bf16.msra.mxu0 0
      %3350 = vmatprep.mubr.bf16.mxu0 0
      %3351 = vmatmul.mubr.bf16.gmra.mrb[0].mxu0 %v2616
      %v3352 = vpop.f32.mrb[0].mxu0
      %v3353 = vadd.f32 %v3288, %v3352
      %v3354 = vpop.f32.mrb[0].mxu0
      %v3355 = vpop.f32.mrb[0].mxu0
      %v3356 = vadd.f32 %v3291, %v3355
      %v3357 = vpop.f32.mrb[0].mxu0
      %3358 = vmatprep.mubr.bf16.mxu0 0
      %3359 = vmatmul.mubr.bf16.gmra.mrb[0].mxu0 %v2617
      %v3360 = vpop.f32.mrb[0].mxu0
      %v3361 = vadd.f32 %v3296, %v3360
      %v3362 = vpop.f32.mrb[0].mxu0
      %v3363 = vpop.f32.mrb[0].mxu0
      %v3364 = vadd.f32 %v3299, %v3363
      %v3365 = vpop.f32.mrb[0].mxu0
      %3366 = vmatprep.mubr.bf16.mxu0 0
      %3367 = vmatmul.mubr.bf16.gmra.mrb[0].mxu0 %v2618
      %v3368 = vpop.f32.mrb[0].mxu0
      %v3369 = vadd.f32 %v3304, %v3368
      %v3370 = vpop.f32.mrb[0].mxu0
      %v3371 = vpop.f32.mrb[0].mxu0
      %v3372 = vadd.f32 %v3307, %v3371
      %v3373 = vpop.f32.mrb[0].mxu0
      %3374 = vmatprep.mubr.bf16.mxu0 0
      %3375 = vmatmul.mubr.bf16.gmra.mrb[0].mxu0 %v2619
      %v3376 = vpop.f32.mrb[0].mxu0
      %v3377 = vadd.f32 %v3312, %v3376
      %v3378 = vpop.f32.mrb[0].mxu0
      %v3379 = vpop.f32.mrb[0].mxu0
      %v3380 = vadd.f32 %v3315, %v3379
      %v3381 = vpop.f32.mrb[0].mxu0
      %3382 = vdwg.mxu0
      %v3383 = vmax.f32 %v3353, 0.0
      %v3384 = vmax.f32 %v3356, 0.0
      %v3385 = vmax.f32 %v3361, 0.0
      %v3386 = vmax.f32 %v3364, 0.0
      %v3387 = vmax.f32 %v3369, 0.0
      %v3388 = vmax.f32 %v3372, 0.0
      %v3389 = vmax.f32 %v3377, 0.0
      %v3390 = vmax.f32 %v3380, 0.0
      %3391 = vst [vmem:[%s224] sm:$0xff] %v3383
      %3392 = vst [vmem:[%s224 + $0x8] sm:$0xff] %v3384
      %3393 = vst [vmem:[%s224 + $0x10] sm:$0xff] %v3385
      %3394 = vst [vmem:[%s224 + $0x18] sm:$0xff] %v3386
      %3395 = vst [vmem:[%s224 + $0x20] sm:$0xff] %v3387
      %3396 = vst [vmem:[%s224 + $0x28] sm:$0xff] %v3388
      %3397 = vst [vmem:[%s224 + $0x30] sm:$0xff] %v3389
      %3398 = vst [vmem:[%s224 + $0x38] sm:$0xff] %v3390
      %p3399 = scmp.lt.s32.totalorder %s16, 1
      %s3400 = scalar_select %p3399, %s16, 1
      %s3401 = smul.addr %s3400, 8
      %s3402 = smul.addr %s3401, 8
      %s3403 = scalar_lea.vmem %s5, %s3402
      // Predicated region
      $region41: #{down_forward.1} parent=39 // pred_check
        %p3404 = pneg %p144
      $region42: #{down_forward.1} parent=39 // pred_check_branch
        %3406 = sbr.rel (%p3404) target = $region44
      $region43: #{down_forward.1} parent=39 // pred_region
        _
      $region44: #{down_forward.1} parent=39 // pred_fallthru
        _
    $region40: #{down_forward.1} parent=5 // pred_fallthru
      _
    %p3407 = scmp.le.s32.totalorder 2, %s11
    // Predicated region
    $region45: #{down_forward.1} parent=5 // pred_check
      %p3408 = pneg %p3407
    $region46: #{down_forward.1} parent=5 // pred_check_branch
      %3410 = sbr.rel (%p3408) target = $region48
    $region47: #{down_forward.1} parent=5 // pred_region
      %s3411 = ssub.s32 %s11, 2
      // Predicated region
      $region49: #{down_forward.1} parent=47 // pred_check
        %p3412 = pneg %p150
      $region50: #{down_forward.1} parent=47 // pred_check_branch
        %3414 = sbr.rel (%p3412) target = $region52
      $region51: #{down_forward.1} parent=47 // pred_region
        %p3415 = scmp.lt.s32.totalorder %s17, 1
        %s3416 = scalar_select %p3415, %s17, 1
        %s3417 = smul.addr %s3416, 8
        %s3418 = smul.addr %s3417, 8
        %s3419 = scalar_lea.vmem %s5, %s3418
      $region52: #{down_forward.1} parent=47 // pred_fallthru
        _
    $region48: #{down_forward.1} parent=5 // pred_fallthru
      _
  $region6: #{down_forward.1} parent=0 // loop_footer
    %s15 = sadd.s32 1, %s11
  $region7: #{down_forward.1} parent=0 // loop_footer_branch
    %10 = sbr.rel target = $region3
  $region8: #{down_forward.1} parent=0 // loop_exit
    _

</llo_original>
